<compile_context>
chip_gen: v6e
topology: v6e:2x2x1
jax: 0.10.0
libtpu: 0.0.40
codegen_flags: <defaults>
</compile_context>

<pallas_src>
import jax
import jax.numpy as jnp
from jax.experimental import pallas as pl
from jax.experimental.pallas import tpu as pltpu


def _round_up(x, m):
    return (x + m - 1) // m * m


_VMEM_LIMIT = 32 * 1024 * 1024


# ----------------------------------------------------------------------------
# Pointwise 1x1 conv  ==  tiled (M, Cin) @ (Cin, Cout) + bias
# ----------------------------------------------------------------------------

def _matmul_bias_kernel(x_ref, w_ref, b_ref, o_ref):
    o_ref[...] = (jnp.dot(x_ref[...], w_ref[...],
                          preferred_element_type=jnp.float32)
                  + b_ref[...]).astype(o_ref.dtype)


def matmul_bias(x2d, w, b, tm=256):
    M, Cin = x2d.shape
    Cout = w.shape[1]
    tm = min(tm, _round_up(M, 8))
    Mp = _round_up(M, tm)
    xp = jnp.pad(x2d, ((0, Mp - M), (0, 0))) if Mp != M else x2d
    isz = jnp.dtype(x2d.dtype).itemsize
    ce = pl.CostEstimate(
        flops=int(2 * Mp * Cin * Cout),
        transcendentals=0,
        bytes_accessed=int(isz * (Mp * Cin + Mp * Cout + Cin * Cout + Cout)))
    out = pl.pallas_call(
        _matmul_bias_kernel,
        out_shape=jax.ShapeDtypeStruct((Mp, Cout), x2d.dtype),
        grid=(Mp // tm,),
        in_specs=[pl.BlockSpec((tm, Cin), lambda i: (i, 0)),
                  pl.BlockSpec((Cin, Cout), lambda i: (0, 0)),
                  pl.BlockSpec((1, Cout), lambda i: (0, 0))],
        out_specs=pl.BlockSpec((tm, Cout), lambda i: (i, 0)),
        compiler_params=pltpu.CompilerParams(
            dimension_semantics=("parallel",),
            vmem_limit_bytes=_VMEM_LIMIT),
        cost_estimate=ce,
    )(xp, w, b.reshape(1, Cout))
    return out[:M] if Mp != M else out


# ----------------------------------------------------------------------------
# Fused depthwise 3x3 (+1 halo, zero-padded) + pointwise 1x1, one batch / step
# ----------------------------------------------------------------------------

def _dwsep_kernel(x_ref, dww_ref, dwb_ref, pww_ref, pwb_ref, o_ref, pad_ref):
    H, W = o_ref.shape[1], o_ref.shape[2]
    Cin = x_ref.shape[3]
    # Zero the halo scratch, drop the tile at a sublane-aligned offset (1, 8)
    # so the interior store is aligned; boundary taps read the zero border.
    pad_ref[...] = jnp.zeros_like(pad_ref)
    pad_ref[1:H + 1, 8:8 + W, :] = x_ref[0].astype(jnp.float32)

    w = dww_ref[...]                                   # (9, Cin)
    acc = jnp.zeros((H, W, Cin), jnp.float32)
    for dy in range(3):
        for dx in range(3):
            tap = pad_ref[dy:dy + H, 7 + dx:7 + dx + W, :]
            acc = acc + tap * w[dy * 3 + dx]
    acc = acc + dwb_ref[...]                           # (1, Cin) broadcast

    # Pointwise 1x1 directly on the VMEM-resident depthwise result.
    y = (jnp.dot(acc.reshape(H * W, Cin), pww_ref[...].astype(jnp.float32),
                 preferred_element_type=jnp.float32)
         + pwb_ref[...])
    o_ref[0] = y.reshape(H, W, -1).astype(o_ref.dtype)


def dwsep_conv(x_nhwc, p):
    B, H, W, Cin = x_nhwc.shape
    Cout = p["pw_w"].shape[1]
    pad_w = 8 + _round_up(W + 1, 8)                    # aligned halo buffer width
    ce = pl.CostEstimate(
        flops=int(B * H * W * (18 * Cin + 2 * Cin * Cout)),
        transcendentals=0,
        bytes_accessed=int(4 * (B * H * W * (Cin + Cout)
                                + 10 * Cin + Cin * Cout + Cout)))
    return pl.pallas_call(
        _dwsep_kernel,
        out_shape=jax.ShapeDtypeStruct((B, H, W, Cout), x_nhwc.dtype),
        grid=(B,),
        in_specs=[pl.BlockSpec((1, H, W, Cin), lambda b: (b, 0, 0, 0)),
                  pl.BlockSpec((9, Cin), lambda b: (0, 0)),
                  pl.BlockSpec((1, Cin), lambda b: (0, 0)),
                  pl.BlockSpec((Cin, Cout), lambda b: (0, 0)),
                  pl.BlockSpec((1, Cout), lambda b: (0, 0))],
        out_specs=pl.BlockSpec((1, H, W, Cout), lambda b: (b, 0, 0, 0)),
        scratch_shapes=[pltpu.VMEM((H + 2, pad_w, Cin), jnp.float32)],
        compiler_params=pltpu.CompilerParams(
            dimension_semantics=("parallel",),
            vmem_limit_bytes=_VMEM_LIMIT),
        cost_estimate=ce,
    )(x_nhwc, p["dw_w"], p["dw_b"].reshape(1, Cin),
      p["pw_w"], p["pw_b"].reshape(1, Cout))


# ----------------------------------------------------------------------------
# AFNO spectral block-MLP on packed [real | imag] rows, tiled over M
# ----------------------------------------------------------------------------

def _afno_mix_kernel(z_ref, w1_ref, b1_ref, w2_ref, b2_ref, o_ref):
    lam = 0.01
    h = jnp.maximum(
        jnp.dot(z_ref[...], w1_ref[...], preferred_element_type=jnp.float32)
        + b1_ref[...], 0.0)
    o = (jnp.dot(h, w2_ref[...], preferred_element_type=jnp.float32)
         + b2_ref[...])
    o_ref[...] = jnp.where(o > lam, o - lam,
                           jnp.where(o < -lam, o + lam, 0.0)).astype(o_ref.dtype)


def afno_mix(z, p, tm=256):
    M, C2 = z.shape
    Ch2 = p["w1p"].shape[1]
    tm = min(tm, _round_up(M, 8))
    Mp = _round_up(M, tm)
    zp = jnp.pad(z, ((0, Mp - M), (0, 0))) if Mp != M else z
    ce = pl.CostEstimate(
        flops=int(4 * Mp * C2 * Ch2),
        transcendentals=0,
        bytes_accessed=int(4 * (2 * Mp * C2 + 2 * C2 * Ch2 + Ch2 + C2)))
    out = pl.pallas_call(
        _afno_mix_kernel,
        out_shape=jax.ShapeDtypeStruct((Mp, C2), jnp.float32),
        grid=(Mp // tm,),
        in_specs=[pl.BlockSpec((tm, C2), lambda i: (i, 0)),
                  pl.BlockSpec((C2, Ch2), lambda i: (0, 0)),
                  pl.BlockSpec((1, Ch2), lambda i: (0, 0)),
                  pl.BlockSpec((Ch2, C2), lambda i: (0, 0)),
                  pl.BlockSpec((1, C2), lambda i: (0, 0))],
        out_specs=pl.BlockSpec((tm, C2), lambda i: (i, 0)),
        compiler_params=pltpu.CompilerParams(
            dimension_semantics=("parallel",),
            vmem_limit_bytes=_VMEM_LIMIT),
        cost_estimate=ce,
    )(zp, p["w1p"], p["b1p"].reshape(1, Ch2), p["w2p"], p["b2p"].reshape(1, C2))
    return out[:M] if Mp != M else out


# ----------------------------------------------------------------------------
# Module forward (JAX glue + Pallas hot paths)
# ----------------------------------------------------------------------------

def afno2d_forward(x, p):
    """AFNO2D.forward — reproduces the torch reshape (NOT permute) semantics."""
    bias = x
    dtype = x.dtype
    xf = x.astype(jnp.float32)
    B, C, H, W = x.shape
    # torch does x.reshape(B, H, W, C): raw memory reinterpret of NCHW data.
    x4 = xf.reshape(B, H, W, C)
    xc = jnp.fft.rfft2(x4, axes=(1, 2), norm="ortho")          # (B, H, W//2+1, C)
    Hf, Wf = xc.shape[1], xc.shape[2]
    M = B * Hf * Wf
    # hard_thresholding_fraction = 1 -> all modes kept, no masking needed.
    z = jnp.concatenate([jnp.real(xc).reshape(M, C),
                         jnp.imag(xc).reshape(M, C)], axis=-1).astype(jnp.float32)
    o = afno_mix(z, p)                                          # (M, 2C) packed
    oc = (o[:, :C] + 1j * o[:, C:]).reshape(B, Hf, Wf, C)
    y = jnp.fft.irfft2(oc, s=(H, W), axes=(1, 2), norm="ortho")
    y = y.reshape(B, C, H, W).astype(dtype)                     # raw reshape back
    return y + bias


def feature_extractor_forward(x, params):
    B, C, H, W = x.shape
    features = []

    # single NCHW -> NHWC transpose shared by conv1d and the dw chain
    x_nhwc = jnp.transpose(x, (0, 2, 3, 1))

    # --- self.conv1d : 1x1 conv --------------------------------------------
    f0 = matmul_bias(x_nhwc.reshape(B * H * W, C),
                     params["conv1d"]["w"], params["conv1d"]["b"])
    features.append(jnp.transpose(f0.reshape(B, H, W, -1), (0, 3, 1, 2)))

    # --- self.dw : chain of fused depthwise-separable convs ------------------
    xd = x_nhwc
    for p in params["dw"]:
        xd = dwsep_conv(xd, p)
    features.append(jnp.transpose(xd, (0, 3, 1, 2)))

    # --- self.afno : chain of AFNO2D blocks ----------------------------------
    xa = x
    for p in params["afno"]:
        xa = afno2d_forward(xa, p)
    features.append(xa)

    return features


# ----------------------------------------------------------------------------
# Deterministic parameter init
# ----------------------------------------------------------------------------

def _block_diag(blocks):
    """(NB, BS, BSo) -> (NB*BS, NB*BSo) block-diagonal matrix."""
    NB, BS, BSo = blocks.shape
    out = jnp.zeros((NB * BS, NB * BSo), blocks.dtype)
    for b in range(NB):
        out = out.at[b * BS:(b + 1) * BS, b * BSo:(b + 1) * BSo].set(blocks[b])
    return out


def init_params(key, in_ch, out_ch, dw_num=3, afno_num=3, num_blocks=16):
    assert in_ch % num_blocks == 0
    bs = in_ch // num_blocks
    keys = iter(jax.random.split(key, 2 + 4 * dw_num + 4 * afno_num))
    nk = lambda shape, s=0.02: s * jax.random.normal(next(keys), shape, jnp.float32)

    params = {
        "conv1d": {"w": nk((in_ch, out_ch), 0.1), "b": nk((out_ch,), 0.1)},
        "dw": [],
        "afno": [],
    }
    for _ in range(dw_num):
        params["dw"].append({
            "dw_w": nk((9, in_ch), 0.1),         # depthwise 3x3, per-channel taps
            "dw_b": nk((in_ch,), 0.1),
            "pw_w": nk((in_ch, out_ch), 0.1),    # pointwise 1x1
            "pw_b": nk((out_ch,), 0.1),
        })
    for _ in range(afno_num):
        w1 = nk((2, num_blocks, bs, bs))         # scale = 0.02, as in AFNO2D
        b1 = nk((2, num_blocks, bs))
        w2 = nk((2, num_blocks, bs, bs))
        b2 = nk((2, num_blocks, bs))
        w1r, w1i = _block_diag(w1[0]), _block_diag(w1[1])
        w2r, w2i = _block_diag(w2[0]), _block_diag(w2[1])
        # Complex matmul as a single stacked real matmul:
        #   [xr | xi] @ [[Wr, Wi], [-Wi, Wr]] = [xr*Wr - xi*Wi | xr*Wi + xi*Wr]
        w1p = jnp.concatenate([jnp.concatenate([w1r, w1i], axis=1),
                               jnp.concatenate([-w1i, w1r], axis=1)], axis=0)
        w2p = jnp.concatenate([jnp.concatenate([w2r, w2i], axis=1),
                               jnp.concatenate([-w2i, w2r], axis=1)], axis=0)
        params["afno"].append({
            "w1p": w1p,
            "b1p": jnp.concatenate([b1[0].reshape(-1), b1[1].reshape(-1)]),
            "w2p": w2p,
            "b2p": jnp.concatenate([b2[0].reshape(-1), b2[1].reshape(-1)]),
        })
    return params


# ----------------------------------------------------------------------------

if __name__ == "__main__":
    key = jax.random.PRNGKey(0)
    kx, kp = jax.random.split(key)

    B, C, H, W = 2, 32, 16, 16           # in_channels = out_channels = 32 (div by 16)
    x = jax.random.normal(kx, (B, C, H, W), jnp.float32)
    params = init_params(kp, in_ch=C, out_ch=C)

    fwd = jax.jit(feature_extractor_forward)
    feats = jax.block_until_ready(fwd(x, params))

    assert feats[0].shape == (B, C, H, W)
    assert feats[1].shape == (B, C, H, W)
    assert feats[2].shape == (B, C, H, W)
    assert all(bool(jnp.isfinite(f).all()) for f in feats)
    print("KERNEL_OK")
</pallas_src>

<mosaic_0001>
module attributes {stable_mosaic.version = 11 : i64} {
  func.func @_afno_mix_kernel(%arg0: i32, %arg1: memref<256x64xf32, #tpu.memory_space<vmem>>, %arg2: memref<64x64xf32, #tpu.memory_space<vmem>>, %arg3: memref<1x64xf32, #tpu.memory_space<vmem>>, %arg4: memref<64x64xf32, #tpu.memory_space<vmem>>, %arg5: memref<1x64xf32, #tpu.memory_space<vmem>>, %arg6: memref<256x64xf32, #tpu.memory_space<vmem>>) attributes {dimension_semantics = [#tpu.dimension_semantics<parallel>], iteration_bounds = array<i64: 2>, scalar_prefetch = 0 : i64, scratch_operands = 0 : i64, tpu.core_type = #tpu.core_type<tc>, window_params = [{transform_indices = @transform_0, window_bounds = array<i64: 256, 64>}, {pipeline_mode = #tpu.pipeline_mode<synchronous>, transform_indices = @transform_1, window_bounds = array<i64: 64, 64>}, {pipeline_mode = #tpu.pipeline_mode<synchronous>, transform_indices = @transform_2, window_bounds = array<i64: 1, 64>}, {pipeline_mode = #tpu.pipeline_mode<synchronous>, transform_indices = @transform_3, window_bounds = array<i64: 64, 64>}, {pipeline_mode = #tpu.pipeline_mode<synchronous>, transform_indices = @transform_4, window_bounds = array<i64: 1, 64>}, {transform_indices = @transform_5, window_bounds = array<i64: 256, 64>}]} {
    %c0 = arith.constant 0 : index
    %c0_0 = arith.constant 0 : index
    %0 = vector.load %arg1[%c0, %c0_0] : memref<256x64xf32, #tpu.memory_space<vmem>>, vector<256x64xf32>
    %c0_1 = arith.constant 0 : index
    %c0_2 = arith.constant 0 : index
    %1 = vector.load %arg2[%c0_1, %c0_2] : memref<64x64xf32, #tpu.memory_space<vmem>>, vector<64x64xf32>
    %cst = arith.constant dense<0.000000e+00> : vector<256x64xf32>
    %2 = tpu.matmul %0, %1, %cst {dimension_numbers = #tpu.dot_dimension_numbers<[1], [0], [0], [1], [0, 0, 1, 1], [], []>} : vector<256x64xf32>, vector<64x64xf32>, vector<256x64xf32> -> vector<256x64xf32>
    %c0_3 = arith.constant 0 : index
    %c0_4 = arith.constant 0 : index
    %3 = vector.load %arg3[%c0_3, %c0_4] : memref<1x64xf32, #tpu.memory_space<vmem>>, vector<1x64xf32>
    %4 = vector.broadcast %3 : vector<1x64xf32> to vector<256x64xf32>
    %5 = arith.addf %2, %4 : vector<256x64xf32>
    %cst_5 = arith.constant 0.000000e+00 : f32
    %6 = vector.broadcast %cst_5 : f32 to vector<256x64xf32>
    %7 = arith.maximumf %5, %6 : vector<256x64xf32>
    %c0_6 = arith.constant 0 : index
    %c0_7 = arith.constant 0 : index
    %8 = vector.load %arg4[%c0_6, %c0_7] : memref<64x64xf32, #tpu.memory_space<vmem>>, vector<64x64xf32>
    %cst_8 = arith.constant dense<0.000000e+00> : vector<256x64xf32>
    %9 = tpu.matmul %7, %8, %cst_8 {dimension_numbers = #tpu.dot_dimension_numbers<[1], [0], [0], [1], [0, 0, 1, 1], [], []>} : vector<256x64xf32>, vector<64x64xf32>, vector<256x64xf32> -> vector<256x64xf32>
    %c0_9 = arith.constant 0 : index
    %c0_10 = arith.constant 0 : index
    %10 = vector.load %arg5[%c0_9, %c0_10] : memref<1x64xf32, #tpu.memory_space<vmem>>, vector<1x64xf32>
    %11 = vector.broadcast %10 : vector<1x64xf32> to vector<256x64xf32>
    %12 = arith.addf %9, %11 : vector<256x64xf32>
    %cst_11 = arith.constant 0.00999999977 : f32
    %13 = vector.broadcast %cst_11 : f32 to vector<256x64xf32>
    %14 = arith.cmpf ogt, %12, %13 : vector<256x64xf32>
    %cst_12 = arith.constant 0.00999999977 : f32
    %15 = vector.broadcast %cst_12 : f32 to vector<256x64xf32>
    %16 = arith.subf %12, %15 : vector<256x64xf32>
    %cst_13 = arith.constant -0.00999999977 : f32
    %17 = vector.broadcast %cst_13 : f32 to vector<256x64xf32>
    %18 = arith.cmpf olt, %12, %17 : vector<256x64xf32>
    %cst_14 = arith.constant 0.00999999977 : f32
    %19 = vector.broadcast %cst_14 : f32 to vector<256x64xf32>
    %20 = arith.addf %12, %19 : vector<256x64xf32>
    %cst_15 = arith.constant 0.000000e+00 : f32
    %21 = vector.broadcast %cst_15 : f32 to vector<256x64xf32>
    %22 = arith.select %18, %20, %21 : vector<256x64xi1>, vector<256x64xf32>
    %23 = arith.select %14, %16, %22 : vector<256x64xi1>, vector<256x64xf32>
    %c0_16 = arith.constant 0 : index
    %c0_17 = arith.constant 0 : index
    %24 = vector.load %arg6[%c0_16, %c0_17] : memref<256x64xf32, #tpu.memory_space<vmem>>, vector<256x64xf32>
    tpu.vector_store %arg6[%c0_16, %c0_17], %23 {strides = array<i32>} : memref<256x64xf32, #tpu.memory_space<vmem>>, vector<256x64xf32>,
    return
  }
  func.func @transform_0(%arg0: i32) -> (i32, i32) {
    %c0_i32 = arith.constant 0 : i32
    %c0_i32_0 = arith.constant 0 : i32
    return %arg0, %c0_i32 : i32, i32
  }
  func.func @transform_1(%arg0: i32) -> (i32, i32) {
    %c0_i32 = arith.constant 0 : i32
    %c0_i32_0 = arith.constant 0 : i32
    %c0_i32_1 = arith.constant 0 : i32
    return %c0_i32, %c0_i32_0 : i32, i32
  }
  func.func @transform_2(%arg0: i32) -> (i32, i32) {
    %c0_i32 = arith.constant 0 : i32
    %c0_i32_0 = arith.constant 0 : i32
    %c0_i32_1 = arith.constant 0 : i32
    return %c0_i32, %c0_i32_0 : i32, i32
  }
  func.func @transform_3(%arg0: i32) -> (i32, i32) {
    %c0_i32 = arith.constant 0 : i32
    %c0_i32_0 = arith.constant 0 : i32
    %c0_i32_1 = arith.constant 0 : i32
    return %c0_i32, %c0_i32_0 : i32, i32
  }
  func.func @transform_4(%arg0: i32) -> (i32, i32) {
    %c0_i32 = arith.constant 0 : i32
    %c0_i32_0 = arith.constant 0 : i32
    %c0_i32_1 = arith.constant 0 : i32
    return %c0_i32, %c0_i32_0 : i32, i32
  }
  func.func @transform_5(%arg0: i32) -> (i32, i32) {
    %c0_i32 = arith.constant 0 : i32
    %c0_i32_0 = arith.constant 0 : i32
    return %arg0, %c0_i32 : i32, i32
  }
}

module attributes {stable_mosaic.version = 11 : i64} {
  func.func @_dwsep_kernel(%arg0: i32, %arg1: memref<1x16x16x32xf32, #tpu.memory_space<vmem>>, %arg2: memref<9x32xf32, #tpu.memory_space<vmem>>, %arg3: memref<1x32xf32, #tpu.memory_space<vmem>>, %arg4: memref<32x32xf32, #tpu.memory_space<vmem>>, %arg5: memref<1x32xf32, #tpu.memory_space<vmem>>, %arg6: memref<1x16x16x32xf32, #tpu.memory_space<vmem>>, %arg7: memref<18x32x32xf32, #tpu.memory_space<vmem>>) attributes {dimension_semantics = [#tpu.dimension_semantics<parallel>], iteration_bounds = array<i64: 2>, scalar_prefetch = 0 : i64, scratch_operands = 1 : i64, tpu.core_type = #tpu.core_type<tc>, window_params = [{transform_indices = @transform_0, window_bounds = array<i64: 1, 16, 16, 32>}, {pipeline_mode = #tpu.pipeline_mode<synchronous>, transform_indices = @transform_1, window_bounds = array<i64: 9, 32>}, {pipeline_mode = #tpu.pipeline_mode<synchronous>, transform_indices = @transform_2, window_bounds = array<i64: 1, 32>}, {pipeline_mode = #tpu.pipeline_mode<synchronous>, transform_indices = @transform_3, window_bounds = array<i64: 32, 32>}, {pipeline_mode = #tpu.pipeline_mode<synchronous>, transform_indices = @transform_4, window_bounds = array<i64: 1, 32>}, {transform_indices = @transform_5, window_bounds = array<i64: 1, 16, 16, 32>}]} {
    %cst = arith.constant 0.000000e+00 : f32
    %0 = vector.broadcast %cst : f32 to vector<18x32x32xf32>
    %c0 = arith.constant 0 : index
    %c0_0 = arith.constant 0 : index
    %c0_1 = arith.constant 0 : index
    %1 = vector.load %arg7[%c0, %c0_0, %c0_1] : memref<18x32x32xf32, #tpu.memory_space<vmem>>, vector<18x32x32xf32>
    tpu.vector_store %arg7[%c0, %c0_0, %c0_1], %0 {strides = array<i32>} : memref<18x32x32xf32, #tpu.memory_space<vmem>>, vector<18x32x32xf32>,
    %c0_2 = arith.constant 0 : index
    %c0_3 = arith.constant 0 : index
    %c0_4 = arith.constant 0 : index
    %c0_5 = arith.constant 0 : index
    %2 = vector.load %arg1[%c0_2, %c0_3, %c0_4, %c0_5] : memref<1x16x16x32xf32, #tpu.memory_space<vmem>>, vector<1x16x16x32xf32>
    %3 = vector.shape_cast %2 : vector<1x16x16x32xf32> to vector<16x16x32xf32>
    %c1 = arith.constant 1 : index
    %c8 = arith.constant 8 : index
    %c0_6 = arith.constant 0 : index
    %4 = vector.load %arg7[%c1, %c8, %c0_6] : memref<18x32x32xf32, #tpu.memory_space<vmem>>, vector<16x16x32xf32>
    tpu.vector_store %arg7[%c1, %c8, %c0_6], %3 {strides = array<i32>} : memref<18x32x32xf32, #tpu.memory_space<vmem>>, vector<16x16x32xf32>,
    %c0_7 = arith.constant 0 : index
    %c0_8 = arith.constant 0 : index
    %5 = vector.load %arg2[%c0_7, %c0_8] : memref<9x32xf32, #tpu.memory_space<vmem>>, vector<9x32xf32>
    %cst_9 = arith.constant 0.000000e+00 : f32
    %6 = vector.broadcast %cst_9 : f32 to vector<16x16x32xf32>
    %c0_10 = arith.constant 0 : index
    %c7 = arith.constant 7 : index
    %c0_11 = arith.constant 0 : index
    %7 = vector.load %arg7[%c0_10, %c7, %c0_11] : memref<18x32x32xf32, #tpu.memory_space<vmem>>, vector<16x16x32xf32>
    %8 = vector.extract_strided_slice %5 {offsets = [0, 0], sizes = [1, 32], strides = [1, 1]} : vector<9x32xf32> to vector<1x32xf32>
    %9 = vector.shape_cast %8 : vector<1x32xf32> to vector<32xf32>
    %10 = vector.shape_cast %9 : vector<32xf32> to vector<1x1x32xf32>
    %11 = vector.broadcast %10 : vector<1x1x32xf32> to vector<16x16x32xf32>
    %12 = arith.mulf %7, %11 : vector<16x16x32xf32>
    %13 = arith.addf %6, %12 : vector<16x16x32xf32>
    %c0_12 = arith.constant 0 : index
    %c8_13 = arith.constant 8 : index
    %c0_14 = arith.constant 0 : index
    %14 = vector.load %arg7[%c0_12, %c8_13, %c0_14] : memref<18x32x32xf32, #tpu.memory_space<vmem>>, vector<16x16x32xf32>
    %15 = vector.extract_strided_slice %5 {offsets = [1, 0], sizes = [1, 32], strides = [1, 1]} : vector<9x32xf32> to vector<1x32xf32>
    %16 = vector.shape_cast %15 : vector<1x32xf32> to vector<32xf32>
    %17 = vector.shape_cast %16 : vector<32xf32> to vector<1x1x32xf32>
    %18 = vector.broadcast %17 : vector<1x1x32xf32> to vector<16x16x32xf32>
    %19 = arith.mulf %14, %18 : vector<16x16x32xf32>
    %20 = arith.addf %13, %19 : vector<16x16x32xf32>
    %c0_15 = arith.constant 0 : index
    %c9 = arith.constant 9 : index
    %c0_16 = arith.constant 0 : index
    %21 = vector.load %arg7[%c0_15, %c9, %c0_16] : memref<18x32x32xf32, #tpu.memory_space<vmem>>, vector<16x16x32xf32>
    %22 = vector.extract_strided_slice %5 {offsets = [2, 0], sizes = [1, 32], strides = [1, 1]} : vector<9x32xf32> to vector<1x32xf32>
    %23 = vector.shape_cast %22 : vector<1x32xf32> to vector<32xf32>
    %24 = vector.shape_cast %23 : vector<32xf32> to vector<1x1x32xf32>
    %25 = vector.broadcast %24 : vector<1x1x32xf32> to vector<16x16x32xf32>
    %26 = arith.mulf %21, %25 : vector<16x16x32xf32>
    %27 = arith.addf %20, %26 : vector<16x16x32xf32>
    %c1_17 = arith.constant 1 : index
    %c7_18 = arith.constant 7 : index
    %c0_19 = arith.constant 0 : index
    %28 = vector.load %arg7[%c1_17, %c7_18, %c0_19] : memref<18x32x32xf32, #tpu.memory_space<vmem>>, vector<16x16x32xf32>
    %29 = vector.extract_strided_slice %5 {offsets = [3, 0], sizes = [1, 32], strides = [1, 1]} : vector<9x32xf32> to vector<1x32xf32>
    %30 = vector.shape_cast %29 : vector<1x32xf32> to vector<32xf32>
    %31 = vector.shape_cast %30 : vector<32xf32> to vector<1x1x32xf32>
    %32 = vector.broadcast %31 : vector<1x1x32xf32> to vector<16x16x32xf32>
    %33 = arith.mulf %28, %32 : vector<16x16x32xf32>
    %34 = arith.addf %27, %33 : vector<16x16x32xf32>
    %c1_20 = arith.constant 1 : index
    %c8_21 = arith.constant 8 : index
    %c0_22 = arith.constant 0 : index
    %35 = vector.load %arg7[%c1_20, %c8_21, %c0_22] : memref<18x32x32xf32, #tpu.memory_space<vmem>>, vector<16x16x32xf32>
    %36 = vector.extract_strided_slice %5 {offsets = [4, 0], sizes = [1, 32], strides = [1, 1]} : vector<9x32xf32> to vector<1x32xf32>
    %37 = vector.shape_cast %36 : vector<1x32xf32> to vector<32xf32>
    %38 = vector.shape_cast %37 : vector<32xf32> to vector<1x1x32xf32>
    %39 = vector.broadcast %38 : vector<1x1x32xf32> to vector<16x16x32xf32>
    %40 = arith.mulf %35, %39 : vector<16x16x32xf32>
    %41 = arith.addf %34, %40 : vector<16x16x32xf32>
    %c1_23 = arith.constant 1 : index
    %c9_24 = arith.constant 9 : index
    %c0_25 = arith.constant 0 : index
    %42 = vector.load %arg7[%c1_23, %c9_24, %c0_25] : memref<18x32x32xf32, #tpu.memory_space<vmem>>, vector<16x16x32xf32>
    %43 = vector.extract_strided_slice %5 {offsets = [5, 0], sizes = [1, 32], strides = [1, 1]} : vector<9x32xf32> to vector<1x32xf32>
    %44 = vector.shape_cast %43 : vector<1x32xf32> to vector<32xf32>
    %45 = vector.shape_cast %44 : vector<32xf32> to vector<1x1x32xf32>
    %46 = vector.broadcast %45 : vector<1x1x32xf32> to vector<16x16x32xf32>
    %47 = arith.mulf %42, %46 : vector<16x16x32xf32>
    %48 = arith.addf %41, %47 : vector<16x16x32xf32>
    %c2 = arith.constant 2 : index
    %c7_26 = arith.constant 7 : index
    %c0_27 = arith.constant 0 : index
    %49 = vector.load %arg7[%c2, %c7_26, %c0_27] : memref<18x32x32xf32, #tpu.memory_space<vmem>>, vector<16x16x32xf32>
    %50 = vector.extract_strided_slice %5 {offsets = [6, 0], sizes = [1, 32], strides = [1, 1]} : vector<9x32xf32> to vector<1x32xf32>
    %51 = vector.shape_cast %50 : vector<1x32xf32> to vector<32xf32>
    %52 = vector.shape_cast %51 : vector<32xf32> to vector<1x1x32xf32>
    %53 = vector.broadcast %52 : vector<1x1x32xf32> to vector<16x16x32xf32>
    %54 = arith.mulf %49, %53 : vector<16x16x32xf32>
    %55 = arith.addf %48, %54 : vector<16x16x32xf32>
    %c2_28 = arith.constant 2 : index
    %c8_29 = arith.constant 8 : index
    %c0_30 = arith.constant 0 : index
    %56 = vector.load %arg7[%c2_28, %c8_29, %c0_30] : memref<18x32x32xf32, #tpu.memory_space<vmem>>, vector<16x16x32xf32>
    %57 = vector.extract_strided_slice %5 {offsets = [7, 0], sizes = [1, 32], strides = [1, 1]} : vector<9x32xf32> to vector<1x32xf32>
    %58 = vector.shape_cast %57 : vector<1x32xf32> to vector<32xf32>
    %59 = vector.shape_cast %58 : vector<32xf32> to vector<1x1x32xf32>
    %60 = vector.broadcast %59 : vector<1x1x32xf32> to vector<16x16x32xf32>
    %61 = arith.mulf %56, %60 : vector<16x16x32xf32>
    %62 = arith.addf %55, %61 : vector<16x16x32xf32>
    %c2_31 = arith.constant 2 : index
    %c9_32 = arith.constant 9 : index
    %c0_33 = arith.constant 0 : index
    %63 = vector.load %arg7[%c2_31, %c9_32, %c0_33] : memref<18x32x32xf32, #tpu.memory_space<vmem>>, vector<16x16x32xf32>
    %64 = vector.extract_strided_slice %5 {offsets = [8, 0], sizes = [1, 32], strides = [1, 1]} : vector<9x32xf32> to vector<1x32xf32>
    %65 = vector.shape_cast %64 : vector<1x32xf32> to vector<32xf32>
    %66 = vector.shape_cast %65 : vector<32xf32> to vector<1x1x32xf32>
    %67 = vector.broadcast %66 : vector<1x1x32xf32> to vector<16x16x32xf32>
    %68 = arith.mulf %63, %67 : vector<16x16x32xf32>
    %69 = arith.addf %62, %68 : vector<16x16x32xf32>
    %c0_34 = arith.constant 0 : index
    %c0_35 = arith.constant 0 : index
    %70 = vector.load %arg3[%c0_34, %c0_35] : memref<1x32xf32, #tpu.memory_space<vmem>>, vector<1x32xf32>
    %71 = vector.shape_cast %70 : vector<1x32xf32> to vector<1x1x32xf32>
    %72 = vector.broadcast %71 : vector<1x1x32xf32> to vector<16x16x32xf32>
    %73 = arith.addf %69, %72 : vector<16x16x32xf32>
    %74 = vector.shape_cast %73 : vector<16x16x32xf32> to vector<256x32xf32>
    %c0_36 = arith.constant 0 : index
    %c0_37 = arith.constant 0 : index
    %75 = vector.load %arg4[%c0_36, %c0_37] : memref<32x32xf32, #tpu.memory_space<vmem>>, vector<32x32xf32>
    %cst_38 = arith.constant dense<0.000000e+00> : vector<256x32xf32>
    %76 = tpu.matmul %74, %75, %cst_38 {dimension_numbers = #tpu.dot_dimension_numbers<[1], [0], [0], [1], [0, 0, 1, 1], [], []>} : vector<256x32xf32>, vector<32x32xf32>, vector<256x32xf32> -> vector<256x32xf32>
    %c0_39 = arith.constant 0 : index
    %c0_40 = arith.constant 0 : index
    %77 = vector.load %arg5[%c0_39, %c0_40] : memref<1x32xf32, #tpu.memory_space<vmem>>, vector<1x32xf32>
    %78 = vector.broadcast %77 : vector<1x32xf32> to vector<256x32xf32>
    %79 = arith.addf %76, %78 : vector<256x32xf32>
    %80 = vector.shape_cast %79 : vector<256x32xf32> to vector<16x16x32xf32>
    %c0_41 = arith.constant 0 : index
    %c0_42 = arith.constant 0 : index
    %c0_43 = arith.constant 0 : index
    %c0_44 = arith.constant 0 : index
    %81 = vector.load %arg6[%c0_41, %c0_42, %c0_43, %c0_44] : memref<1x16x16x32xf32, #tpu.memory_space<vmem>>, vector<1x16x16x32xf32>
    %82 = vector.shape_cast %81 : vector<1x16x16x32xf32> to vector<16x16x32xf32>
    %83 = vector.shape_cast %80 : vector<16x16x32xf32> to vector<1x16x16x32xf32>
    tpu.vector_store %arg6[%c0_41, %c0_42, %c0_43, %c0_44], %83 {strides = array<i32>} : memref<1x16x16x32xf32, #tpu.memory_space<vmem>>, vector<1x16x16x32xf32>,
    return
  }
  func.func @transform_0(%arg0: i32) -> (i32, i32, i32, i32) {
    %c0_i32 = arith.constant 0 : i32
    %c0_i32_0 = arith.constant 0 : i32
    %c0_i32_1 = arith.constant 0 : i32
    %c0_i32_2 = arith.constant 0 : i32
    return %arg0, %c0_i32, %c0_i32_0, %c0_i32_1 : i32, i32, i32, i32
  }
  func.func @transform_1(%arg0: i32) -> (i32, i32) {
    %c0_i32 = arith.constant 0 : i32
    %c0_i32_0 = arith.constant 0 : i32
    %c0_i32_1 = arith.constant 0 : i32
    return %c0_i32, %c0_i32_0 : i32, i32
  }
  func.func @transform_2(%arg0: i32) -> (i32, i32) {
    %c0_i32 = arith.constant 0 : i32
    %c0_i32_0 = arith.constant 0 : i32
    %c0_i32_1 = arith.constant 0 : i32
    return %c0_i32, %c0_i32_0 : i32, i32
  }
  func.func @transform_3(%arg0: i32) -> (i32, i32) {
    %c0_i32 = arith.constant 0 : i32
    %c0_i32_0 = arith.constant 0 : i32
    %c0_i32_1 = arith.constant 0 : i32
    return %c0_i32, %c0_i32_0 : i32, i32
  }
  func.func @transform_4(%arg0: i32) -> (i32, i32) {
    %c0_i32 = arith.constant 0 : i32
    %c0_i32_0 = arith.constant 0 : i32
    %c0_i32_1 = arith.constant 0 : i32
    return %c0_i32, %c0_i32_0 : i32, i32
  }
  func.func @transform_5(%arg0: i32) -> (i32, i32, i32, i32) {
    %c0_i32 = arith.constant 0 : i32
    %c0_i32_0 = arith.constant 0 : i32
    %c0_i32_1 = arith.constant 0 : i32
    %c0_i32_2 = arith.constant 0 : i32
    return %arg0, %c0_i32, %c0_i32_0, %c0_i32_1 : i32, i32, i32, i32
  }
}

module attributes {stable_mosaic.version = 11 : i64} {
  func.func @_dwsep_kernel(%arg0: i32, %arg1: memref<1x16x16x32xf32, #tpu.memory_space<vmem>>, %arg2: memref<9x32xf32, #tpu.memory_space<vmem>>, %arg3: memref<1x32xf32, #tpu.memory_space<vmem>>, %arg4: memref<32x32xf32, #tpu.memory_space<vmem>>, %arg5: memref<1x32xf32, #tpu.memory_space<vmem>>, %arg6: memref<1x16x16x32xf32, #tpu.memory_space<vmem>>, %arg7: memref<18x32x32xf32, #tpu.memory_space<vmem>>) attributes {dimension_semantics = [#tpu.dimension_semantics<parallel>], iteration_bounds = array<i64: 2>, scalar_prefetch = 0 : i64, scratch_operands = 1 : i64, tpu.core_type = #tpu.core_type<tc>, window_params = [{transform_indices = @transform_0, window_bounds = array<i64: 1, 16, 16, 32>}, {pipeline_mode = #tpu.pipeline_mode<synchronous>, transform_indices = @transform_1, window_bounds = array<i64: 9, 32>}, {pipeline_mode = #tpu.pipeline_mode<synchronous>, transform_indices = @transform_2, window_bounds = array<i64: 1, 32>}, {pipeline_mode = #tpu.pipeline_mode<synchronous>, transform_indices = @transform_3, window_bounds = array<i64: 32, 32>}, {pipeline_mode = #tpu.pipeline_mode<synchronous>, transform_indices = @transform_4, window_bounds = array<i64: 1, 32>}, {transform_indices = @transform_5, window_bounds = array<i64: 1, 16, 16, 32>}]} {
    %cst = arith.constant 0.000000e+00 : f32
    %0 = vector.broadcast %cst : f32 to vector<18x32x32xf32>
    %c0 = arith.constant 0 : index
    %c0_0 = arith.constant 0 : index
    %c0_1 = arith.constant 0 : index
    %1 = vector.load %arg7[%c0, %c0_0, %c0_1] : memref<18x32x32xf32, #tpu.memory_space<vmem>>, vector<18x32x32xf32>
    tpu.vector_store %arg7[%c0, %c0_0, %c0_1], %0 {strides = array<i32>} : memref<18x32x32xf32, #tpu.memory_space<vmem>>, vector<18x32x32xf32>,
    %c0_2 = arith.constant 0 : index
    %c0_3 = arith.constant 0 : index
    %c0_4 = arith.constant 0 : index
    %c0_5 = arith.constant 0 : index
    %2 = vector.load %arg1[%c0_2, %c0_3, %c0_4, %c0_5] : memref<1x16x16x32xf32, #tpu.memory_space<vmem>>, vector<1x16x16x32xf32>
    %3 = vector.shape_cast %2 : vector<1x16x16x32xf32> to vector<16x16x32xf32>
    %c1 = arith.constant 1 : index
    %c8 = arith.constant 8 : index
    %c0_6 = arith.constant 0 : index
    %4 = vector.load %arg7[%c1, %c8, %c0_6] : memref<18x32x32xf32, #tpu.memory_space<vmem>>, vector<16x16x32xf32>
    tpu.vector_store %arg7[%c1, %c8, %c0_6], %3 {strides = array<i32>} : memref<18x32x32xf32, #tpu.memory_space<vmem>>, vector<16x16x32xf32>,
    %c0_7 = arith.constant 0 : index
    %c0_8 = arith.constant 0 : index
    %5 = vector.load %arg2[%c0_7, %c0_8] : memref<9x32xf32, #tpu.memory_space<vmem>>, vector<9x32xf32>
    %cst_9 = arith.constant 0.000000e+00 : f32
    %6 = vector.broadcast %cst_9 : f32 to vector<16x16x32xf32>
    %c0_10 = arith.constant 0 : index
    %c7 = arith.constant 7 : index
    %c0_11 = arith.constant 0 : index
    %7 = vector.load %arg7[%c0_10, %c7, %c0_11] : memref<18x32x32xf32, #tpu.memory_space<vmem>>, vector<16x16x32xf32>
    %8 = vector.extract_strided_slice %5 {offsets = [0, 0], sizes = [1, 32], strides = [1, 1]} : vector<9x32xf32> to vector<1x32xf32>
    %9 = vector.shape_cast %8 : vector<1x32xf32> to vector<32xf32>
    %10 = vector.shape_cast %9 : vector<32xf32> to vector<1x1x32xf32>
    %11 = vector.broadcast %10 : vector<1x1x32xf32> to vector<16x16x32xf32>
    %12 = arith.mulf %7, %11 : vector<16x16x32xf32>
    %13 = arith.addf %6, %12 : vector<16x16x32xf32>
    %c0_12 = arith.constant 0 : index
    %c8_13 = arith.constant 8 : index
    %c0_14 = arith.constant 0 : index
    %14 = vector.load %arg7[%c0_12, %c8_13, %c0_14] : memref<18x32x32xf32, #tpu.memory_space<vmem>>, vector<16x16x32xf32>
    %15 = vector.extract_strided_slice %5 {offsets = [1, 0], sizes = [1, 32], strides = [1, 1]} : vector<9x32xf32> to vector<1x32xf32>
    %16 = vector.shape_cast %15 : vector<1x32xf32> to vector<32xf32>
    %17 = vector.shape_cast %16 : vector<32xf32> to vector<1x1x32xf32>
    %18 = vector.broadcast %17 : vector<1x1x32xf32> to vector<16x16x32xf32>
    %19 = arith.mulf %14, %18 : vector<16x16x32xf32>
    %20 = arith.addf %13, %19 : vector<16x16x32xf32>
    %c0_15 = arith.constant 0 : index
    %c9 = arith.constant 9 : index
    %c0_16 = arith.constant 0 : index
    %21 = vector.load %arg7[%c0_15, %c9, %c0_16] : memref<18x32x32xf32, #tpu.memory_space<vmem>>, vector<16x16x32xf32>
    %22 = vector.extract_strided_slice %5 {offsets = [2, 0], sizes = [1, 32], strides = [1, 1]} : vector<9x32xf32> to vector<1x32xf32>
    %23 = vector.shape_cast %22 : vector<1x32xf32> to vector<32xf32>
    %24 = vector.shape_cast %23 : vector<32xf32> to vector<1x1x32xf32>
    %25 = vector.broadcast %24 : vector<1x1x32xf32> to vector<16x16x32xf32>
    %26 = arith.mulf %21, %25 : vector<16x16x32xf32>
    %27 = arith.addf %20, %26 : vector<16x16x32xf32>
    %c1_17 = arith.constant 1 : index
    %c7_18 = arith.constant 7 : index
    %c0_19 = arith.constant 0 : index
    %28 = vector.load %arg7[%c1_17, %c7_18, %c0_19] : memref<18x32x32xf32, #tpu.memory_space<vmem>>, vector<16x16x32xf32>
    %29 = vector.extract_strided_slice %5 {offsets = [3, 0], sizes = [1, 32], strides = [1, 1]} : vector<9x32xf32> to vector<1x32xf32>
    %30 = vector.shape_cast %29 : vector<1x32xf32> to vector<32xf32>
    %31 = vector.shape_cast %30 : vector<32xf32> to vector<1x1x32xf32>
    %32 = vector.broadcast %31 : vector<1x1x32xf32> to vector<16x16x32xf32>
    %33 = arith.mulf %28, %32 : vector<16x16x32xf32>
    %34 = arith.addf %27, %33 : vector<16x16x32xf32>
    %c1_20 = arith.constant 1 : index
    %c8_21 = arith.constant 8 : index
    %c0_22 = arith.constant 0 : index
    %35 = vector.load %arg7[%c1_20, %c8_21, %c0_22] : memref<18x32x32xf32, #tpu.memory_space<vmem>>, vector<16x16x32xf32>
    %36 = vector.extract_strided_slice %5 {offsets = [4, 0], sizes = [1, 32], strides = [1, 1]} : vector<9x32xf32> to vector<1x32xf32>
    %37 = vector.shape_cast %36 : vector<1x32xf32> to vector<32xf32>
    %38 = vector.shape_cast %37 : vector<32xf32> to vector<1x1x32xf32>
    %39 = vector.broadcast %38 : vector<1x1x32xf32> to vector<16x16x32xf32>
    %40 = arith.mulf %35, %39 : vector<16x16x32xf32>
    %41 = arith.addf %34, %40 : vector<16x16x32xf32>
    %c1_23 = arith.constant 1 : index
    %c9_24 = arith.constant 9 : index
    %c0_25 = arith.constant 0 : index
    %42 = vector.load %arg7[%c1_23, %c9_24, %c0_25] : memref<18x32x32xf32, #tpu.memory_space<vmem>>, vector<16x16x32xf32>
    %43 = vector.extract_strided_slice %5 {offsets = [5, 0], sizes = [1, 32], strides = [1, 1]} : vector<9x32xf32> to vector<1x32xf32>
    %44 = vector.shape_cast %43 : vector<1x32xf32> to vector<32xf32>
    %45 = vector.shape_cast %44 : vector<32xf32> to vector<1x1x32xf32>
    %46 = vector.broadcast %45 : vector<1x1x32xf32> to vector<16x16x32xf32>
    %47 = arith.mulf %42, %46 : vector<16x16x32xf32>
    %48 = arith.addf %41, %47 : vector<16x16x32xf32>
    %c2 = arith.constant 2 : index
    %c7_26 = arith.constant 7 : index
    %c0_27 = arith.constant 0 : index
    %49 = vector.load %arg7[%c2, %c7_26, %c0_27] : memref<18x32x32xf32, #tpu.memory_space<vmem>>, vector<16x16x32xf32>
    %50 = vector.extract_strided_slice %5 {offsets = [6, 0], sizes = [1, 32], strides = [1, 1]} : vector<9x32xf32> to vector<1x32xf32>
    %51 = vector.shape_cast %50 : vector<1x32xf32> to vector<32xf32>
    %52 = vector.shape_cast %51 : vector<32xf32> to vector<1x1x32xf32>
    %53 = vector.broadcast %52 : vector<1x1x32xf32> to vector<16x16x32xf32>
    %54 = arith.mulf %49, %53 : vector<16x16x32xf32>
    %55 = arith.addf %48, %54 : vector<16x16x32xf32>
    %c2_28 = arith.constant 2 : index
    %c8_29 = arith.constant 8 : index
    %c0_30 = arith.constant 0 : index
    %56 = vector.load %arg7[%c2_28, %c8_29, %c0_30] : memref<18x32x32xf32, #tpu.memory_space<vmem>>, vector<16x16x32xf32>
    %57 = vector.extract_strided_slice %5 {offsets = [7, 0], sizes = [1, 32], strides = [1, 1]} : vector<9x32xf32> to vector<1x32xf32>
    %58 = vector.shape_cast %57 : vector<1x32xf32> to vector<32xf32>
    %59 = vector.shape_cast %58 : vector<32xf32> to vector<1x1x32xf32>
    %60 = vector.broadcast %59 : vector<1x1x32xf32> to vector<16x16x32xf32>
    %61 = arith.mulf %56, %60 : vector<16x16x32xf32>
    %62 = arith.addf %55, %61 : vector<16x16x32xf32>
    %c2_31 = arith.constant 2 : index
    %c9_32 = arith.constant 9 : index
    %c0_33 = arith.constant 0 : index
    %63 = vector.load %arg7[%c2_31, %c9_32, %c0_33] : memref<18x32x32xf32, #tpu.memory_space<vmem>>, vector<16x16x32xf32>
    %64 = vector.extract_strided_slice %5 {offsets = [8, 0], sizes = [1, 32], strides = [1, 1]} : vector<9x32xf32> to vector<1x32xf32>
    %65 = vector.shape_cast %64 : vector<1x32xf32> to vector<32xf32>
    %66 = vector.shape_cast %65 : vector<32xf32> to vector<1x1x32xf32>
    %67 = vector.broadcast %66 : vector<1x1x32xf32> to vector<16x16x32xf32>
    %68 = arith.mulf %63, %67 : vector<16x16x32xf32>
    %69 = arith.addf %62, %68 : vector<16x16x32xf32>
    %c0_34 = arith.constant 0 : index
    %c0_35 = arith.constant 0 : index
    %70 = vector.load %arg3[%c0_34, %c0_35] : memref<1x32xf32, #tpu.memory_space<vmem>>, vector<1x32xf32>
    %71 = vector.shape_cast %70 : vector<1x32xf32> to vector<1x1x32xf32>
    %72 = vector.broadcast %71 : vector<1x1x32xf32> to vector<16x16x32xf32>
    %73 = arith.addf %69, %72 : vector<16x16x32xf32>
    %74 = vector.shape_cast %73 : vector<16x16x32xf32> to vector<256x32xf32>
    %c0_36 = arith.constant 0 : index
    %c0_37 = arith.constant 0 : index
    %75 = vector.load %arg4[%c0_36, %c0_37] : memref<32x32xf32, #tpu.memory_space<vmem>>, vector<32x32xf32>
    %cst_38 = arith.constant dense<0.000000e+00> : vector<256x32xf32>
    %76 = tpu.matmul %74, %75, %cst_38 {dimension_numbers = #tpu.dot_dimension_numbers<[1], [0], [0], [1], [0, 0, 1, 1], [], []>} : vector<256x32xf32>, vector<32x32xf32>, vector<256x32xf32> -> vector<256x32xf32>
    %c0_39 = arith.constant 0 : index
    %c0_40 = arith.constant 0 : index
    %77 = vector.load %arg5[%c0_39, %c0_40] : memref<1x32xf32, #tpu.memory_space<vmem>>, vector<1x32xf32>
    %78 = vector.broadcast %77 : vector<1x32xf32> to vector<256x32xf32>
    %79 = arith.addf %76, %78 : vector<256x32xf32>
    %80 = vector.shape_cast %79 : vector<256x32xf32> to vector<16x16x32xf32>
    %c0_41 = arith.constant 0 : index
    %c0_42 = arith.constant 0 : index
    %c0_43 = arith.constant 0 : index
    %c0_44 = arith.constant 0 : index
    %81 = vector.load %arg6[%c0_41, %c0_42, %c0_43, %c0_44] : memref<1x16x16x32xf32, #tpu.memory_space<vmem>>, vector<1x16x16x32xf32>
    %82 = vector.shape_cast %81 : vector<1x16x16x32xf32> to vector<16x16x32xf32>
    %83 = vector.shape_cast %80 : vector<16x16x32xf32> to vector<1x16x16x32xf32>
    tpu.vector_store %arg6[%c0_41, %c0_42, %c0_43, %c0_44], %83 {strides = array<i32>} : memref<1x16x16x32xf32, #tpu.memory_space<vmem>>, vector<1x16x16x32xf32>,
    return
  }
  func.func @transform_0(%arg0: i32) -> (i32, i32, i32, i32) {
    %c0_i32 = arith.constant 0 : i32
    %c0_i32_0 = arith.constant 0 : i32
    %c0_i32_1 = arith.constant 0 : i32
    %c0_i32_2 = arith.constant 0 : i32
    return %arg0, %c0_i32, %c0_i32_0, %c0_i32_1 : i32, i32, i32, i32
  }
  func.func @transform_1(%arg0: i32) -> (i32, i32) {
    %c0_i32 = arith.constant 0 : i32
    %c0_i32_0 = arith.constant 0 : i32
    %c0_i32_1 = arith.constant 0 : i32
    return %c0_i32, %c0_i32_0 : i32, i32
  }
  func.func @transform_2(%arg0: i32) -> (i32, i32) {
    %c0_i32 = arith.constant 0 : i32
    %c0_i32_0 = arith.constant 0 : i32
    %c0_i32_1 = arith.constant 0 : i32
    return %c0_i32, %c0_i32_0 : i32, i32
  }
  func.func @transform_3(%arg0: i32) -> (i32, i32) {
    %c0_i32 = arith.constant 0 : i32
    %c0_i32_0 = arith.constant 0 : i32
    %c0_i32_1 = arith.constant 0 : i32
    return %c0_i32, %c0_i32_0 : i32, i32
  }
  func.func @transform_4(%arg0: i32) -> (i32, i32) {
    %c0_i32 = arith.constant 0 : i32
    %c0_i32_0 = arith.constant 0 : i32
    %c0_i32_1 = arith.constant 0 : i32
    return %c0_i32, %c0_i32_0 : i32, i32
  }
  func.func @transform_5(%arg0: i32) -> (i32, i32, i32, i32) {
    %c0_i32 = arith.constant 0 : i32
    %c0_i32_0 = arith.constant 0 : i32
    %c0_i32_1 = arith.constant 0 : i32
    %c0_i32_2 = arith.constant 0 : i32
    return %arg0, %c0_i32, %c0_i32_0, %c0_i32_1 : i32, i32, i32, i32
  }
}

module attributes {stable_mosaic.version = 11 : i64} {
  func.func @_matmul_bias_kernel(%arg0: i32, %arg1: memref<256x32xf32, #tpu.memory_space<vmem>>, %arg2: memref<32x32xf32, #tpu.memory_space<vmem>>, %arg3: memref<1x32xf32, #tpu.memory_space<vmem>>, %arg4: memref<256x32xf32, #tpu.memory_space<vmem>>) attributes {dimension_semantics = [#tpu.dimension_semantics<parallel>], iteration_bounds = array<i64: 2>, scalar_prefetch = 0 : i64, scratch_operands = 0 : i64, tpu.core_type = #tpu.core_type<tc>, window_params = [{transform_indices = @transform_0, window_bounds = array<i64: 256, 32>}, {pipeline_mode = #tpu.pipeline_mode<synchronous>, transform_indices = @transform_1, window_bounds = array<i64: 32, 32>}, {pipeline_mode = #tpu.pipeline_mode<synchronous>, transform_indices = @transform_2, window_bounds = array<i64: 1, 32>}, {transform_indices = @transform_3, window_bounds = array<i64: 256, 32>}]} {
    %c0 = arith.constant 0 : index
    %c0_0 = arith.constant 0 : index
    %0 = vector.load %arg1[%c0, %c0_0] : memref<256x32xf32, #tpu.memory_space<vmem>>, vector<256x32xf32>
    %c0_1 = arith.constant 0 : index
    %c0_2 = arith.constant 0 : index
    %1 = vector.load %arg2[%c0_1, %c0_2] : memref<32x32xf32, #tpu.memory_space<vmem>>, vector<32x32xf32>
    %cst = arith.constant dense<0.000000e+00> : vector<256x32xf32>
    %2 = tpu.matmul %0, %1, %cst {dimension_numbers = #tpu.dot_dimension_numbers<[1], [0], [0], [1], [0, 0, 1, 1], [], []>} : vector<256x32xf32>, vector<32x32xf32>, vector<256x32xf32> -> vector<256x32xf32>
    %c0_3 = arith.constant 0 : index
    %c0_4 = arith.constant 0 : index
    %3 = vector.load %arg3[%c0_3, %c0_4] : memref<1x32xf32, #tpu.memory_space<vmem>>, vector<1x32xf32>
    %4 = vector.broadcast %3 : vector<1x32xf32> to vector<256x32xf32>
    %5 = arith.addf %2, %4 : vector<256x32xf32>
    %c0_5 = arith.constant 0 : index
    %c0_6 = arith.constant 0 : index
    %6 = vector.load %arg4[%c0_5, %c0_6] : memref<256x32xf32, #tpu.memory_space<vmem>>, vector<256x32xf32>
    tpu.vector_store %arg4[%c0_5, %c0_6], %5 {strides = array<i32>} : memref<256x32xf32, #tpu.memory_space<vmem>>, vector<256x32xf32>,
    return
  }
  func.func @transform_0(%arg0: i32) -> (i32, i32) {
    %c0_i32 = arith.constant 0 : i32
    %c0_i32_0 = arith.constant 0 : i32
    return %arg0, %c0_i32 : i32, i32
  }
  func.func @transform_1(%arg0: i32) -> (i32, i32) {
    %c0_i32 = arith.constant 0 : i32
    %c0_i32_0 = arith.constant 0 : i32
    %c0_i32_1 = arith.constant 0 : i32
    return %c0_i32, %c0_i32_0 : i32, i32
  }
  func.func @transform_2(%arg0: i32) -> (i32, i32) {
    %c0_i32 = arith.constant 0 : i32
    %c0_i32_0 = arith.constant 0 : i32
    %c0_i32_1 = arith.constant 0 : i32
    return %c0_i32, %c0_i32_0 : i32, i32
  }
  func.func @transform_3(%arg0: i32) -> (i32, i32) {
    %c0_i32 = arith.constant 0 : i32
    %c0_i32_0 = arith.constant 0 : i32
    return %arg0, %c0_i32 : i32, i32
  }
}

</mosaic_0001>

<llo_original>
// kernel: reverse.6
$region0: #{reverse.6}
  #allocation0 [shape = 's32[1]{0}', space=sflag, size = 0x4, scoped, tag = 'scoped memory for reverse.6']
  %s0 = inlined_call_operand.vmem [shape: f32[2,32,16,7], index: 0, kind: input, shape index: {}]
  %s1 = inlined_call_operand.vmem [shape: f32[2,32,16,7], index: 1, kind: output, shape index: {}]
  %s2 = scalar_lea.vmem %s0, 96
  %v3 = vld [vmem:[%s2] sm:$0xff]
  %4 = vst [vmem:[%s1] sm:$0xff] %v3
  %s5 = scalar_lea.vmem %s0, 208
  %v6 = vld [vmem:[%s5] sm:$0xff]
  %s7 = scalar_lea.vmem %s1, 112
  %8 = vst [vmem:[%s7] sm:$0xff] %v6
  %s9 = scalar_lea.vmem %s0, 80
  %v10 = vld [vmem:[%s9] sm:$0xff]
  %s11 = scalar_lea.vmem %s1, 16
  %12 = vst [vmem:[%s11] sm:$0xff] %v10
  %s13 = scalar_lea.vmem %s0, 192
  %v14 = vld [vmem:[%s13] sm:$0xff]
  %s15 = scalar_lea.vmem %s1, 128
  %16 = vst [vmem:[%s15] sm:$0xff] %v14
  %s17 = scalar_lea.vmem %s0, 64
  %v18 = vld [vmem:[%s17] sm:$0xff]
  %s19 = scalar_lea.vmem %s1, 32
  %20 = vst [vmem:[%s19] sm:$0xff] %v18
  %s21 = scalar_lea.vmem %s0, 176
  %v22 = vld [vmem:[%s21] sm:$0xff]
  %s23 = scalar_lea.vmem %s1, 144
  %24 = vst [vmem:[%s23] sm:$0xff] %v22
  %s25 = scalar_lea.vmem %s0, 48
  %v26 = vld [vmem:[%s25] sm:$0xff]
  %s27 = scalar_lea.vmem %s1, 48
  %28 = vst [vmem:[%s27] sm:$0xff] %v26
  %s29 = scalar_lea.vmem %s0, 160
  %v30 = vld [vmem:[%s29] sm:$0xff]
  %s31 = scalar_lea.vmem %s1, 160
  %32 = vst [vmem:[%s31] sm:$0xff] %v30
  %s33 = scalar_lea.vmem %s0, 32
  %v34 = vld [vmem:[%s33] sm:$0xff]
  %s35 = scalar_lea.vmem %s1, 64
  %36 = vst [vmem:[%s35] sm:$0xff] %v34
  %s37 = scalar_lea.vmem %s0, 144
  %v38 = vld [vmem:[%s37] sm:$0xff]
  %s39 = scalar_lea.vmem %s1, 176
  %40 = vst [vmem:[%s39] sm:$0xff] %v38
  %s41 = scalar_lea.vmem %s0, 16
  %v42 = vld [vmem:[%s41] sm:$0xff]
  %s43 = scalar_lea.vmem %s1, 80
  %44 = vst [vmem:[%s43] sm:$0xff] %v42
  %s45 = scalar_lea.vmem %s0, 128
  %v46 = vld [vmem:[%s45] sm:$0xff]
  %s47 = scalar_lea.vmem %s1, 192
  %48 = vst [vmem:[%s47] sm:$0xff] %v46
  %v49 = vld [vmem:[%s0] sm:$0xff]
  %s50 = scalar_lea.vmem %s1, 96
  %51 = vst [vmem:[%s50] sm:$0xff] %v49
  %s52 = scalar_lea.vmem %s0, 112
  %v53 = vld [vmem:[%s52] sm:$0xff]
  %s54 = scalar_lea.vmem %s1, 208
  %55 = vst [vmem:[%s54] sm:$0xff] %v53
  %s56 = scalar_lea.vmem %s0, 104
  %v57 = vld [vmem:[%s56] sm:$0xff]
  %s58 = scalar_lea.vmem %s1, 8
  %59 = vst [vmem:[%s58] sm:$0xff] %v57
  %s60 = scalar_lea.vmem %s0, 216
  %v61 = vld [vmem:[%s60] sm:$0xff]
  %s62 = scalar_lea.vmem %s1, 120
  %63 = vst [vmem:[%s62] sm:$0xff] %v61
  %s64 = scalar_lea.vmem %s0, 88
  %v65 = vld [vmem:[%s64] sm:$0xff]
  %s66 = scalar_lea.vmem %s1, 24
  %67 = vst [vmem:[%s66] sm:$0xff] %v65
  %s68 = scalar_lea.vmem %s0, 200
  %v69 = vld [vmem:[%s68] sm:$0xff]
  %s70 = scalar_lea.vmem %s1, 136
  %71 = vst [vmem:[%s70] sm:$0xff] %v69
  %s72 = scalar_lea.vmem %s0, 72
  %v73 = vld [vmem:[%s72] sm:$0xff]
  %s74 = scalar_lea.vmem %s1, 40
  %75 = vst [vmem:[%s74] sm:$0xff] %v73
  %s76 = scalar_lea.vmem %s0, 184
  %v77 = vld [vmem:[%s76] sm:$0xff]
  %s78 = scalar_lea.vmem %s1, 152
  %79 = vst [vmem:[%s78] sm:$0xff] %v77
  %s80 = scalar_lea.vmem %s0, 56
  %v81 = vld [vmem:[%s80] sm:$0xff]
  %s82 = scalar_lea.vmem %s1, 56
  %83 = vst [vmem:[%s82] sm:$0xff] %v81
  %s84 = scalar_lea.vmem %s0, 168
  %v85 = vld [vmem:[%s84] sm:$0xff]
  %s86 = scalar_lea.vmem %s1, 168
  %87 = vst [vmem:[%s86] sm:$0xff] %v85
  %s88 = scalar_lea.vmem %s0, 40
  %v89 = vld [vmem:[%s88] sm:$0xff]
  %s90 = scalar_lea.vmem %s1, 72
  %91 = vst [vmem:[%s90] sm:$0xff] %v89
  %s92 = scalar_lea.vmem %s0, 152
  %v93 = vld [vmem:[%s92] sm:$0xff]
  %s94 = scalar_lea.vmem %s1, 184
  %95 = vst [vmem:[%s94] sm:$0xff] %v93
  %s96 = scalar_lea.vmem %s0, 24
  %v97 = vld [vmem:[%s96] sm:$0xff]
  %s98 = scalar_lea.vmem %s1, 88
  %99 = vst [vmem:[%s98] sm:$0xff] %v97
  %s100 = scalar_lea.vmem %s0, 136
  %v101 = vld [vmem:[%s100] sm:$0xff]
  %s102 = scalar_lea.vmem %s1, 200
  %103 = vst [vmem:[%s102] sm:$0xff] %v101
  %s104 = scalar_lea.vmem %s0, 8
  %v105 = vld [vmem:[%s104] sm:$0xff]
  %s106 = scalar_lea.vmem %s1, 104
  %107 = vst [vmem:[%s106] sm:$0xff] %v105
  %s108 = scalar_lea.vmem %s0, 120
  %v109 = vld [vmem:[%s108] sm:$0xff]
  %s110 = scalar_lea.vmem %s1, 216
  %111 = vst [vmem:[%s110] sm:$0xff] %v109

// kernel: feature_extractor_forward.11
$region0: #{feature_extractor_forward.11}
  #allocation0 [shape = 'u32[]', space=smem, size = 0x4, offset = 0x4, fixed_abs, tag = 'smem constant byte address 0x4 - core index']
  #allocation1 [shape = 'u32[144,128]{1,0:T(1,128)}', space=vmem, size = 0x12000, scoped, tag = 'internal scratch']
  %s0 = inlined_call_operand.vmem [shape: f32[512,64], index: 0, kind: input, shape index: {}]
  %s1 = inlined_call_operand.vmem [shape: f32[64,64], index: 1, kind: input, shape index: {}]
  %s2 = inlined_call_operand.vmem [shape: f32[1,64], index: 2, kind: input, shape index: {}]
  %s3 = inlined_call_operand.vmem [shape: f32[64,64], index: 3, kind: input, shape index: {}]
  %s4 = inlined_call_operand.vmem [shape: f32[1,64], index: 4, kind: input, shape index: {}]
  %s5 = inlined_call_operand.vmem [shape: f32[512,64], index: 5, kind: output, shape index: {}]
  %s6 = sld [smem:[#allocation0]]
  $region53: #{feature_extractor_forward.11} parent=0
    _
  %s8 = ssub.s32 1, %s6
  %s9 = scalar_select 0, %s8, %s6
  loop: start=0, step=1, limit=4
  $region2: #{feature_extractor_forward.11} parent=0 // loop_pre_header
    _
  $region3: #{feature_extractor_forward.11} parent=0 // loop_header
    %s11 = sphi 0, %s15
    %p12 = scmp.ge.s32.totalorder %s11, 4
    %s21 = sphi 0, %s23
    %s24 = sphi 0, %s21
    %s25 = sphi 0, %s24
    %s41 = sphi 0, %s25
    %s45 = sphi 0, %s45
    %s47 = sphi 0, %s45
    %s48 = sphi 0, %s47
    %s62 = sphi 0, %s48
    %s66 = sphi 0, %s66
    %s68 = sphi 0, %s66
    %s69 = sphi 0, %s68
    %s83 = sphi 0, %s69
    %s87 = sphi 0, %s87
    %s89 = sphi 0, %s87
    %s90 = sphi 0, %s89
    %s104 = sphi 0, %s90
    %s108 = sphi 0, %s108
    %s110 = sphi 0, %s108
    %s111 = sphi 0, %s110
    %s125 = sphi 0, %s111
    %s131 = sphi 0, %s133
    %s134 = sphi 0, %s131
    %s135 = sphi 0, %s134
    %s151 = sphi 0, %s135
  $region4: #{feature_extractor_forward.11} parent=0 // loop_header_branch
    %14 = sbr.rel (%p12) target = $region8
  $region5: #{feature_extractor_forward.11} parent=0 // loop_body
    %s16 = ssub.s32 %s11, 1
    %s17 = ssub.s32 %s11, 2
    %s18 = sadd.s32 %s11, 1
    %s19 = ssub.s32 %s11, %s18
    %p20 = scmp.eq.s32.totalorder %s19, 0
    %s22 = sadd.s32 %s21, 1
    %s23 = scalar_select %p20, %s21, %s22
    %p26 = pneg %p20
    %p27 = scmp.eq.s32.totalorder %s11, 1
    %p28 = por %p26, %p27
    %p29 = scmp.ne.s32.totalorder %s21, %s24
    %p30 = scmp.eq.s32.totalorder %s11, 0
    %p31 = por %p29, %p30
    %p32 = scmp.ne.s32.totalorder %s21, %s24
    %p33 = scmp.eq.s32.totalorder %s16, 1
    %p34 = por %p32, %p33
    %p35 = scmp.ne.s32.totalorder %s24, %s25
    %p36 = scmp.eq.s32.totalorder %s16, 0
    %p37 = por %p35, %p36
    %p38 = scmp.ne.s32.totalorder %s24, %s25
    %p39 = scmp.eq.s32.totalorder %s17, 1
    %p40 = por %p38, %p39
    %p42 = scmp.ne.s32.totalorder %s25, %s41
    %p43 = scmp.eq.s32.totalorder %s17, 0
    %p44 = por %p42, %p43
    %s46 = sadd.s32 %s45, 1
    %p49 = scmp.eq.s32.totalorder %s11, 1
    %p50 = scmp.ne.s32.totalorder %s45, %s47
    %p51 = scmp.eq.s32.totalorder %s11, 0
    %p52 = por %p50, %p51
    %p53 = scmp.ne.s32.totalorder %s45, %s47
    %p54 = scmp.eq.s32.totalorder %s16, 1
    %p55 = por %p53, %p54
    %p56 = scmp.ne.s32.totalorder %s47, %s48
    %p57 = scmp.eq.s32.totalorder %s16, 0
    %p58 = por %p56, %p57
    %p59 = scmp.ne.s32.totalorder %s47, %s48
    %p60 = scmp.eq.s32.totalorder %s17, 1
    %p61 = por %p59, %p60
    %p63 = scmp.ne.s32.totalorder %s48, %s62
    %p64 = scmp.eq.s32.totalorder %s17, 0
    %p65 = por %p63, %p64
    %s67 = sadd.s32 %s66, 1
    %p70 = scmp.eq.s32.totalorder %s11, 1
    %p71 = scmp.ne.s32.totalorder %s66, %s68
    %p72 = scmp.eq.s32.totalorder %s11, 0
    %p73 = por %p71, %p72
    %p74 = scmp.ne.s32.totalorder %s66, %s68
    %p75 = scmp.eq.s32.totalorder %s16, 1
    %p76 = por %p74, %p75
    %p77 = scmp.ne.s32.totalorder %s68, %s69
    %p78 = scmp.eq.s32.totalorder %s16, 0
    %p79 = por %p77, %p78
    %p80 = scmp.ne.s32.totalorder %s68, %s69
    %p81 = scmp.eq.s32.totalorder %s17, 1
    %p82 = por %p80, %p81
    %p84 = scmp.ne.s32.totalorder %s69, %s83
    %p85 = scmp.eq.s32.totalorder %s17, 0
    %p86 = por %p84, %p85
    %s88 = sadd.s32 %s87, 1
    %p91 = scmp.eq.s32.totalorder %s11, 1
    %p92 = scmp.ne.s32.totalorder %s87, %s89
    %p93 = scmp.eq.s32.totalorder %s11, 0
    %p94 = por %p92, %p93
    %p95 = scmp.ne.s32.totalorder %s87, %s89
    %p96 = scmp.eq.s32.totalorder %s16, 1
    %p97 = por %p95, %p96
    %p98 = scmp.ne.s32.totalorder %s89, %s90
    %p99 = scmp.eq.s32.totalorder %s16, 0
    %p100 = por %p98, %p99
    %p101 = scmp.ne.s32.totalorder %s89, %s90
    %p102 = scmp.eq.s32.totalorder %s17, 1
    %p103 = por %p101, %p102
    %p105 = scmp.ne.s32.totalorder %s90, %s104
    %p106 = scmp.eq.s32.totalorder %s17, 0
    %p107 = por %p105, %p106
    %s109 = sadd.s32 %s108, 1
    %p112 = scmp.eq.s32.totalorder %s11, 1
    %p113 = scmp.ne.s32.totalorder %s108, %s110
    %p114 = scmp.eq.s32.totalorder %s11, 0
    %p115 = por %p113, %p114
    %p116 = scmp.ne.s32.totalorder %s108, %s110
    %p117 = scmp.eq.s32.totalorder %s16, 1
    %p118 = por %p116, %p117
    %p119 = scmp.ne.s32.totalorder %s110, %s111
    %p120 = scmp.eq.s32.totalorder %s16, 0
    %p121 = por %p119, %p120
    %p122 = scmp.ne.s32.totalorder %s110, %s111
    %p123 = scmp.eq.s32.totalorder %s17, 1
    %p124 = por %p122, %p123
    %p126 = scmp.ne.s32.totalorder %s111, %s125
    %p127 = scmp.eq.s32.totalorder %s17, 0
    %p128 = por %p126, %p127
    %s129 = ssub.s32 %s11, %s18
    %p130 = scmp.eq.s32.totalorder %s129, 0
    %s132 = sadd.s32 %s131, 1
    %s133 = scalar_select %p130, %s131, %s132
    %p136 = pneg %p130
    %p137 = scmp.eq.s32.totalorder %s11, 1
    %p138 = por %p136, %p137
    %p139 = scmp.ne.s32.totalorder %s131, %s134
    %p140 = scmp.eq.s32.totalorder %s11, 0
    %p141 = por %p139, %p140
    %p142 = scmp.ne.s32.totalorder %s131, %s134
    %p143 = scmp.eq.s32.totalorder %s16, 1
    %p144 = por %p142, %p143
    %p145 = scmp.ne.s32.totalorder %s134, %s135
    %p146 = scmp.eq.s32.totalorder %s16, 0
    %p147 = por %p145, %p146
    %p148 = scmp.ne.s32.totalorder %s134, %s135
    %p149 = scmp.eq.s32.totalorder %s17, 1
    %p150 = por %p148, %p149
    %p152 = scmp.ne.s32.totalorder %s135, %s151
    %p153 = scmp.eq.s32.totalorder %s17, 0
    %p154 = por %p152, %p153
    %p155 = scmp.le.s32.totalorder 1, %s11
    %p156 = scmp.lt.s32.totalorder %s11, 3
    %p157 = pnand %p155, %p156
    %p158 = pneg %p157
    // Predicated region
    $region9: #{feature_extractor_forward.11} parent=5 // pred_check
      _
    $region10: #{feature_extractor_forward.11} parent=5 // pred_check_branch
      %160 = sbr.rel (%p157) target = $region12
    $region11: #{feature_extractor_forward.11} parent=5 // pred_region
      %s161 = ssub.s32 %s11, 1
      // Predicated region
      $region13: #{feature_extractor_forward.11} parent=11 // pred_check
        %p162 = pneg %p58
      $region14: #{feature_extractor_forward.11} parent=11 // pred_check_branch
        %164 = sbr.rel (%p162) target = $region16
      $region15: #{feature_extractor_forward.11} parent=11 // pred_region
        _
      $region16: #{feature_extractor_forward.11} parent=11 // pred_fallthru
        _
      // Predicated region
      $region17: #{feature_extractor_forward.11} parent=11 // pred_check
        %p165 = pneg %p79
      $region18: #{feature_extractor_forward.11} parent=11 // pred_check_branch
        %167 = sbr.rel (%p165) target = $region20
      $region19: #{feature_extractor_forward.11} parent=11 // pred_region
        _
      $region20: #{feature_extractor_forward.11} parent=11 // pred_fallthru
        _
      // Predicated region
      $region21: #{feature_extractor_forward.11} parent=11 // pred_check
        %p168 = pneg %p100
      $region22: #{feature_extractor_forward.11} parent=11 // pred_check_branch
        %170 = sbr.rel (%p168) target = $region24
      $region23: #{feature_extractor_forward.11} parent=11 // pred_region
        _
      $region24: #{feature_extractor_forward.11} parent=11 // pred_fallthru
        _
      // Predicated region
      $region25: #{feature_extractor_forward.11} parent=11 // pred_check
        %p171 = pneg %p121
      $region26: #{feature_extractor_forward.11} parent=11 // pred_check_branch
        %173 = sbr.rel (%p171) target = $region28
      $region27: #{feature_extractor_forward.11} parent=11 // pred_region
        _
      $region28: #{feature_extractor_forward.11} parent=11 // pred_fallthru
        _
    $region12: #{feature_extractor_forward.11} parent=5 // pred_fallthru
      _
    %p174 = scmp.lt.s32.totalorder %s11, 2
    // Predicated region
    $region29: #{feature_extractor_forward.11} parent=5 // pred_check
      %p175 = pneg %p174
    $region30: #{feature_extractor_forward.11} parent=5 // pred_check_branch
      %177 = sbr.rel (%p175) target = $region32
    $region31: #{feature_extractor_forward.11} parent=5 // pred_region
      // Predicated region
      $region33: #{feature_extractor_forward.11} parent=31 // pred_check
        %p178 = pneg %p31
      $region34: #{feature_extractor_forward.11} parent=31 // pred_check_branch
        %180 = sbr.rel (%p178) target = $region36
      $region35: #{feature_extractor_forward.11} parent=31 // pred_region
        %s181 = smul.u32 32, %s11
        %p182 = scmp.lt.s32.totalorder %s181, 63
        %s183 = scalar_select %p182, %s181, 63
        %s184 = smul.addr %s183, 8
        %s185 = scalar_lea.vmem %s0, %s184
        %s186 = smul.u32 32, %s11
      $region36: #{feature_extractor_forward.11} parent=31 // pred_fallthru
        _
    $region32: #{feature_extractor_forward.11} parent=5 // pred_fallthru
      _
    %p187 = scmp.le.s32.totalorder 1, %s11
    %p188 = scmp.lt.s32.totalorder %s11, 3
    %p189 = pnand %p187, %p188
    %p190 = pneg %p189
    // Predicated region
    $region37: #{feature_extractor_forward.11} parent=5 // pred_check
      _
    $region38: #{feature_extractor_forward.11} parent=5 // pred_check_branch
      %192 = sbr.rel (%p189) target = $region40
    $region39: #{feature_extractor_forward.11} parent=5 // pred_region
      %s193 = ssub.s32 %s11, 1
      %s194 = smul.u32 32, %s16
      %p195 = scmp.lt.s32.totalorder %s194, 63
      %s196 = scalar_select %p195, %s194, 63
      %s197 = smul.addr %s196, 8
      %s198 = scalar_lea.vmem %s0, %s197
      %p199 = pneg %p37
      %p200 = pneg %p34
      %p201 = pneg %p58
      %p202 = pneg %p55
      %p203 = pneg %p79
      %p204 = pneg %p76
      %p205 = pneg %p100
      %p206 = pneg %p97
      %p207 = pneg %p121
      %p208 = pneg %p118
      %p209 = pneg %p147
      %p210 = pneg %p144
      %s211 = smul.u32 32, %s16
      %p212 = scmp.lt.s32.totalorder %s211, 63
      %s213 = scalar_select %p212, %s211, 63
      %s214 = smul.addr %s213, 8
      %s215 = scalar_lea.vmem %s5, %s214
      %s216 = smul.u32 32, %s16
      %p217 = scmp.lt.s32.totalorder %s216, 63
      %s218 = scalar_select %p217, %s216, 63
      %s219 = smul.addr %s218, 8
      %s220 = scalar_lea.vmem %s0, %s219
      %s221 = smul.u32 32, %s16
      %s222 = smul.u32 32, %s16
      %p223 = scmp.lt.s32.totalorder %s222, 63
      %s224 = scalar_select %p223, %s222, 63
      %s225 = smul.addr %s224, 8
      %s226 = scalar_lea.vmem %s5, %s225
      %s227 = smul.u32 32, %s16
      %v228 = vld [vmem:[%s220] sm:$0xff]
      %v229 = vld [vmem:[%s220 + $0x8] sm:$0xff]
      %v230 = vld [vmem:[%s220 + $0x10] sm:$0xff]
      %v231 = vld [vmem:[%s220 + $0x18] sm:$0xff]
      %v232 = vld [vmem:[%s220 + $0x20] sm:$0xff]
      %v233 = vld [vmem:[%s220 + $0x28] sm:$0xff]
      %v234 = vld [vmem:[%s220 + $0x30] sm:$0xff]
      %v235 = vld [vmem:[%s220 + $0x38] sm:$0xff]
      %v236 = vld [vmem:[%s220 + $0x40] sm:$0xff]
      %v237 = vld [vmem:[%s220 + $0x48] sm:$0xff]
      %v238 = vld [vmem:[%s220 + $0x50] sm:$0xff]
      %v239 = vld [vmem:[%s220 + $0x58] sm:$0xff]
      %v240 = vld [vmem:[%s220 + $0x60] sm:$0xff]
      %v241 = vld [vmem:[%s220 + $0x68] sm:$0xff]
      %v242 = vld [vmem:[%s220 + $0x70] sm:$0xff]
      %v243 = vld [vmem:[%s220 + $0x78] sm:$0xff]
      %v244 = vld [vmem:[%s220 + $0x80] sm:$0xff]
      %v245 = vld [vmem:[%s220 + $0x88] sm:$0xff]
      %v246 = vld [vmem:[%s220 + $0x90] sm:$0xff]
      %v247 = vld [vmem:[%s220 + $0x98] sm:$0xff]
      %v248 = vld [vmem:[%s220 + $0xa0] sm:$0xff]
      %v249 = vld [vmem:[%s220 + $0xa8] sm:$0xff]
      %v250 = vld [vmem:[%s220 + $0xb0] sm:$0xff]
      %v251 = vld [vmem:[%s220 + $0xb8] sm:$0xff]
      %v252 = vld [vmem:[%s220 + $0xc0] sm:$0xff]
      %v253 = vld [vmem:[%s220 + $0xc8] sm:$0xff]
      %v254 = vld [vmem:[%s220 + $0xd0] sm:$0xff]
      %v255 = vld [vmem:[%s220 + $0xd8] sm:$0xff]
      %v256 = vld [vmem:[%s220 + $0xe0] sm:$0xff]
      %v257 = vld [vmem:[%s220 + $0xe8] sm:$0xff]
      %v258 = vld [vmem:[%s220 + $0xf0] sm:$0xff]
      %v259 = vld [vmem:[%s220 + $0xf8] sm:$0xff]
      %v260 = vld [vmem:[%s1] sm:$0xff]
      %v261 = vld [vmem:[%s1 + $0x8] sm:$0xff]
      %v262 = vld [vmem:[%s1 + $0x10] sm:$0xff]
      %v263 = vld [vmem:[%s1 + $0x18] sm:$0xff]
      %v264 = vld [vmem:[%s1 + $0x20] sm:$0xff]
      %v265 = vld [vmem:[%s1 + $0x28] sm:$0xff]
      %v266 = vld [vmem:[%s1 + $0x30] sm:$0xff]
      %v267 = vld [vmem:[%s1 + $0x38] sm:$0xff]
      %v268 = vld [vmem:[%s2] sm:$0x1]
      %v270 = vlaneseq
      %v271 = vshrl.u32 %v270, 7
      %v272 = vsub.s32 0, %v271
      %v273 = vrot.slane %v268, %v272
      %vm275 = vcmask 523264
      %v277 = vsel %vm275, %v228, 0
      %v280 = vsel %vm275, %v229, 0
      %v283 = vsel %vm275, %v230, 0
      %v286 = vsel %vm275, %v231, 0
      %v289 = vsel %vm275, %v232, 0
      %v292 = vsel %vm275, %v233, 0
      %v295 = vsel %vm275, %v234, 0
      %v298 = vsel %vm275, %v235, 0
      %v301 = vsel %vm275, %v236, 0
      %v304 = vsel %vm275, %v237, 0
      %v307 = vsel %vm275, %v238, 0
      %v310 = vsel %vm275, %v239, 0
      %v313 = vsel %vm275, %v240, 0
      %v316 = vsel %vm275, %v241, 0
      %v319 = vsel %vm275, %v242, 0
      %v322 = vsel %vm275, %v243, 0
      %v325 = vsel %vm275, %v244, 0
      %v328 = vsel %vm275, %v245, 0
      %v331 = vsel %vm275, %v246, 0
      %v334 = vsel %vm275, %v247, 0
      %v337 = vsel %vm275, %v248, 0
      %v340 = vsel %vm275, %v249, 0
      %v343 = vsel %vm275, %v250, 0
      %v346 = vsel %vm275, %v251, 0
      %v349 = vsel %vm275, %v252, 0
      %v352 = vsel %vm275, %v253, 0
      %v355 = vsel %vm275, %v254, 0
      %v358 = vsel %vm275, %v255, 0
      %v361 = vsel %vm275, %v256, 0
      %v364 = vsel %vm275, %v257, 0
      %v367 = vsel %vm275, %v258, 0
      %v370 = vsel %vm275, %v259, 0
      %372 = vmatprep.subr.mxu0 0.0
      %373 = vmatpush1.msra.mxu0 0.0
      %374 = vmatprep.subr.mxu0 0.0
      %375 = vmatpush1.msra.mxu0 0.0
      %376 = vmatprep.subr.mxu0 0.0
      %377 = vmatpush1.msra.mxu0 0.0
      %378 = vmatprep.subr.mxu0 0.0
      %379 = vmatpush1.msra.mxu0 0.0
      %380 = vmatprep.subr.mxu0 0.0
      %381 = vmatpush1.msra.mxu0 0.0
      %382 = vmatprep.subr.mxu0 0.0
      %383 = vmatpush1.msra.mxu0 0.0
      %384 = vmatprep.subr.mxu0 0.0
      %385 = vmatpush1.msra.mxu0 0.0
      %386 = vmatprep.subr.mxu0 0.0
      %387 = vmatpush1.msra.mxu0 0.0
      %388 = vmatprep.subr.mxu0 0.0
      %389 = vmatpush1.msra.mxu0 %v267
      %390 = vmatprep.subr.mxu0 0.0
      %391 = vmatpush1.msra.mxu0 %v266
      %392 = vmatprep.subr.mxu0 0.0
      %393 = vmatpush1.msra.mxu0 %v265
      %394 = vmatprep.subr.mxu0 0.0
      %395 = vmatpush1.msra.mxu0 %v264
      %396 = vmatprep.subr.mxu0 0.0
      %397 = vmatpush1.msra.mxu0 %v263
      %398 = vmatprep.subr.mxu0 0.0
      %399 = vmatpush1.msra.mxu0 %v262
      %400 = vmatprep.subr.mxu0 0.0
      %401 = vmatpush1.msra.mxu0 %v261
      %402 = vmatprep.subr.mxu0 0.0
      %403 = vmatpush1.msra.mxu0 %v260
      %404 = vmatprep.subr.mxu0 0.0
      %405 = vmatpush2.msra.mxu0 0.0
      %406 = vmatprep.subr.mxu0 0.0
      %407 = vmatpush2.msra.mxu0 0.0
      %408 = vmatprep.subr.mxu0 0.0
      %409 = vmatpush2.msra.mxu0 0.0
      %410 = vmatprep.subr.mxu0 0.0
      %411 = vmatpush2.msra.mxu0 0.0
      %412 = vmatprep.subr.mxu0 0.0
      %413 = vmatpush2.msra.mxu0 0.0
      %414 = vmatprep.subr.mxu0 0.0
      %415 = vmatpush2.msra.mxu0 0.0
      %416 = vmatprep.subr.mxu0 0.0
      %417 = vmatpush2.msra.mxu0 0.0
      %418 = vmatprep.subr.mxu0 0.0
      %419 = vmatpush2.msra.mxu0 0.0
      %420 = vmatprep.subr.mxu0 0.0
      %421 = vmatpush2.msra.mxu0 0.0
      %422 = vmatprep.subr.mxu0 0.0
      %423 = vmatpush2.msra.mxu0 0.0
      %424 = vmatprep.subr.mxu0 0.0
      %425 = vmatpush2.msra.mxu0 0.0
      %426 = vmatprep.subr.mxu0 0.0
      %427 = vmatpush2.msra.mxu0 0.0
      %428 = vmatprep.subr.mxu0 0.0
      %429 = vmatpush2.msra.mxu0 0.0
      %430 = vmatprep.subr.mxu0 0.0
      %431 = vmatpush2.msra.mxu0 0.0
      %432 = vmatprep.subr.mxu0 0.0
      %433 = vmatpush2.msra.mxu0 0.0
      %434 = vmatprep.subr.mxu0 0.0
      %435 = vmatpush2.msra.mxu0 0.0
      %436 = vmatprep.mubr.f32.mxu0 0.0
      %437 = vmatmul.mubr.f32.gmra.mxu0 %v277
      %v438 = vpop.f32.mrf.mxu0
      %v439 = vadd.f32 %v273, %v438
      %v440 = vpop.f32.mrf.mxu0
      %441 = vmatprep.mubr.f32.mxu0 0.0
      %442 = vmatmul.mubr.f32.gmra.mxu0 %v280
      %v443 = vpop.f32.mrf.mxu0
      %v444 = vadd.f32 %v273, %v443
      %v445 = vpop.f32.mrf.mxu0
      %446 = vmatprep.mubr.f32.mxu0 0.0
      %447 = vmatmul.mubr.f32.gmra.mxu0 %v283
      %v448 = vpop.f32.mrf.mxu0
      %v449 = vadd.f32 %v273, %v448
      %v450 = vpop.f32.mrf.mxu0
      %451 = vmatprep.mubr.f32.mxu0 0.0
      %452 = vmatmul.mubr.f32.gmra.mxu0 %v286
      %v453 = vpop.f32.mrf.mxu0
      %v454 = vadd.f32 %v273, %v453
      %v455 = vpop.f32.mrf.mxu0
      %456 = vmatprep.mubr.f32.mxu0 0.0
      %457 = vmatmul.mubr.f32.gmra.mxu0 %v289
      %v458 = vpop.f32.mrf.mxu0
      %v459 = vadd.f32 %v273, %v458
      %v460 = vpop.f32.mrf.mxu0
      %461 = vmatprep.mubr.f32.mxu0 0.0
      %462 = vmatmul.mubr.f32.gmra.mxu0 %v292
      %v463 = vpop.f32.mrf.mxu0
      %v464 = vadd.f32 %v273, %v463
      %v465 = vpop.f32.mrf.mxu0
      %466 = vmatprep.mubr.f32.mxu0 0.0
      %467 = vmatmul.mubr.f32.gmra.mxu0 %v295
      %v468 = vpop.f32.mrf.mxu0
      %v469 = vadd.f32 %v273, %v468
      %v470 = vpop.f32.mrf.mxu0
      %471 = vmatprep.mubr.f32.mxu0 0.0
      %472 = vmatmul.mubr.f32.gmra.mxu0 %v298
      %v473 = vpop.f32.mrf.mxu0
      %v474 = vadd.f32 %v273, %v473
      %v475 = vpop.f32.mrf.mxu0
      %476 = vmatprep.mubr.f32.mxu0 0.0
      %477 = vmatmul.mubr.f32.gmra.mxu0 %v301
      %v478 = vpop.f32.mrf.mxu0
      %v479 = vadd.f32 %v273, %v478
      %v480 = vpop.f32.mrf.mxu0
      %481 = vmatprep.mubr.f32.mxu0 0.0
      %482 = vmatmul.mubr.f32.gmra.mxu0 %v304
      %v483 = vpop.f32.mrf.mxu0
      %v484 = vadd.f32 %v273, %v483
      %v485 = vpop.f32.mrf.mxu0
      %486 = vmatprep.mubr.f32.mxu0 0.0
      %487 = vmatmul.mubr.f32.gmra.mxu0 %v307
      %v488 = vpop.f32.mrf.mxu0
      %v489 = vadd.f32 %v273, %v488
      %v490 = vpop.f32.mrf.mxu0
      %491 = vmatprep.mubr.f32.mxu0 0.0
      %492 = vmatmul.mubr.f32.gmra.mxu0 %v310
      %v493 = vpop.f32.mrf.mxu0
      %v494 = vadd.f32 %v273, %v493
      %v495 = vpop.f32.mrf.mxu0
      %496 = vmatprep.mubr.f32.mxu0 0.0
      %497 = vmatmul.mubr.f32.gmra.mxu0 %v313
      %v498 = vpop.f32.mrf.mxu0
      %v499 = vadd.f32 %v273, %v498
      %v500 = vpop.f32.mrf.mxu0
      %501 = vmatprep.mubr.f32.mxu0 0.0
      %502 = vmatmul.mubr.f32.gmra.mxu0 %v316
      %v503 = vpop.f32.mrf.mxu0
      %v504 = vadd.f32 %v273, %v503
      %v505 = vpop.f32.mrf.mxu0
      %506 = vmatprep.mubr.f32.mxu0 0.0
      %507 = vmatmul.mubr.f32.gmra.mxu0 %v319
      %v508 = vpop.f32.mrf.mxu0
      %v509 = vadd.f32 %v273, %v508
      %v510 = vpop.f32.mrf.mxu0
      %511 = vmatprep.mubr.f32.mxu0 0.0
      %512 = vmatmul.mubr.f32.gmra.mxu0 %v322
      %v513 = vpop.f32.mrf.mxu0
      %v514 = vadd.f32 %v273, %v513
      %v515 = vpop.f32.mrf.mxu0
      %516 = vmatprep.mubr.f32.mxu0 0.0
      %517 = vmatmul.mubr.f32.gmra.mxu0 %v325
      %v518 = vpop.f32.mrf.mxu0
      %v519 = vadd.f32 %v273, %v518
      %v520 = vpop.f32.mrf.mxu0
      %521 = vmatprep.mubr.f32.mxu0 0.0
      %522 = vmatmul.mubr.f32.gmra.mxu0 %v328
      %v523 = vpop.f32.mrf.mxu0
      %v524 = vadd.f32 %v273, %v523
      %v525 = vpop.f32.mrf.mxu0
      %526 = vmatprep.mubr.f32.mxu0 0.0
      %527 = vmatmul.mubr.f32.gmra.mxu0 %v331
      %v528 = vpop.f32.mrf.mxu0
      %v529 = vadd.f32 %v273, %v528
      %v530 = vpop.f32.mrf.mxu0
      %531 = vmatprep.mubr.f32.mxu0 0.0
      %532 = vmatmul.mubr.f32.gmra.mxu0 %v334
      %v533 = vpop.f32.mrf.mxu0
      %v534 = vadd.f32 %v273, %v533
      %v535 = vpop.f32.mrf.mxu0
      %536 = vmatprep.mubr.f32.mxu0 0.0
      %537 = vmatmul.mubr.f32.gmra.mxu0 %v337
      %v538 = vpop.f32.mrf.mxu0
      %v539 = vadd.f32 %v273, %v538
      %v540 = vpop.f32.mrf.mxu0
      %541 = vmatprep.mubr.f32.mxu0 0.0
      %542 = vmatmul.mubr.f32.gmra.mxu0 %v340
      %v543 = vpop.f32.mrf.mxu0
      %v544 = vadd.f32 %v273, %v543
      %v545 = vpop.f32.mrf.mxu0
      %546 = vmatprep.mubr.f32.mxu0 0.0
      %547 = vmatmul.mubr.f32.gmra.mxu0 %v343
      %v548 = vpop.f32.mrf.mxu0
      %v549 = vadd.f32 %v273, %v548
      %v550 = vpop.f32.mrf.mxu0
      %551 = vmatprep.mubr.f32.mxu0 0.0
      %552 = vmatmul.mubr.f32.gmra.mxu0 %v346
      %v553 = vpop.f32.mrf.mxu0
      %v554 = vadd.f32 %v273, %v553
      %v555 = vpop.f32.mrf.mxu0
      %556 = vmatprep.mubr.f32.mxu0 0.0
      %557 = vmatmul.mubr.f32.gmra.mxu0 %v349
      %v558 = vpop.f32.mrf.mxu0
      %v559 = vadd.f32 %v273, %v558
      %v560 = vpop.f32.mrf.mxu0
      %561 = vmatprep.mubr.f32.mxu0 0.0
      %562 = vmatmul.mubr.f32.gmra.mxu0 %v352
      %v563 = vpop.f32.mrf.mxu0
      %v564 = vadd.f32 %v273, %v563
      %v565 = vpop.f32.mrf.mxu0
      %566 = vmatprep.mubr.f32.mxu0 0.0
      %567 = vmatmul.mubr.f32.gmra.mxu0 %v355
      %v568 = vpop.f32.mrf.mxu0
      %v569 = vadd.f32 %v273, %v568
      %v570 = vpop.f32.mrf.mxu0
      %571 = vmatprep.mubr.f32.mxu0 0.0
      %572 = vmatmul.mubr.f32.gmra.mxu0 %v358
      %v573 = vpop.f32.mrf.mxu0
      %v574 = vadd.f32 %v273, %v573
      %v575 = vpop.f32.mrf.mxu0
      %576 = vmatprep.mubr.f32.mxu0 0.0
      %577 = vmatmul.mubr.f32.gmra.mxu0 %v361
      %v578 = vpop.f32.mrf.mxu0
      %v579 = vadd.f32 %v273, %v578
      %v580 = vpop.f32.mrf.mxu0
      %581 = vmatprep.mubr.f32.mxu0 0.0
      %582 = vmatmul.mubr.f32.gmra.mxu0 %v364
      %v583 = vpop.f32.mrf.mxu0
      %v584 = vadd.f32 %v273, %v583
      %v585 = vpop.f32.mrf.mxu0
      %586 = vmatprep.mubr.f32.mxu0 0.0
      %587 = vmatmul.mubr.f32.gmra.mxu0 %v367
      %v588 = vpop.f32.mrf.mxu0
      %v589 = vadd.f32 %v273, %v588
      %v590 = vpop.f32.mrf.mxu0
      %591 = vmatprep.mubr.f32.mxu0 0.0
      %592 = vmatmul.mubr.f32.gmra.mxu0 %v370
      %v593 = vpop.f32.mrf.mxu0
      %v594 = vadd.f32 %v273, %v593
      %v595 = vpop.f32.mrf.mxu0
      %596 = vdwg.mxu0
      %v597 = vmax.f32 %v439, 0.0
      %v598 = vmax.f32 %v444, 0.0
      %v599 = vmax.f32 %v449, 0.0
      %v600 = vmax.f32 %v454, 0.0
      %v601 = vmax.f32 %v459, 0.0
      %v602 = vmax.f32 %v464, 0.0
      %v603 = vmax.f32 %v469, 0.0
      %v604 = vmax.f32 %v474, 0.0
      %v605 = vmax.f32 %v479, 0.0
      %v606 = vmax.f32 %v484, 0.0
      %v607 = vmax.f32 %v489, 0.0
      %v608 = vmax.f32 %v494, 0.0
      %v609 = vmax.f32 %v499, 0.0
      %v610 = vmax.f32 %v504, 0.0
      %v611 = vmax.f32 %v509, 0.0
      %v612 = vmax.f32 %v514, 0.0
      %v613 = vmax.f32 %v519, 0.0
      %v614 = vmax.f32 %v524, 0.0
      %v615 = vmax.f32 %v529, 0.0
      %v616 = vmax.f32 %v534, 0.0
      %v617 = vmax.f32 %v539, 0.0
      %v618 = vmax.f32 %v544, 0.0
      %v619 = vmax.f32 %v549, 0.0
      %v620 = vmax.f32 %v554, 0.0
      %v621 = vmax.f32 %v559, 0.0
      %v622 = vmax.f32 %v564, 0.0
      %v623 = vmax.f32 %v569, 0.0
      %v624 = vmax.f32 %v574, 0.0
      %v625 = vmax.f32 %v579, 0.0
      %v626 = vmax.f32 %v584, 0.0
      %v627 = vmax.f32 %v589, 0.0
      %v628 = vmax.f32 %v594, 0.0
      %v629 = vld [vmem:[%s3] sm:$0xff]
      %v630 = vld [vmem:[%s3 + $0x8] sm:$0xff]
      %v631 = vld [vmem:[%s3 + $0x10] sm:$0xff]
      %v632 = vld [vmem:[%s3 + $0x18] sm:$0xff]
      %v633 = vld [vmem:[%s3 + $0x20] sm:$0xff]
      %v634 = vld [vmem:[%s3 + $0x28] sm:$0xff]
      %v635 = vld [vmem:[%s3 + $0x30] sm:$0xff]
      %v636 = vld [vmem:[%s3 + $0x38] sm:$0xff]
      %v637 = vld [vmem:[%s4] sm:$0x1]
      %v639 = vlaneseq
      %v640 = vshrl.u32 %v639, 7
      %v641 = vsub.s32 0, %v640
      %v642 = vrot.slane %v637, %v641
      %v645 = vsel %vm275, %v597, 0
      %v648 = vsel %vm275, %v598, 0
      %v651 = vsel %vm275, %v599, 0
      %v654 = vsel %vm275, %v600, 0
      %v657 = vsel %vm275, %v601, 0
      %v660 = vsel %vm275, %v602, 0
      %v663 = vsel %vm275, %v603, 0
      %v666 = vsel %vm275, %v604, 0
      %v669 = vsel %vm275, %v605, 0
      %v672 = vsel %vm275, %v606, 0
      %v675 = vsel %vm275, %v607, 0
      %v678 = vsel %vm275, %v608, 0
      %v681 = vsel %vm275, %v609, 0
      %v684 = vsel %vm275, %v610, 0
      %v687 = vsel %vm275, %v611, 0
      %v690 = vsel %vm275, %v612, 0
      %v693 = vsel %vm275, %v613, 0
      %v696 = vsel %vm275, %v614, 0
      %v699 = vsel %vm275, %v615, 0
      %v702 = vsel %vm275, %v616, 0
      %v705 = vsel %vm275, %v617, 0
      %v708 = vsel %vm275, %v618, 0
      %v711 = vsel %vm275, %v619, 0
      %v714 = vsel %vm275, %v620, 0
      %v717 = vsel %vm275, %v621, 0
      %v720 = vsel %vm275, %v622, 0
      %v723 = vsel %vm275, %v623, 0
      %v726 = vsel %vm275, %v624, 0
      %v729 = vsel %vm275, %v625, 0
      %v732 = vsel %vm275, %v626, 0
      %v735 = vsel %vm275, %v627, 0
      %v738 = vsel %vm275, %v628, 0
      %740 = vmatprep.subr.mxu0 0.0
      %741 = vmatpush1.msra.mxu0 0.0
      %742 = vmatprep.subr.mxu0 0.0
      %743 = vmatpush1.msra.mxu0 0.0
      %744 = vmatprep.subr.mxu0 0.0
      %745 = vmatpush1.msra.mxu0 0.0
      %746 = vmatprep.subr.mxu0 0.0
      %747 = vmatpush1.msra.mxu0 0.0
      %748 = vmatprep.subr.mxu0 0.0
      %749 = vmatpush1.msra.mxu0 0.0
      %750 = vmatprep.subr.mxu0 0.0
      %751 = vmatpush1.msra.mxu0 0.0
      %752 = vmatprep.subr.mxu0 0.0
      %753 = vmatpush1.msra.mxu0 0.0
      %754 = vmatprep.subr.mxu0 0.0
      %755 = vmatpush1.msra.mxu0 0.0
      %756 = vmatprep.subr.mxu0 0.0
      %757 = vmatpush1.msra.mxu0 %v636
      %758 = vmatprep.subr.mxu0 0.0
      %759 = vmatpush1.msra.mxu0 %v635
      %760 = vmatprep.subr.mxu0 0.0
      %761 = vmatpush1.msra.mxu0 %v634
      %762 = vmatprep.subr.mxu0 0.0
      %763 = vmatpush1.msra.mxu0 %v633
      %764 = vmatprep.subr.mxu0 0.0
      %765 = vmatpush1.msra.mxu0 %v632
      %766 = vmatprep.subr.mxu0 0.0
      %767 = vmatpush1.msra.mxu0 %v631
      %768 = vmatprep.subr.mxu0 0.0
      %769 = vmatpush1.msra.mxu0 %v630
      %770 = vmatprep.subr.mxu0 0.0
      %771 = vmatpush1.msra.mxu0 %v629
      %772 = vmatprep.subr.mxu0 0.0
      %773 = vmatpush2.msra.mxu0 0.0
      %774 = vmatprep.subr.mxu0 0.0
      %775 = vmatpush2.msra.mxu0 0.0
      %776 = vmatprep.subr.mxu0 0.0
      %777 = vmatpush2.msra.mxu0 0.0
      %778 = vmatprep.subr.mxu0 0.0
      %779 = vmatpush2.msra.mxu0 0.0
      %780 = vmatprep.subr.mxu0 0.0
      %781 = vmatpush2.msra.mxu0 0.0
      %782 = vmatprep.subr.mxu0 0.0
      %783 = vmatpush2.msra.mxu0 0.0
      %784 = vmatprep.subr.mxu0 0.0
      %785 = vmatpush2.msra.mxu0 0.0
      %786 = vmatprep.subr.mxu0 0.0
      %787 = vmatpush2.msra.mxu0 0.0
      %788 = vmatprep.subr.mxu0 0.0
      %789 = vmatpush2.msra.mxu0 0.0
      %790 = vmatprep.subr.mxu0 0.0
      %791 = vmatpush2.msra.mxu0 0.0
      %792 = vmatprep.subr.mxu0 0.0
      %793 = vmatpush2.msra.mxu0 0.0
      %794 = vmatprep.subr.mxu0 0.0
      %795 = vmatpush2.msra.mxu0 0.0
      %796 = vmatprep.subr.mxu0 0.0
      %797 = vmatpush2.msra.mxu0 0.0
      %798 = vmatprep.subr.mxu0 0.0
      %799 = vmatpush2.msra.mxu0 0.0
      %800 = vmatprep.subr.mxu0 0.0
      %801 = vmatpush2.msra.mxu0 0.0
      %802 = vmatprep.subr.mxu0 0.0
      %803 = vmatpush2.msra.mxu0 0.0
      %804 = vmatprep.mubr.f32.mxu0 0.0
      %805 = vmatmul.mubr.f32.gmra.mxu0 %v645
      %v806 = vpop.f32.mrf.mxu0
      %v807 = vadd.f32 %v642, %v806
      %v808 = vpop.f32.mrf.mxu0
      %809 = vmatprep.mubr.f32.mxu0 0.0
      %810 = vmatmul.mubr.f32.gmra.mxu0 %v648
      %v811 = vpop.f32.mrf.mxu0
      %v812 = vadd.f32 %v642, %v811
      %v813 = vpop.f32.mrf.mxu0
      %814 = vmatprep.mubr.f32.mxu0 0.0
      %815 = vmatmul.mubr.f32.gmra.mxu0 %v651
      %v816 = vpop.f32.mrf.mxu0
      %v817 = vadd.f32 %v642, %v816
      %v818 = vpop.f32.mrf.mxu0
      %819 = vmatprep.mubr.f32.mxu0 0.0
      %820 = vmatmul.mubr.f32.gmra.mxu0 %v654
      %v821 = vpop.f32.mrf.mxu0
      %v822 = vadd.f32 %v642, %v821
      %v823 = vpop.f32.mrf.mxu0
      %824 = vmatprep.mubr.f32.mxu0 0.0
      %825 = vmatmul.mubr.f32.gmra.mxu0 %v657
      %v826 = vpop.f32.mrf.mxu0
      %v827 = vadd.f32 %v642, %v826
      %v828 = vpop.f32.mrf.mxu0
      %829 = vmatprep.mubr.f32.mxu0 0.0
      %830 = vmatmul.mubr.f32.gmra.mxu0 %v660
      %v831 = vpop.f32.mrf.mxu0
      %v832 = vadd.f32 %v642, %v831
      %v833 = vpop.f32.mrf.mxu0
      %834 = vmatprep.mubr.f32.mxu0 0.0
      %835 = vmatmul.mubr.f32.gmra.mxu0 %v663
      %v836 = vpop.f32.mrf.mxu0
      %v837 = vadd.f32 %v642, %v836
      %v838 = vpop.f32.mrf.mxu0
      %839 = vmatprep.mubr.f32.mxu0 0.0
      %840 = vmatmul.mubr.f32.gmra.mxu0 %v666
      %v841 = vpop.f32.mrf.mxu0
      %v842 = vadd.f32 %v642, %v841
      %v843 = vpop.f32.mrf.mxu0
      %844 = vmatprep.mubr.f32.mxu0 0.0
      %845 = vmatmul.mubr.f32.gmra.mxu0 %v669
      %v846 = vpop.f32.mrf.mxu0
      %v847 = vadd.f32 %v642, %v846
      %v848 = vpop.f32.mrf.mxu0
      %849 = vmatprep.mubr.f32.mxu0 0.0
      %850 = vmatmul.mubr.f32.gmra.mxu0 %v672
      %v851 = vpop.f32.mrf.mxu0
      %v852 = vadd.f32 %v642, %v851
      %v853 = vpop.f32.mrf.mxu0
      %854 = vmatprep.mubr.f32.mxu0 0.0
      %855 = vmatmul.mubr.f32.gmra.mxu0 %v675
      %v856 = vpop.f32.mrf.mxu0
      %v857 = vadd.f32 %v642, %v856
      %v858 = vpop.f32.mrf.mxu0
      %859 = vmatprep.mubr.f32.mxu0 0.0
      %860 = vmatmul.mubr.f32.gmra.mxu0 %v678
      %v861 = vpop.f32.mrf.mxu0
      %v862 = vadd.f32 %v642, %v861
      %v863 = vpop.f32.mrf.mxu0
      %864 = vmatprep.mubr.f32.mxu0 0.0
      %865 = vmatmul.mubr.f32.gmra.mxu0 %v681
      %v866 = vpop.f32.mrf.mxu0
      %v867 = vadd.f32 %v642, %v866
      %v868 = vpop.f32.mrf.mxu0
      %869 = vmatprep.mubr.f32.mxu0 0.0
      %870 = vmatmul.mubr.f32.gmra.mxu0 %v684
      %v871 = vpop.f32.mrf.mxu0
      %v872 = vadd.f32 %v642, %v871
      %v873 = vpop.f32.mrf.mxu0
      %874 = vmatprep.mubr.f32.mxu0 0.0
      %875 = vmatmul.mubr.f32.gmra.mxu0 %v687
      %v876 = vpop.f32.mrf.mxu0
      %v877 = vadd.f32 %v642, %v876
      %v878 = vpop.f32.mrf.mxu0
      %879 = vmatprep.mubr.f32.mxu0 0.0
      %880 = vmatmul.mubr.f32.gmra.mxu0 %v690
      %v881 = vpop.f32.mrf.mxu0
      %v882 = vadd.f32 %v642, %v881
      %v883 = vpop.f32.mrf.mxu0
      %884 = vmatprep.mubr.f32.mxu0 0.0
      %885 = vmatmul.mubr.f32.gmra.mxu0 %v693
      %v886 = vpop.f32.mrf.mxu0
      %v887 = vadd.f32 %v642, %v886
      %v888 = vpop.f32.mrf.mxu0
      %889 = vmatprep.mubr.f32.mxu0 0.0
      %890 = vmatmul.mubr.f32.gmra.mxu0 %v696
      %v891 = vpop.f32.mrf.mxu0
      %v892 = vadd.f32 %v642, %v891
      %v893 = vpop.f32.mrf.mxu0
      %894 = vmatprep.mubr.f32.mxu0 0.0
      %895 = vmatmul.mubr.f32.gmra.mxu0 %v699
      %v896 = vpop.f32.mrf.mxu0
      %v897 = vadd.f32 %v642, %v896
      %v898 = vpop.f32.mrf.mxu0
      %899 = vmatprep.mubr.f32.mxu0 0.0
      %900 = vmatmul.mubr.f32.gmra.mxu0 %v702
      %v901 = vpop.f32.mrf.mxu0
      %v902 = vadd.f32 %v642, %v901
      %v903 = vpop.f32.mrf.mxu0
      %904 = vmatprep.mubr.f32.mxu0 0.0
      %905 = vmatmul.mubr.f32.gmra.mxu0 %v705
      %v906 = vpop.f32.mrf.mxu0
      %v907 = vadd.f32 %v642, %v906
      %v908 = vpop.f32.mrf.mxu0
      %909 = vmatprep.mubr.f32.mxu0 0.0
      %910 = vmatmul.mubr.f32.gmra.mxu0 %v708
      %v911 = vpop.f32.mrf.mxu0
      %v912 = vadd.f32 %v642, %v911
      %v913 = vpop.f32.mrf.mxu0
      %914 = vmatprep.mubr.f32.mxu0 0.0
      %915 = vmatmul.mubr.f32.gmra.mxu0 %v711
      %v916 = vpop.f32.mrf.mxu0
      %v917 = vadd.f32 %v642, %v916
      %v918 = vpop.f32.mrf.mxu0
      %919 = vmatprep.mubr.f32.mxu0 0.0
      %920 = vmatmul.mubr.f32.gmra.mxu0 %v714
      %v921 = vpop.f32.mrf.mxu0
      %v922 = vadd.f32 %v642, %v921
      %v923 = vpop.f32.mrf.mxu0
      %924 = vmatprep.mubr.f32.mxu0 0.0
      %925 = vmatmul.mubr.f32.gmra.mxu0 %v717
      %v926 = vpop.f32.mrf.mxu0
      %v927 = vadd.f32 %v642, %v926
      %v928 = vpop.f32.mrf.mxu0
      %929 = vmatprep.mubr.f32.mxu0 0.0
      %930 = vmatmul.mubr.f32.gmra.mxu0 %v720
      %v931 = vpop.f32.mrf.mxu0
      %v932 = vadd.f32 %v642, %v931
      %v933 = vpop.f32.mrf.mxu0
      %934 = vmatprep.mubr.f32.mxu0 0.0
      %935 = vmatmul.mubr.f32.gmra.mxu0 %v723
      %v936 = vpop.f32.mrf.mxu0
      %v937 = vadd.f32 %v642, %v936
      %v938 = vpop.f32.mrf.mxu0
      %939 = vmatprep.mubr.f32.mxu0 0.0
      %940 = vmatmul.mubr.f32.gmra.mxu0 %v726
      %v941 = vpop.f32.mrf.mxu0
      %v942 = vadd.f32 %v642, %v941
      %v943 = vpop.f32.mrf.mxu0
      %944 = vmatprep.mubr.f32.mxu0 0.0
      %945 = vmatmul.mubr.f32.gmra.mxu0 %v729
      %v946 = vpop.f32.mrf.mxu0
      %v947 = vadd.f32 %v642, %v946
      %v948 = vpop.f32.mrf.mxu0
      %949 = vmatprep.mubr.f32.mxu0 0.0
      %950 = vmatmul.mubr.f32.gmra.mxu0 %v732
      %v951 = vpop.f32.mrf.mxu0
      %v952 = vadd.f32 %v642, %v951
      %v953 = vpop.f32.mrf.mxu0
      %954 = vmatprep.mubr.f32.mxu0 0.0
      %955 = vmatmul.mubr.f32.gmra.mxu0 %v735
      %v956 = vpop.f32.mrf.mxu0
      %v957 = vadd.f32 %v642, %v956
      %v958 = vpop.f32.mrf.mxu0
      %959 = vmatprep.mubr.f32.mxu0 0.0
      %960 = vmatmul.mubr.f32.gmra.mxu0 %v738
      %v961 = vpop.f32.mrf.mxu0
      %v962 = vadd.f32 %v642, %v961
      %v963 = vpop.f32.mrf.mxu0
      %964 = vdwg.mxu0
      %vm965 = vcmp.gt.f32.partialorder %v807, 0.01
      %vm966 = vcmp.gt.f32.partialorder %v812, 0.01
      %vm967 = vcmp.gt.f32.partialorder %v817, 0.01
      %vm968 = vcmp.gt.f32.partialorder %v822, 0.01
      %vm969 = vcmp.gt.f32.partialorder %v827, 0.01
      %vm970 = vcmp.gt.f32.partialorder %v832, 0.01
      %vm971 = vcmp.gt.f32.partialorder %v837, 0.01
      %vm972 = vcmp.gt.f32.partialorder %v842, 0.01
      %vm973 = vcmp.gt.f32.partialorder %v847, 0.01
      %vm974 = vcmp.gt.f32.partialorder %v852, 0.01
      %vm975 = vcmp.gt.f32.partialorder %v857, 0.01
      %vm976 = vcmp.gt.f32.partialorder %v862, 0.01
      %vm977 = vcmp.gt.f32.partialorder %v867, 0.01
      %vm978 = vcmp.gt.f32.partialorder %v872, 0.01
      %vm979 = vcmp.gt.f32.partialorder %v877, 0.01
      %vm980 = vcmp.gt.f32.partialorder %v882, 0.01
      %vm981 = vcmp.gt.f32.partialorder %v887, 0.01
      %vm982 = vcmp.gt.f32.partialorder %v892, 0.01
      %vm983 = vcmp.gt.f32.partialorder %v897, 0.01
      %vm984 = vcmp.gt.f32.partialorder %v902, 0.01
      %vm985 = vcmp.gt.f32.partialorder %v907, 0.01
      %vm986 = vcmp.gt.f32.partialorder %v912, 0.01
      %vm987 = vcmp.gt.f32.partialorder %v917, 0.01
      %vm988 = vcmp.gt.f32.partialorder %v922, 0.01
      %vm989 = vcmp.gt.f32.partialorder %v927, 0.01
      %vm990 = vcmp.gt.f32.partialorder %v932, 0.01
      %vm991 = vcmp.gt.f32.partialorder %v937, 0.01
      %vm992 = vcmp.gt.f32.partialorder %v942, 0.01
      %vm993 = vcmp.gt.f32.partialorder %v947, 0.01
      %vm994 = vcmp.gt.f32.partialorder %v952, 0.01
      %vm995 = vcmp.gt.f32.partialorder %v957, 0.01
      %vm996 = vcmp.gt.f32.partialorder %v962, 0.01
      %v997 = vsub.f32 %v807, 0.01
      %v998 = vsub.f32 %v812, 0.01
      %v999 = vsub.f32 %v817, 0.01
      %v1000 = vsub.f32 %v822, 0.01
      %v1001 = vsub.f32 %v827, 0.01
      %v1002 = vsub.f32 %v832, 0.01
      %v1003 = vsub.f32 %v837, 0.01
      %v1004 = vsub.f32 %v842, 0.01
      %v1005 = vsub.f32 %v847, 0.01
      %v1006 = vsub.f32 %v852, 0.01
      %v1007 = vsub.f32 %v857, 0.01
      %v1008 = vsub.f32 %v862, 0.01
      %v1009 = vsub.f32 %v867, 0.01
      %v1010 = vsub.f32 %v872, 0.01
      %v1011 = vsub.f32 %v877, 0.01
      %v1012 = vsub.f32 %v882, 0.01
      %v1013 = vsub.f32 %v887, 0.01
      %v1014 = vsub.f32 %v892, 0.01
      %v1015 = vsub.f32 %v897, 0.01
      %v1016 = vsub.f32 %v902, 0.01
      %v1017 = vsub.f32 %v907, 0.01
      %v1018 = vsub.f32 %v912, 0.01
      %v1019 = vsub.f32 %v917, 0.01
      %v1020 = vsub.f32 %v922, 0.01
      %v1021 = vsub.f32 %v927, 0.01
      %v1022 = vsub.f32 %v932, 0.01
      %v1023 = vsub.f32 %v937, 0.01
      %v1024 = vsub.f32 %v942, 0.01
      %v1025 = vsub.f32 %v947, 0.01
      %v1026 = vsub.f32 %v952, 0.01
      %v1027 = vsub.f32 %v957, 0.01
      %v1028 = vsub.f32 %v962, 0.01
      %vm1029 = vcmp.lt.f32.partialorder %v807, -0.01
      %vm1030 = vcmp.lt.f32.partialorder %v812, -0.01
      %vm1031 = vcmp.lt.f32.partialorder %v817, -0.01
      %vm1032 = vcmp.lt.f32.partialorder %v822, -0.01
      %vm1033 = vcmp.lt.f32.partialorder %v827, -0.01
      %vm1034 = vcmp.lt.f32.partialorder %v832, -0.01
      %vm1035 = vcmp.lt.f32.partialorder %v837, -0.01
      %vm1036 = vcmp.lt.f32.partialorder %v842, -0.01
      %vm1037 = vcmp.lt.f32.partialorder %v847, -0.01
      %vm1038 = vcmp.lt.f32.partialorder %v852, -0.01
      %vm1039 = vcmp.lt.f32.partialorder %v857, -0.01
      %vm1040 = vcmp.lt.f32.partialorder %v862, -0.01
      %vm1041 = vcmp.lt.f32.partialorder %v867, -0.01
      %vm1042 = vcmp.lt.f32.partialorder %v872, -0.01
      %vm1043 = vcmp.lt.f32.partialorder %v877, -0.01
      %vm1044 = vcmp.lt.f32.partialorder %v882, -0.01
      %vm1045 = vcmp.lt.f32.partialorder %v887, -0.01
      %vm1046 = vcmp.lt.f32.partialorder %v892, -0.01
      %vm1047 = vcmp.lt.f32.partialorder %v897, -0.01
      %vm1048 = vcmp.lt.f32.partialorder %v902, -0.01
      %vm1049 = vcmp.lt.f32.partialorder %v907, -0.01
      %vm1050 = vcmp.lt.f32.partialorder %v912, -0.01
      %vm1051 = vcmp.lt.f32.partialorder %v917, -0.01
      %vm1052 = vcmp.lt.f32.partialorder %v922, -0.01
      %vm1053 = vcmp.lt.f32.partialorder %v927, -0.01
      %vm1054 = vcmp.lt.f32.partialorder %v932, -0.01
      %vm1055 = vcmp.lt.f32.partialorder %v937, -0.01
      %vm1056 = vcmp.lt.f32.partialorder %v942, -0.01
      %vm1057 = vcmp.lt.f32.partialorder %v947, -0.01
      %vm1058 = vcmp.lt.f32.partialorder %v952, -0.01
      %vm1059 = vcmp.lt.f32.partialorder %v957, -0.01
      %vm1060 = vcmp.lt.f32.partialorder %v962, -0.01
      %v1061 = vadd.f32 %v807, 0.01
      %v1062 = vadd.f32 %v812, 0.01
      %v1063 = vadd.f32 %v817, 0.01
      %v1064 = vadd.f32 %v822, 0.01
      %v1065 = vadd.f32 %v827, 0.01
      %v1066 = vadd.f32 %v832, 0.01
      %v1067 = vadd.f32 %v837, 0.01
      %v1068 = vadd.f32 %v842, 0.01
      %v1069 = vadd.f32 %v847, 0.01
      %v1070 = vadd.f32 %v852, 0.01
      %v1071 = vadd.f32 %v857, 0.01
      %v1072 = vadd.f32 %v862, 0.01
      %v1073 = vadd.f32 %v867, 0.01
      %v1074 = vadd.f32 %v872, 0.01
      %v1075 = vadd.f32 %v877, 0.01
      %v1076 = vadd.f32 %v882, 0.01
      %v1077 = vadd.f32 %v887, 0.01
      %v1078 = vadd.f32 %v892, 0.01
      %v1079 = vadd.f32 %v897, 0.01
      %v1080 = vadd.f32 %v902, 0.01
      %v1081 = vadd.f32 %v907, 0.01
      %v1082 = vadd.f32 %v912, 0.01
      %v1083 = vadd.f32 %v917, 0.01
      %v1084 = vadd.f32 %v922, 0.01
      %v1085 = vadd.f32 %v927, 0.01
      %v1086 = vadd.f32 %v932, 0.01
      %v1087 = vadd.f32 %v937, 0.01
      %v1088 = vadd.f32 %v942, 0.01
      %v1089 = vadd.f32 %v947, 0.01
      %v1090 = vadd.f32 %v952, 0.01
      %v1091 = vadd.f32 %v957, 0.01
      %v1092 = vadd.f32 %v962, 0.01
      %v1093 = vsel %vm1029, %v1061, 0.0
      %v1094 = vsel %vm1030, %v1062, 0.0
      %v1095 = vsel %vm1031, %v1063, 0.0
      %v1096 = vsel %vm1032, %v1064, 0.0
      %v1097 = vsel %vm1033, %v1065, 0.0
      %v1098 = vsel %vm1034, %v1066, 0.0
      %v1099 = vsel %vm1035, %v1067, 0.0
      %v1100 = vsel %vm1036, %v1068, 0.0
      %v1101 = vsel %vm1037, %v1069, 0.0
      %v1102 = vsel %vm1038, %v1070, 0.0
      %v1103 = vsel %vm1039, %v1071, 0.0
      %v1104 = vsel %vm1040, %v1072, 0.0
      %v1105 = vsel %vm1041, %v1073, 0.0
      %v1106 = vsel %vm1042, %v1074, 0.0
      %v1107 = vsel %vm1043, %v1075, 0.0
      %v1108 = vsel %vm1044, %v1076, 0.0
      %v1109 = vsel %vm1045, %v1077, 0.0
      %v1110 = vsel %vm1046, %v1078, 0.0
      %v1111 = vsel %vm1047, %v1079, 0.0
      %v1112 = vsel %vm1048, %v1080, 0.0
      %v1113 = vsel %vm1049, %v1081, 0.0
      %v1114 = vsel %vm1050, %v1082, 0.0
      %v1115 = vsel %vm1051, %v1083, 0.0
      %v1116 = vsel %vm1052, %v1084, 0.0
      %v1117 = vsel %vm1053, %v1085, 0.0
      %v1118 = vsel %vm1054, %v1086, 0.0
      %v1119 = vsel %vm1055, %v1087, 0.0
      %v1120 = vsel %vm1056, %v1088, 0.0
      %v1121 = vsel %vm1057, %v1089, 0.0
      %v1122 = vsel %vm1058, %v1090, 0.0
      %v1123 = vsel %vm1059, %v1091, 0.0
      %v1124 = vsel %vm1060, %v1092, 0.0
      %v1125 = vsel %vm965, %v997, %v1093
      %v1126 = vsel %vm966, %v998, %v1094
      %v1127 = vsel %vm967, %v999, %v1095
      %v1128 = vsel %vm968, %v1000, %v1096
      %v1129 = vsel %vm969, %v1001, %v1097
      %v1130 = vsel %vm970, %v1002, %v1098
      %v1131 = vsel %vm971, %v1003, %v1099
      %v1132 = vsel %vm972, %v1004, %v1100
      %v1133 = vsel %vm973, %v1005, %v1101
      %v1134 = vsel %vm974, %v1006, %v1102
      %v1135 = vsel %vm975, %v1007, %v1103
      %v1136 = vsel %vm976, %v1008, %v1104
      %v1137 = vsel %vm977, %v1009, %v1105
      %v1138 = vsel %vm978, %v1010, %v1106
      %v1139 = vsel %vm979, %v1011, %v1107
      %v1140 = vsel %vm980, %v1012, %v1108
      %v1141 = vsel %vm981, %v1013, %v1109
      %v1142 = vsel %vm982, %v1014, %v1110
      %v1143 = vsel %vm983, %v1015, %v1111
      %v1144 = vsel %vm984, %v1016, %v1112
      %v1145 = vsel %vm985, %v1017, %v1113
      %v1146 = vsel %vm986, %v1018, %v1114
      %v1147 = vsel %vm987, %v1019, %v1115
      %v1148 = vsel %vm988, %v1020, %v1116
      %v1149 = vsel %vm989, %v1021, %v1117
      %v1150 = vsel %vm990, %v1022, %v1118
      %v1151 = vsel %vm991, %v1023, %v1119
      %v1152 = vsel %vm992, %v1024, %v1120
      %v1153 = vsel %vm993, %v1025, %v1121
      %v1154 = vsel %vm994, %v1026, %v1122
      %v1155 = vsel %vm995, %v1027, %v1123
      %v1156 = vsel %vm996, %v1028, %v1124
      %1157 = vst.msk [vmem:[%s226] sm:$0xff] %vm275, %v1125
      %1158 = vst.msk [vmem:[%s226 + $0x8] sm:$0xff] %vm275, %v1126
      %1159 = vst.msk [vmem:[%s226 + $0x10] sm:$0xff] %vm275, %v1127
      %1160 = vst.msk [vmem:[%s226 + $0x18] sm:$0xff] %vm275, %v1128
      %1161 = vst.msk [vmem:[%s226 + $0x20] sm:$0xff] %vm275, %v1129
      %1162 = vst.msk [vmem:[%s226 + $0x28] sm:$0xff] %vm275, %v1130
      %1163 = vst.msk [vmem:[%s226 + $0x30] sm:$0xff] %vm275, %v1131
      %1164 = vst.msk [vmem:[%s226 + $0x38] sm:$0xff] %vm275, %v1132
      %1165 = vst.msk [vmem:[%s226 + $0x40] sm:$0xff] %vm275, %v1133
      %1166 = vst.msk [vmem:[%s226 + $0x48] sm:$0xff] %vm275, %v1134
      %1167 = vst.msk [vmem:[%s226 + $0x50] sm:$0xff] %vm275, %v1135
      %1168 = vst.msk [vmem:[%s226 + $0x58] sm:$0xff] %vm275, %v1136
      %1169 = vst.msk [vmem:[%s226 + $0x60] sm:$0xff] %vm275, %v1137
      %1170 = vst.msk [vmem:[%s226 + $0x68] sm:$0xff] %vm275, %v1138
      %1171 = vst.msk [vmem:[%s226 + $0x70] sm:$0xff] %vm275, %v1139
      %1172 = vst.msk [vmem:[%s226 + $0x78] sm:$0xff] %vm275, %v1140
      %1173 = vst.msk [vmem:[%s226 + $0x80] sm:$0xff] %vm275, %v1141
      %1174 = vst.msk [vmem:[%s226 + $0x88] sm:$0xff] %vm275, %v1142
      %1175 = vst.msk [vmem:[%s226 + $0x90] sm:$0xff] %vm275, %v1143
      %1176 = vst.msk [vmem:[%s226 + $0x98] sm:$0xff] %vm275, %v1144
      %1177 = vst.msk [vmem:[%s226 + $0xa0] sm:$0xff] %vm275, %v1145
      %1178 = vst.msk [vmem:[%s226 + $0xa8] sm:$0xff] %vm275, %v1146
      %1179 = vst.msk [vmem:[%s226 + $0xb0] sm:$0xff] %vm275, %v1147
      %1180 = vst.msk [vmem:[%s226 + $0xb8] sm:$0xff] %vm275, %v1148
      %1181 = vst.msk [vmem:[%s226 + $0xc0] sm:$0xff] %vm275, %v1149
      %1182 = vst.msk [vmem:[%s226 + $0xc8] sm:$0xff] %vm275, %v1150
      %1183 = vst.msk [vmem:[%s226 + $0xd0] sm:$0xff] %vm275, %v1151
      %1184 = vst.msk [vmem:[%s226 + $0xd8] sm:$0xff] %vm275, %v1152
      %1185 = vst.msk [vmem:[%s226 + $0xe0] sm:$0xff] %vm275, %v1153
      %1186 = vst.msk [vmem:[%s226 + $0xe8] sm:$0xff] %vm275, %v1154
      %1187 = vst.msk [vmem:[%s226 + $0xf0] sm:$0xff] %vm275, %v1155
      %1188 = vst.msk [vmem:[%s226 + $0xf8] sm:$0xff] %vm275, %v1156
      %s1189 = smul.u32 32, %s16
      %p1190 = scmp.lt.s32.totalorder %s1189, 63
      %s1191 = scalar_select %p1190, %s1189, 63
      %s1192 = smul.addr %s1191, 8
      %s1193 = scalar_lea.vmem %s5, %s1192
      // Predicated region
      $region41: #{feature_extractor_forward.11} parent=39 // pred_check
        %p1194 = pneg %p144
      $region42: #{feature_extractor_forward.11} parent=39 // pred_check_branch
        %1196 = sbr.rel (%p1194) target = $region44
      $region43: #{feature_extractor_forward.11} parent=39 // pred_region
        %s1197 = smul.u32 32, %s16
      $region44: #{feature_extractor_forward.11} parent=39 // pred_fallthru
        _
    $region40: #{feature_extractor_forward.11} parent=5 // pred_fallthru
      _
    %p1198 = scmp.le.s32.totalorder 2, %s11
    // Predicated region
    $region45: #{feature_extractor_forward.11} parent=5 // pred_check
      %p1199 = pneg %p1198
    $region46: #{feature_extractor_forward.11} parent=5 // pred_check_branch
      %1201 = sbr.rel (%p1199) target = $region48
    $region47: #{feature_extractor_forward.11} parent=5 // pred_region
      %s1202 = ssub.s32 %s11, 2
      // Predicated region
      $region49: #{feature_extractor_forward.11} parent=47 // pred_check
        %p1203 = pneg %p150
      $region50: #{feature_extractor_forward.11} parent=47 // pred_check_branch
        %1205 = sbr.rel (%p1203) target = $region52
      $region51: #{feature_extractor_forward.11} parent=47 // pred_region
        %s1206 = smul.u32 32, %s17
        %p1207 = scmp.lt.s32.totalorder %s1206, 63
        %s1208 = scalar_select %p1207, %s1206, 63
        %s1209 = smul.addr %s1208, 8
        %s1210 = scalar_lea.vmem %s5, %s1209
      $region52: #{feature_extractor_forward.11} parent=47 // pred_fallthru
        _
    $region48: #{feature_extractor_forward.11} parent=5 // pred_fallthru
      _
  $region6: #{feature_extractor_forward.11} parent=0 // loop_footer
    %s15 = sadd.s32 1, %s11
  $region7: #{feature_extractor_forward.11} parent=0 // loop_footer_branch
    %10 = sbr.rel target = $region3
  $region8: #{feature_extractor_forward.11} parent=0 // loop_exit
    _

// kernel: feature_extractor_forward.7
$region0: #{feature_extractor_forward.7}
  #allocation0 [shape = 'u32[]', space=smem, size = 0x4, offset = 0x4, fixed_abs, tag = 'smem constant byte address 0x4 - core index']
  #allocation1 [shape = 'u32[144,128]{1,0:T(1,128)}', space=vmem, size = 0x12000, scoped, tag = 'internal scratch']
  %s0 = inlined_call_operand.vmem [shape: f32[512,32], index: 0, kind: input, shape index: {}]
  %s1 = inlined_call_operand.vmem [shape: f32[32,32], index: 1, kind: input, shape index: {}]
  %s2 = inlined_call_operand.vmem [shape: f32[1,32], index: 2, kind: input, shape index: {}]
  %s3 = inlined_call_operand.hbm [shape: f32[512,32], index: 3, kind: output, shape index: {}]
  %s4 = sld [smem:[#allocation0]]
  $region45: #{feature_extractor_forward.7} parent=0
    _
  %s6 = ssub.s32 1, %s4
  %s7 = scalar_select 0, %s6, %s4
  $region1: #{feature_extractor_forward.7} parent=0
    #allocation2 [shape = 'u8[262144]{0}', space=vmem, size = 0x40000, scoped, tag = 'output window, operand 0']
    #allocation3 [shape = 's32[2]{0}', space=sflag, size = 0x8, scoped, tag = 'scoped memory for feature_extractor_forward.7']
    %8 = vsyncpa [#allocation3], 0
    %s9 = scalar_lea.sflag [#allocation3], 1
    %10 = vsyncpa %s9, 0
    loop: start=0, step=1, limit=4
    $region2: #{feature_extractor_forward.7} parent=1 // loop_pre_header
      _
    $region3: #{feature_extractor_forward.7} parent=1 // loop_header
      %s12 = sphi 0, %s16
      %p13 = scmp.ge.s32.totalorder %s12, 4
      %s22 = sphi 0, %s24
      %s25 = sphi 0, %s22
      %s26 = sphi 0, %s25
      %s42 = sphi 0, %s26
      %s46 = sphi 0, %s46
      %s48 = sphi 0, %s46
      %s49 = sphi 0, %s48
      %s63 = sphi 0, %s49
      %s67 = sphi 0, %s67
      %s69 = sphi 0, %s67
      %s70 = sphi 0, %s69
      %s84 = sphi 0, %s70
      %s90 = sphi 0, %s92
      %s93 = sphi 0, %s90
      %s94 = sphi 0, %s93
      %s110 = sphi 0, %s94
    $region4: #{feature_extractor_forward.7} parent=1 // loop_header_branch
      %15 = sbr.rel (%p13) target = $region8
    $region5: #{feature_extractor_forward.7} parent=1 // loop_body
      %s17 = ssub.s32 %s12, 1
      %s18 = ssub.s32 %s12, 2
      %s19 = sadd.s32 %s12, 1
      %s20 = ssub.s32 %s12, %s19
      %p21 = scmp.eq.s32.totalorder %s20, 0
      %s23 = sadd.s32 %s22, 1
      %s24 = scalar_select %p21, %s22, %s23
      %p27 = pneg %p21
      %p28 = scmp.eq.s32.totalorder %s12, 1
      %p29 = por %p27, %p28
      %p30 = scmp.ne.s32.totalorder %s22, %s25
      %p31 = scmp.eq.s32.totalorder %s12, 0
      %p32 = por %p30, %p31
      %p33 = scmp.ne.s32.totalorder %s22, %s25
      %p34 = scmp.eq.s32.totalorder %s17, 1
      %p35 = por %p33, %p34
      %p36 = scmp.ne.s32.totalorder %s25, %s26
      %p37 = scmp.eq.s32.totalorder %s17, 0
      %p38 = por %p36, %p37
      %p39 = scmp.ne.s32.totalorder %s25, %s26
      %p40 = scmp.eq.s32.totalorder %s18, 1
      %p41 = por %p39, %p40
      %p43 = scmp.ne.s32.totalorder %s26, %s42
      %p44 = scmp.eq.s32.totalorder %s18, 0
      %p45 = por %p43, %p44
      %s47 = sadd.s32 %s46, 1
      %p50 = scmp.eq.s32.totalorder %s12, 1
      %p51 = scmp.ne.s32.totalorder %s46, %s48
      %p52 = scmp.eq.s32.totalorder %s12, 0
      %p53 = por %p51, %p52
      %p54 = scmp.ne.s32.totalorder %s46, %s48
      %p55 = scmp.eq.s32.totalorder %s17, 1
      %p56 = por %p54, %p55
      %p57 = scmp.ne.s32.totalorder %s48, %s49
      %p58 = scmp.eq.s32.totalorder %s17, 0
      %p59 = por %p57, %p58
      %p60 = scmp.ne.s32.totalorder %s48, %s49
      %p61 = scmp.eq.s32.totalorder %s18, 1
      %p62 = por %p60, %p61
      %p64 = scmp.ne.s32.totalorder %s49, %s63
      %p65 = scmp.eq.s32.totalorder %s18, 0
      %p66 = por %p64, %p65
      %s68 = sadd.s32 %s67, 1
      %p71 = scmp.eq.s32.totalorder %s12, 1
      %p72 = scmp.ne.s32.totalorder %s67, %s69
      %p73 = scmp.eq.s32.totalorder %s12, 0
      %p74 = por %p72, %p73
      %p75 = scmp.ne.s32.totalorder %s67, %s69
      %p76 = scmp.eq.s32.totalorder %s17, 1
      %p77 = por %p75, %p76
      %p78 = scmp.ne.s32.totalorder %s69, %s70
      %p79 = scmp.eq.s32.totalorder %s17, 0
      %p80 = por %p78, %p79
      %p81 = scmp.ne.s32.totalorder %s69, %s70
      %p82 = scmp.eq.s32.totalorder %s18, 1
      %p83 = por %p81, %p82
      %p85 = scmp.ne.s32.totalorder %s70, %s84
      %p86 = scmp.eq.s32.totalorder %s18, 0
      %p87 = por %p85, %p86
      %s88 = ssub.s32 %s12, %s19
      %p89 = scmp.eq.s32.totalorder %s88, 0
      %s91 = sadd.s32 %s90, 1
      %s92 = scalar_select %p89, %s90, %s91
      %p95 = pneg %p89
      %p96 = scmp.eq.s32.totalorder %s12, 1
      %p97 = por %p95, %p96
      %p98 = scmp.ne.s32.totalorder %s90, %s93
      %p99 = scmp.eq.s32.totalorder %s12, 0
      %p100 = por %p98, %p99
      %p101 = scmp.ne.s32.totalorder %s90, %s93
      %p102 = scmp.eq.s32.totalorder %s17, 1
      %p103 = por %p101, %p102
      %p104 = scmp.ne.s32.totalorder %s93, %s94
      %p105 = scmp.eq.s32.totalorder %s17, 0
      %p106 = por %p104, %p105
      %p107 = scmp.ne.s32.totalorder %s93, %s94
      %p108 = scmp.eq.s32.totalorder %s18, 1
      %p109 = por %p107, %p108
      %p111 = scmp.ne.s32.totalorder %s94, %s110
      %p112 = scmp.eq.s32.totalorder %s18, 0
      %p113 = por %p111, %p112
      %p114 = scmp.le.s32.totalorder 1, %s12
      %p115 = scmp.lt.s32.totalorder %s12, 3
      %p116 = pnand %p114, %p115
      %p117 = pneg %p116
      // Predicated region
      $region9: #{feature_extractor_forward.7} parent=5 // pred_check
        _
      $region10: #{feature_extractor_forward.7} parent=5 // pred_check_branch
        %119 = sbr.rel (%p116) target = $region12
      $region11: #{feature_extractor_forward.7} parent=5 // pred_region
        %s120 = ssub.s32 %s12, 1
        // Predicated region
        $region13: #{feature_extractor_forward.7} parent=11 // pred_check
          %p121 = pneg %p59
        $region14: #{feature_extractor_forward.7} parent=11 // pred_check_branch
          %123 = sbr.rel (%p121) target = $region16
        $region15: #{feature_extractor_forward.7} parent=11 // pred_region
          _
        $region16: #{feature_extractor_forward.7} parent=11 // pred_fallthru
          _
        // Predicated region
        $region17: #{feature_extractor_forward.7} parent=11 // pred_check
          %p124 = pneg %p80
        $region18: #{feature_extractor_forward.7} parent=11 // pred_check_branch
          %126 = sbr.rel (%p124) target = $region20
        $region19: #{feature_extractor_forward.7} parent=11 // pred_region
          _
        $region20: #{feature_extractor_forward.7} parent=11 // pred_fallthru
          _
      $region12: #{feature_extractor_forward.7} parent=5 // pred_fallthru
        _
      %p127 = scmp.lt.s32.totalorder %s12, 2
      // Predicated region
      $region21: #{feature_extractor_forward.7} parent=5 // pred_check
        %p128 = pneg %p127
      $region22: #{feature_extractor_forward.7} parent=5 // pred_check_branch
        %130 = sbr.rel (%p128) target = $region24
      $region23: #{feature_extractor_forward.7} parent=5 // pred_region
        // Predicated region
        $region25: #{feature_extractor_forward.7} parent=23 // pred_check
          %p131 = pneg %p32
        $region26: #{feature_extractor_forward.7} parent=23 // pred_check_branch
          %133 = sbr.rel (%p131) target = $region28
        $region27: #{feature_extractor_forward.7} parent=23 // pred_region
          %s134 = smul.u32 32, %s12
          %p135 = scmp.lt.s32.totalorder %s134, 63
          %s136 = scalar_select %p135, %s134, 63
          %s137 = smul.addr %s136, 8
          %s138 = scalar_lea.vmem %s0, %s137
          %s139 = smul.u32 32, %s12
        $region28: #{feature_extractor_forward.7} parent=23 // pred_fallthru
          _
      $region24: #{feature_extractor_forward.7} parent=5 // pred_fallthru
        _
      %p140 = scmp.le.s32.totalorder 1, %s12
      %p141 = scmp.lt.s32.totalorder %s12, 3
      %p142 = pnand %p140, %p141
      %p143 = pneg %p142
      // Predicated region
      $region29: #{feature_extractor_forward.7} parent=5 // pred_check
        _
      $region30: #{feature_extractor_forward.7} parent=5 // pred_check_branch
        %145 = sbr.rel (%p142) target = $region32
      $region31: #{feature_extractor_forward.7} parent=5 // pred_region
        %s146 = ssub.s32 %s12, 1
        %s147 = smul.u32 32, %s17
        %p148 = scmp.lt.s32.totalorder %s147, 63
        %s149 = scalar_select %p148, %s147, 63
        %s150 = smul.addr %s149, 8
        %s151 = scalar_lea.vmem %s0, %s150
        %p152 = pneg %p38
        %p153 = pneg %p35
        %p154 = pneg %p59
        %p155 = pneg %p56
        %p156 = pneg %p80
        %p157 = pneg %p77
        %p158 = pneg %p106
        %p159 = pneg %p103
        %s160 = sand.u32 %s93, 1
        %s161 = scalar_lea.sflag [#allocation3], %s160
        %s162 = sand.u32 %s93, 1
        %s163 = smul.addr %s162, 256
        %s164 = scalar_lea.vmem [#allocation2], %s163
        %s165 = smul.u32 32, %s17
        %p166 = scmp.lt.s32.totalorder %s165, 63
        %s167 = scalar_select %p166, %s165, 63
        %s168 = smul.addr %s167, 8
        %s169 = scalar_lea.vmem %s0, %s168
        %s170 = smul.u32 32, %s17
        %s171 = smul.u32 32, %s17
        %v172 = vld [vmem:[%s169] sm:$0xff]
        %v173 = vld [vmem:[%s169 + $0x8] sm:$0xff]
        %v174 = vld [vmem:[%s169 + $0x10] sm:$0xff]
        %v175 = vld [vmem:[%s169 + $0x18] sm:$0xff]
        %v176 = vld [vmem:[%s169 + $0x20] sm:$0xff]
        %v177 = vld [vmem:[%s169 + $0x28] sm:$0xff]
        %v178 = vld [vmem:[%s169 + $0x30] sm:$0xff]
        %v179 = vld [vmem:[%s169 + $0x38] sm:$0xff]
        %v180 = vld [vmem:[%s169 + $0x40] sm:$0xff]
        %v181 = vld [vmem:[%s169 + $0x48] sm:$0xff]
        %v182 = vld [vmem:[%s169 + $0x50] sm:$0xff]
        %v183 = vld [vmem:[%s169 + $0x58] sm:$0xff]
        %v184 = vld [vmem:[%s169 + $0x60] sm:$0xff]
        %v185 = vld [vmem:[%s169 + $0x68] sm:$0xff]
        %v186 = vld [vmem:[%s169 + $0x70] sm:$0xff]
        %v187 = vld [vmem:[%s169 + $0x78] sm:$0xff]
        %v188 = vld [vmem:[%s169 + $0x80] sm:$0xff]
        %v189 = vld [vmem:[%s169 + $0x88] sm:$0xff]
        %v190 = vld [vmem:[%s169 + $0x90] sm:$0xff]
        %v191 = vld [vmem:[%s169 + $0x98] sm:$0xff]
        %v192 = vld [vmem:[%s169 + $0xa0] sm:$0xff]
        %v193 = vld [vmem:[%s169 + $0xa8] sm:$0xff]
        %v194 = vld [vmem:[%s169 + $0xb0] sm:$0xff]
        %v195 = vld [vmem:[%s169 + $0xb8] sm:$0xff]
        %v196 = vld [vmem:[%s169 + $0xc0] sm:$0xff]
        %v197 = vld [vmem:[%s169 + $0xc8] sm:$0xff]
        %v198 = vld [vmem:[%s169 + $0xd0] sm:$0xff]
        %v199 = vld [vmem:[%s169 + $0xd8] sm:$0xff]
        %v200 = vld [vmem:[%s169 + $0xe0] sm:$0xff]
        %v201 = vld [vmem:[%s169 + $0xe8] sm:$0xff]
        %v202 = vld [vmem:[%s169 + $0xf0] sm:$0xff]
        %v203 = vld [vmem:[%s169 + $0xf8] sm:$0xff]
        %v204 = vld [vmem:[%s1] sm:$0xff]
        %v205 = vld [vmem:[%s1 + $0x8] sm:$0xff]
        %v206 = vld [vmem:[%s1 + $0x10] sm:$0xff]
        %v207 = vld [vmem:[%s1 + $0x18] sm:$0xff]
        %v208 = vld [vmem:[%s2] sm:$0x1]
        %v210 = vlaneseq
        %v211 = vshrl.u32 %v210, 7
        %v212 = vsub.s32 0, %v211
        %v213 = vrot.slane %v208, %v212
        %vm215 = vcmask 261120
        %v217 = vsel %vm215, %v172, 0
        %v220 = vsel %vm215, %v173, 0
        %v223 = vsel %vm215, %v174, 0
        %v226 = vsel %vm215, %v175, 0
        %v229 = vsel %vm215, %v176, 0
        %v232 = vsel %vm215, %v177, 0
        %v235 = vsel %vm215, %v178, 0
        %v238 = vsel %vm215, %v179, 0
        %v241 = vsel %vm215, %v180, 0
        %v244 = vsel %vm215, %v181, 0
        %v247 = vsel %vm215, %v182, 0
        %v250 = vsel %vm215, %v183, 0
        %v253 = vsel %vm215, %v184, 0
        %v256 = vsel %vm215, %v185, 0
        %v259 = vsel %vm215, %v186, 0
        %v262 = vsel %vm215, %v187, 0
        %v265 = vsel %vm215, %v188, 0
        %v268 = vsel %vm215, %v189, 0
        %v271 = vsel %vm215, %v190, 0
        %v274 = vsel %vm215, %v191, 0
        %v277 = vsel %vm215, %v192, 0
        %v280 = vsel %vm215, %v193, 0
        %v283 = vsel %vm215, %v194, 0
        %v286 = vsel %vm215, %v195, 0
        %v289 = vsel %vm215, %v196, 0
        %v292 = vsel %vm215, %v197, 0
        %v295 = vsel %vm215, %v198, 0
        %v298 = vsel %vm215, %v199, 0
        %v301 = vsel %vm215, %v200, 0
        %v304 = vsel %vm215, %v201, 0
        %v307 = vsel %vm215, %v202, 0
        %v310 = vsel %vm215, %v203, 0
        %312 = vmatprep.subr.mxu0 0.0
        %313 = vmatpush1.msra.mxu0 0.0
        %314 = vmatprep.subr.mxu0 0.0
        %315 = vmatpush1.msra.mxu0 0.0
        %316 = vmatprep.subr.mxu0 0.0
        %317 = vmatpush1.msra.mxu0 0.0
        %318 = vmatprep.subr.mxu0 0.0
        %319 = vmatpush1.msra.mxu0 0.0
        %320 = vmatprep.subr.mxu0 0.0
        %321 = vmatpush1.msra.mxu0 0.0
        %322 = vmatprep.subr.mxu0 0.0
        %323 = vmatpush1.msra.mxu0 0.0
        %324 = vmatprep.subr.mxu0 0.0
        %325 = vmatpush1.msra.mxu0 0.0
        %326 = vmatprep.subr.mxu0 0.0
        %327 = vmatpush1.msra.mxu0 0.0
        %328 = vmatprep.subr.mxu0 0.0
        %329 = vmatpush1.msra.mxu0 0.0
        %330 = vmatprep.subr.mxu0 0.0
        %331 = vmatpush1.msra.mxu0 0.0
        %332 = vmatprep.subr.mxu0 0.0
        %333 = vmatpush1.msra.mxu0 0.0
        %334 = vmatprep.subr.mxu0 0.0
        %335 = vmatpush1.msra.mxu0 0.0
        %336 = vmatprep.subr.mxu0 0.0
        %337 = vmatpush1.msra.mxu0 %v207
        %338 = vmatprep.subr.mxu0 0.0
        %339 = vmatpush1.msra.mxu0 %v206
        %340 = vmatprep.subr.mxu0 0.0
        %341 = vmatpush1.msra.mxu0 %v205
        %342 = vmatprep.subr.mxu0 0.0
        %343 = vmatpush1.msra.mxu0 %v204
        %344 = vmatprep.subr.mxu0 0.0
        %345 = vmatpush2.msra.mxu0 0.0
        %346 = vmatprep.subr.mxu0 0.0
        %347 = vmatpush2.msra.mxu0 0.0
        %348 = vmatprep.subr.mxu0 0.0
        %349 = vmatpush2.msra.mxu0 0.0
        %350 = vmatprep.subr.mxu0 0.0
        %351 = vmatpush2.msra.mxu0 0.0
        %352 = vmatprep.subr.mxu0 0.0
        %353 = vmatpush2.msra.mxu0 0.0
        %354 = vmatprep.subr.mxu0 0.0
        %355 = vmatpush2.msra.mxu0 0.0
        %356 = vmatprep.subr.mxu0 0.0
        %357 = vmatpush2.msra.mxu0 0.0
        %358 = vmatprep.subr.mxu0 0.0
        %359 = vmatpush2.msra.mxu0 0.0
        %360 = vmatprep.subr.mxu0 0.0
        %361 = vmatpush2.msra.mxu0 0.0
        %362 = vmatprep.subr.mxu0 0.0
        %363 = vmatpush2.msra.mxu0 0.0
        %364 = vmatprep.subr.mxu0 0.0
        %365 = vmatpush2.msra.mxu0 0.0
        %366 = vmatprep.subr.mxu0 0.0
        %367 = vmatpush2.msra.mxu0 0.0
        %368 = vmatprep.subr.mxu0 0.0
        %369 = vmatpush2.msra.mxu0 0.0
        %370 = vmatprep.subr.mxu0 0.0
        %371 = vmatpush2.msra.mxu0 0.0
        %372 = vmatprep.subr.mxu0 0.0
        %373 = vmatpush2.msra.mxu0 0.0
        %374 = vmatprep.subr.mxu0 0.0
        %375 = vmatpush2.msra.mxu0 0.0
        %376 = vmatprep.mubr.f32.mxu0 0.0
        %377 = vmatmul.mubr.f32.gmra.mxu0 %v217
        %v378 = vpop.f32.mrf.mxu0
        %v379 = vadd.f32 %v213, %v378
        %v380 = vpop.f32.mrf.mxu0
        %381 = vmatprep.mubr.f32.mxu0 0.0
        %382 = vmatmul.mubr.f32.gmra.mxu0 %v220
        %v383 = vpop.f32.mrf.mxu0
        %v384 = vadd.f32 %v213, %v383
        %v385 = vpop.f32.mrf.mxu0
        %386 = vmatprep.mubr.f32.mxu0 0.0
        %387 = vmatmul.mubr.f32.gmra.mxu0 %v223
        %v388 = vpop.f32.mrf.mxu0
        %v389 = vadd.f32 %v213, %v388
        %v390 = vpop.f32.mrf.mxu0
        %391 = vmatprep.mubr.f32.mxu0 0.0
        %392 = vmatmul.mubr.f32.gmra.mxu0 %v226
        %v393 = vpop.f32.mrf.mxu0
        %v394 = vadd.f32 %v213, %v393
        %v395 = vpop.f32.mrf.mxu0
        %396 = vmatprep.mubr.f32.mxu0 0.0
        %397 = vmatmul.mubr.f32.gmra.mxu0 %v229
        %v398 = vpop.f32.mrf.mxu0
        %v399 = vadd.f32 %v213, %v398
        %v400 = vpop.f32.mrf.mxu0
        %401 = vmatprep.mubr.f32.mxu0 0.0
        %402 = vmatmul.mubr.f32.gmra.mxu0 %v232
        %v403 = vpop.f32.mrf.mxu0
        %v404 = vadd.f32 %v213, %v403
        %v405 = vpop.f32.mrf.mxu0
        %406 = vmatprep.mubr.f32.mxu0 0.0
        %407 = vmatmul.mubr.f32.gmra.mxu0 %v235
        %v408 = vpop.f32.mrf.mxu0
        %v409 = vadd.f32 %v213, %v408
        %v410 = vpop.f32.mrf.mxu0
        %411 = vmatprep.mubr.f32.mxu0 0.0
        %412 = vmatmul.mubr.f32.gmra.mxu0 %v238
        %v413 = vpop.f32.mrf.mxu0
        %v414 = vadd.f32 %v213, %v413
        %v415 = vpop.f32.mrf.mxu0
        %416 = vmatprep.mubr.f32.mxu0 0.0
        %417 = vmatmul.mubr.f32.gmra.mxu0 %v241
        %v418 = vpop.f32.mrf.mxu0
        %v419 = vadd.f32 %v213, %v418
        %v420 = vpop.f32.mrf.mxu0
        %421 = vmatprep.mubr.f32.mxu0 0.0
        %422 = vmatmul.mubr.f32.gmra.mxu0 %v244
        %v423 = vpop.f32.mrf.mxu0
        %v424 = vadd.f32 %v213, %v423
        %v425 = vpop.f32.mrf.mxu0
        %426 = vmatprep.mubr.f32.mxu0 0.0
        %427 = vmatmul.mubr.f32.gmra.mxu0 %v247
        %v428 = vpop.f32.mrf.mxu0
        %v429 = vadd.f32 %v213, %v428
        %v430 = vpop.f32.mrf.mxu0
        %431 = vmatprep.mubr.f32.mxu0 0.0
        %432 = vmatmul.mubr.f32.gmra.mxu0 %v250
        %v433 = vpop.f32.mrf.mxu0
        %v434 = vadd.f32 %v213, %v433
        %v435 = vpop.f32.mrf.mxu0
        %436 = vmatprep.mubr.f32.mxu0 0.0
        %437 = vmatmul.mubr.f32.gmra.mxu0 %v253
        %v438 = vpop.f32.mrf.mxu0
        %v439 = vadd.f32 %v213, %v438
        %v440 = vpop.f32.mrf.mxu0
        %441 = vmatprep.mubr.f32.mxu0 0.0
        %442 = vmatmul.mubr.f32.gmra.mxu0 %v256
        %v443 = vpop.f32.mrf.mxu0
        %v444 = vadd.f32 %v213, %v443
        %v445 = vpop.f32.mrf.mxu0
        %446 = vmatprep.mubr.f32.mxu0 0.0
        %447 = vmatmul.mubr.f32.gmra.mxu0 %v259
        %v448 = vpop.f32.mrf.mxu0
        %v449 = vadd.f32 %v213, %v448
        %v450 = vpop.f32.mrf.mxu0
        %451 = vmatprep.mubr.f32.mxu0 0.0
        %452 = vmatmul.mubr.f32.gmra.mxu0 %v262
        %v453 = vpop.f32.mrf.mxu0
        %v454 = vadd.f32 %v213, %v453
        %v455 = vpop.f32.mrf.mxu0
        %456 = vmatprep.mubr.f32.mxu0 0.0
        %457 = vmatmul.mubr.f32.gmra.mxu0 %v265
        %v458 = vpop.f32.mrf.mxu0
        %v459 = vadd.f32 %v213, %v458
        %v460 = vpop.f32.mrf.mxu0
        %461 = vmatprep.mubr.f32.mxu0 0.0
        %462 = vmatmul.mubr.f32.gmra.mxu0 %v268
        %v463 = vpop.f32.mrf.mxu0
        %v464 = vadd.f32 %v213, %v463
        %v465 = vpop.f32.mrf.mxu0
        %466 = vmatprep.mubr.f32.mxu0 0.0
        %467 = vmatmul.mubr.f32.gmra.mxu0 %v271
        %v468 = vpop.f32.mrf.mxu0
        %v469 = vadd.f32 %v213, %v468
        %v470 = vpop.f32.mrf.mxu0
        %471 = vmatprep.mubr.f32.mxu0 0.0
        %472 = vmatmul.mubr.f32.gmra.mxu0 %v274
        %v473 = vpop.f32.mrf.mxu0
        %v474 = vadd.f32 %v213, %v473
        %v475 = vpop.f32.mrf.mxu0
        %476 = vmatprep.mubr.f32.mxu0 0.0
        %477 = vmatmul.mubr.f32.gmra.mxu0 %v277
        %v478 = vpop.f32.mrf.mxu0
        %v479 = vadd.f32 %v213, %v478
        %v480 = vpop.f32.mrf.mxu0
        %481 = vmatprep.mubr.f32.mxu0 0.0
        %482 = vmatmul.mubr.f32.gmra.mxu0 %v280
        %v483 = vpop.f32.mrf.mxu0
        %v484 = vadd.f32 %v213, %v483
        %v485 = vpop.f32.mrf.mxu0
        %486 = vmatprep.mubr.f32.mxu0 0.0
        %487 = vmatmul.mubr.f32.gmra.mxu0 %v283
        %v488 = vpop.f32.mrf.mxu0
        %v489 = vadd.f32 %v213, %v488
        %v490 = vpop.f32.mrf.mxu0
        %491 = vmatprep.mubr.f32.mxu0 0.0
        %492 = vmatmul.mubr.f32.gmra.mxu0 %v286
        %v493 = vpop.f32.mrf.mxu0
        %v494 = vadd.f32 %v213, %v493
        %v495 = vpop.f32.mrf.mxu0
        %496 = vmatprep.mubr.f32.mxu0 0.0
        %497 = vmatmul.mubr.f32.gmra.mxu0 %v289
        %v498 = vpop.f32.mrf.mxu0
        %v499 = vadd.f32 %v213, %v498
        %v500 = vpop.f32.mrf.mxu0
        %501 = vmatprep.mubr.f32.mxu0 0.0
        %502 = vmatmul.mubr.f32.gmra.mxu0 %v292
        %v503 = vpop.f32.mrf.mxu0
        %v504 = vadd.f32 %v213, %v503
        %v505 = vpop.f32.mrf.mxu0
        %506 = vmatprep.mubr.f32.mxu0 0.0
        %507 = vmatmul.mubr.f32.gmra.mxu0 %v295
        %v508 = vpop.f32.mrf.mxu0
        %v509 = vadd.f32 %v213, %v508
        %v510 = vpop.f32.mrf.mxu0
        %511 = vmatprep.mubr.f32.mxu0 0.0
        %512 = vmatmul.mubr.f32.gmra.mxu0 %v298
        %v513 = vpop.f32.mrf.mxu0
        %v514 = vadd.f32 %v213, %v513
        %v515 = vpop.f32.mrf.mxu0
        %516 = vmatprep.mubr.f32.mxu0 0.0
        %517 = vmatmul.mubr.f32.gmra.mxu0 %v301
        %v518 = vpop.f32.mrf.mxu0
        %v519 = vadd.f32 %v213, %v518
        %v520 = vpop.f32.mrf.mxu0
        %521 = vmatprep.mubr.f32.mxu0 0.0
        %522 = vmatmul.mubr.f32.gmra.mxu0 %v304
        %v523 = vpop.f32.mrf.mxu0
        %v524 = vadd.f32 %v213, %v523
        %v525 = vpop.f32.mrf.mxu0
        %526 = vmatprep.mubr.f32.mxu0 0.0
        %527 = vmatmul.mubr.f32.gmra.mxu0 %v307
        %v528 = vpop.f32.mrf.mxu0
        %v529 = vadd.f32 %v213, %v528
        %v530 = vpop.f32.mrf.mxu0
        %531 = vmatprep.mubr.f32.mxu0 0.0
        %532 = vmatmul.mubr.f32.gmra.mxu0 %v310
        %v533 = vpop.f32.mrf.mxu0
        %v534 = vadd.f32 %v213, %v533
        %v535 = vpop.f32.mrf.mxu0
        %536 = vdwg.mxu0
        %537 = vst.msk [vmem:[%s164] sm:$0xff] %vm215, %v379
        %538 = vst.msk [vmem:[%s164 + $0x8] sm:$0xff] %vm215, %v384
        %539 = vst.msk [vmem:[%s164 + $0x10] sm:$0xff] %vm215, %v389
        %540 = vst.msk [vmem:[%s164 + $0x18] sm:$0xff] %vm215, %v394
        %541 = vst.msk [vmem:[%s164 + $0x20] sm:$0xff] %vm215, %v399
        %542 = vst.msk [vmem:[%s164 + $0x28] sm:$0xff] %vm215, %v404
        %543 = vst.msk [vmem:[%s164 + $0x30] sm:$0xff] %vm215, %v409
        %544 = vst.msk [vmem:[%s164 + $0x38] sm:$0xff] %vm215, %v414
        %545 = vst.msk [vmem:[%s164 + $0x40] sm:$0xff] %vm215, %v419
        %546 = vst.msk [vmem:[%s164 + $0x48] sm:$0xff] %vm215, %v424
        %547 = vst.msk [vmem:[%s164 + $0x50] sm:$0xff] %vm215, %v429
        %548 = vst.msk [vmem:[%s164 + $0x58] sm:$0xff] %vm215, %v434
        %549 = vst.msk [vmem:[%s164 + $0x60] sm:$0xff] %vm215, %v439
        %550 = vst.msk [vmem:[%s164 + $0x68] sm:$0xff] %vm215, %v444
        %551 = vst.msk [vmem:[%s164 + $0x70] sm:$0xff] %vm215, %v449
        %552 = vst.msk [vmem:[%s164 + $0x78] sm:$0xff] %vm215, %v454
        %553 = vst.msk [vmem:[%s164 + $0x80] sm:$0xff] %vm215, %v459
        %554 = vst.msk [vmem:[%s164 + $0x88] sm:$0xff] %vm215, %v464
        %555 = vst.msk [vmem:[%s164 + $0x90] sm:$0xff] %vm215, %v469
        %556 = vst.msk [vmem:[%s164 + $0x98] sm:$0xff] %vm215, %v474
        %557 = vst.msk [vmem:[%s164 + $0xa0] sm:$0xff] %vm215, %v479
        %558 = vst.msk [vmem:[%s164 + $0xa8] sm:$0xff] %vm215, %v484
        %559 = vst.msk [vmem:[%s164 + $0xb0] sm:$0xff] %vm215, %v489
        %560 = vst.msk [vmem:[%s164 + $0xb8] sm:$0xff] %vm215, %v494
        %561 = vst.msk [vmem:[%s164 + $0xc0] sm:$0xff] %vm215, %v499
        %562 = vst.msk [vmem:[%s164 + $0xc8] sm:$0xff] %vm215, %v504
        %563 = vst.msk [vmem:[%s164 + $0xd0] sm:$0xff] %vm215, %v509
        %564 = vst.msk [vmem:[%s164 + $0xd8] sm:$0xff] %vm215, %v514
        %565 = vst.msk [vmem:[%s164 + $0xe0] sm:$0xff] %vm215, %v519
        %566 = vst.msk [vmem:[%s164 + $0xe8] sm:$0xff] %vm215, %v524
        %567 = vst.msk [vmem:[%s164 + $0xf0] sm:$0xff] %vm215, %v529
        %568 = vst.msk [vmem:[%s164 + $0xf8] sm:$0xff] %vm215, %v534
        %s569 = sand.u32 %s93, 1
        %s570 = scalar_lea.sflag [#allocation3], %s569
        %s571 = sand.u32 %s93, 1
        %s572 = smul.addr %s571, 256
        %s573 = scalar_lea.vmem [#allocation2], %s572
        // Predicated region
        $region33: #{feature_extractor_forward.7} parent=31 // pred_check
          %p574 = pneg %p103
        $region34: #{feature_extractor_forward.7} parent=31 // pred_check_branch
          %576 = sbr.rel (%p574) target = $region36
        $region35: #{feature_extractor_forward.7} parent=31 // pred_region
          %s577 = smul.u32 32, %s17
          %s579 = ssub.s32 4096, 4096
          %580 = vsyncadd %s570, %s579
          %s581 = smul.addr %s577, 128
          %s582 = scalar_lea.hbm %s3, %s581
          %s583 = sshll.u32 %s573, 4
          %s584 = int_to_ptr.vmem [resolvable:$true] %s583
          %589 = dma.vmem_to_hbm [thread:$0]  %s584, 4096, %s582, %s570, 128, 128, 8
        $region36: #{feature_extractor_forward.7} parent=31 // pred_fallthru
          _
      $region32: #{feature_extractor_forward.7} parent=5 // pred_fallthru
        _
      %p590 = scmp.le.s32.totalorder 2, %s12
      // Predicated region
      $region37: #{feature_extractor_forward.7} parent=5 // pred_check
        %p591 = pneg %p590
      $region38: #{feature_extractor_forward.7} parent=5 // pred_check_branch
        %593 = sbr.rel (%p591) target = $region40
      $region39: #{feature_extractor_forward.7} parent=5 // pred_region
        %s594 = ssub.s32 %s12, 2
        // Predicated region
        $region41: #{feature_extractor_forward.7} parent=39 // pred_check
          %p595 = pneg %p109
        $region42: #{feature_extractor_forward.7} parent=39 // pred_check_branch
          %597 = sbr.rel (%p595) target = $region44
        $region43: #{feature_extractor_forward.7} parent=39 // pred_region
          %s598 = sand.u32 %s94, 1
          %s599 = scalar_lea.sflag [#allocation3], %s598
          %s600 = sand.u32 %s94, 1
          %s601 = smul.addr %s600, 256
          %s602 = scalar_lea.vmem [#allocation2], %s601
          %603 = dma.done %s599, 4096
        $region44: #{feature_extractor_forward.7} parent=39 // pred_fallthru
          _
      $region40: #{feature_extractor_forward.7} parent=5 // pred_fallthru
        _
    $region6: #{feature_extractor_forward.7} parent=1 // loop_footer
      %s16 = sadd.s32 1, %s12
    $region7: #{feature_extractor_forward.7} parent=1 // loop_footer_branch
      %11 = sbr.rel target = $region3
    $region8: #{feature_extractor_forward.7} parent=1 // loop_exit
      _
    %604 = vsyncpa [#allocation3], 1
    %s605 = scalar_lea.sflag [#allocation3], 1
    %606 = vsyncpa %s605, 1

// kernel: feature_extractor_forward.8
$region0: #{feature_extractor_forward.8}
  #allocation0 [shape = 'u32[]', space=smem, size = 0x4, offset = 0x4, fixed_abs, tag = 'smem constant byte address 0x4 - core index']
  #allocation1 [shape = 'u32[144,128]{1,0:T(1,128)}', space=vmem, size = 0x12000, scoped, tag = 'internal scratch']
  #allocation2 [shape = 'f32[18,32,32]{2,1,0:T(8,128)}', space=vmem, size = 0x48000, scoped, tag = 'scratch operand']
  %s0 = inlined_call_operand.vmem [shape: f32[2,16,16,32], index: 0, kind: input, shape index: {}]
  %s1 = inlined_call_operand.vmem [shape: f32[9,32], index: 1, kind: input, shape index: {}]
  %s2 = inlined_call_operand.vmem [shape: f32[1,32], index: 2, kind: input, shape index: {}]
  %s3 = inlined_call_operand.vmem [shape: f32[32,32], index: 3, kind: input, shape index: {}]
  %s4 = inlined_call_operand.vmem [shape: f32[1,32], index: 4, kind: input, shape index: {}]
  %s5 = inlined_call_operand.vmem [shape: f32[2,16,16,32], index: 5, kind: output, shape index: {}]
  %s6 = sld [smem:[#allocation0]]
  $region53: #{feature_extractor_forward.8} parent=0
    _
  %s8 = ssub.s32 1, %s6
  %s9 = scalar_select 0, %s8, %s6
  loop: start=0, step=1, limit=4
  $region2: #{feature_extractor_forward.8} parent=0 // loop_pre_header
    _
  $region3: #{feature_extractor_forward.8} parent=0 // loop_header
    %s11 = sphi 0, %s15
    %p12 = scmp.ge.s32.totalorder %s11, 4
    %s21 = sphi 0, %s23
    %s24 = sphi 0, %s21
    %s25 = sphi 0, %s24
    %s41 = sphi 0, %s25
    %s45 = sphi 0, %s45
    %s47 = sphi 0, %s45
    %s48 = sphi 0, %s47
    %s62 = sphi 0, %s48
    %s66 = sphi 0, %s66
    %s68 = sphi 0, %s66
    %s69 = sphi 0, %s68
    %s83 = sphi 0, %s69
    %s87 = sphi 0, %s87
    %s89 = sphi 0, %s87
    %s90 = sphi 0, %s89
    %s104 = sphi 0, %s90
    %s108 = sphi 0, %s108
    %s110 = sphi 0, %s108
    %s111 = sphi 0, %s110
    %s125 = sphi 0, %s111
    %s131 = sphi 0, %s133
    %s134 = sphi 0, %s131
    %s135 = sphi 0, %s134
    %s151 = sphi 0, %s135
  $region4: #{feature_extractor_forward.8} parent=0 // loop_header_branch
    %14 = sbr.rel (%p12) target = $region8
  $region5: #{feature_extractor_forward.8} parent=0 // loop_body
    %s16 = ssub.s32 %s11, 1
    %s17 = ssub.s32 %s11, 2
    %s18 = sadd.s32 %s11, 1
    %s19 = ssub.s32 %s11, %s18
    %p20 = scmp.eq.s32.totalorder %s19, 0
    %s22 = sadd.s32 %s21, 1
    %s23 = scalar_select %p20, %s21, %s22
    %p26 = pneg %p20
    %p27 = scmp.eq.s32.totalorder %s11, 1
    %p28 = por %p26, %p27
    %p29 = scmp.ne.s32.totalorder %s21, %s24
    %p30 = scmp.eq.s32.totalorder %s11, 0
    %p31 = por %p29, %p30
    %p32 = scmp.ne.s32.totalorder %s21, %s24
    %p33 = scmp.eq.s32.totalorder %s16, 1
    %p34 = por %p32, %p33
    %p35 = scmp.ne.s32.totalorder %s24, %s25
    %p36 = scmp.eq.s32.totalorder %s16, 0
    %p37 = por %p35, %p36
    %p38 = scmp.ne.s32.totalorder %s24, %s25
    %p39 = scmp.eq.s32.totalorder %s17, 1
    %p40 = por %p38, %p39
    %p42 = scmp.ne.s32.totalorder %s25, %s41
    %p43 = scmp.eq.s32.totalorder %s17, 0
    %p44 = por %p42, %p43
    %s46 = sadd.s32 %s45, 1
    %p49 = scmp.eq.s32.totalorder %s11, 1
    %p50 = scmp.ne.s32.totalorder %s45, %s47
    %p51 = scmp.eq.s32.totalorder %s11, 0
    %p52 = por %p50, %p51
    %p53 = scmp.ne.s32.totalorder %s45, %s47
    %p54 = scmp.eq.s32.totalorder %s16, 1
    %p55 = por %p53, %p54
    %p56 = scmp.ne.s32.totalorder %s47, %s48
    %p57 = scmp.eq.s32.totalorder %s16, 0
    %p58 = por %p56, %p57
    %p59 = scmp.ne.s32.totalorder %s47, %s48
    %p60 = scmp.eq.s32.totalorder %s17, 1
    %p61 = por %p59, %p60
    %p63 = scmp.ne.s32.totalorder %s48, %s62
    %p64 = scmp.eq.s32.totalorder %s17, 0
    %p65 = por %p63, %p64
    %s67 = sadd.s32 %s66, 1
    %p70 = scmp.eq.s32.totalorder %s11, 1
    %p71 = scmp.ne.s32.totalorder %s66, %s68
    %p72 = scmp.eq.s32.totalorder %s11, 0
    %p73 = por %p71, %p72
    %p74 = scmp.ne.s32.totalorder %s66, %s68
    %p75 = scmp.eq.s32.totalorder %s16, 1
    %p76 = por %p74, %p75
    %p77 = scmp.ne.s32.totalorder %s68, %s69
    %p78 = scmp.eq.s32.totalorder %s16, 0
    %p79 = por %p77, %p78
    %p80 = scmp.ne.s32.totalorder %s68, %s69
    %p81 = scmp.eq.s32.totalorder %s17, 1
    %p82 = por %p80, %p81
    %p84 = scmp.ne.s32.totalorder %s69, %s83
    %p85 = scmp.eq.s32.totalorder %s17, 0
    %p86 = por %p84, %p85
    %s88 = sadd.s32 %s87, 1
    %p91 = scmp.eq.s32.totalorder %s11, 1
    %p92 = scmp.ne.s32.totalorder %s87, %s89
    %p93 = scmp.eq.s32.totalorder %s11, 0
    %p94 = por %p92, %p93
    %p95 = scmp.ne.s32.totalorder %s87, %s89
    %p96 = scmp.eq.s32.totalorder %s16, 1
    %p97 = por %p95, %p96
    %p98 = scmp.ne.s32.totalorder %s89, %s90
    %p99 = scmp.eq.s32.totalorder %s16, 0
    %p100 = por %p98, %p99
    %p101 = scmp.ne.s32.totalorder %s89, %s90
    %p102 = scmp.eq.s32.totalorder %s17, 1
    %p103 = por %p101, %p102
    %p105 = scmp.ne.s32.totalorder %s90, %s104
    %p106 = scmp.eq.s32.totalorder %s17, 0
    %p107 = por %p105, %p106
    %s109 = sadd.s32 %s108, 1
    %p112 = scmp.eq.s32.totalorder %s11, 1
    %p113 = scmp.ne.s32.totalorder %s108, %s110
    %p114 = scmp.eq.s32.totalorder %s11, 0
    %p115 = por %p113, %p114
    %p116 = scmp.ne.s32.totalorder %s108, %s110
    %p117 = scmp.eq.s32.totalorder %s16, 1
    %p118 = por %p116, %p117
    %p119 = scmp.ne.s32.totalorder %s110, %s111
    %p120 = scmp.eq.s32.totalorder %s16, 0
    %p121 = por %p119, %p120
    %p122 = scmp.ne.s32.totalorder %s110, %s111
    %p123 = scmp.eq.s32.totalorder %s17, 1
    %p124 = por %p122, %p123
    %p126 = scmp.ne.s32.totalorder %s111, %s125
    %p127 = scmp.eq.s32.totalorder %s17, 0
    %p128 = por %p126, %p127
    %s129 = ssub.s32 %s11, %s18
    %p130 = scmp.eq.s32.totalorder %s129, 0
    %s132 = sadd.s32 %s131, 1
    %s133 = scalar_select %p130, %s131, %s132
    %p136 = pneg %p130
    %p137 = scmp.eq.s32.totalorder %s11, 1
    %p138 = por %p136, %p137
    %p139 = scmp.ne.s32.totalorder %s131, %s134
    %p140 = scmp.eq.s32.totalorder %s11, 0
    %p141 = por %p139, %p140
    %p142 = scmp.ne.s32.totalorder %s131, %s134
    %p143 = scmp.eq.s32.totalorder %s16, 1
    %p144 = por %p142, %p143
    %p145 = scmp.ne.s32.totalorder %s134, %s135
    %p146 = scmp.eq.s32.totalorder %s16, 0
    %p147 = por %p145, %p146
    %p148 = scmp.ne.s32.totalorder %s134, %s135
    %p149 = scmp.eq.s32.totalorder %s17, 1
    %p150 = por %p148, %p149
    %p152 = scmp.ne.s32.totalorder %s135, %s151
    %p153 = scmp.eq.s32.totalorder %s17, 0
    %p154 = por %p152, %p153
    %p155 = scmp.le.s32.totalorder 1, %s11
    %p156 = scmp.lt.s32.totalorder %s11, 3
    %p157 = pnand %p155, %p156
    %p158 = pneg %p157
    // Predicated region
    $region9: #{feature_extractor_forward.8} parent=5 // pred_check
      _
    $region10: #{feature_extractor_forward.8} parent=5 // pred_check_branch
      %160 = sbr.rel (%p157) target = $region12
    $region11: #{feature_extractor_forward.8} parent=5 // pred_region
      %s161 = ssub.s32 %s11, 1
      // Predicated region
      $region13: #{feature_extractor_forward.8} parent=11 // pred_check
        %p162 = pneg %p58
      $region14: #{feature_extractor_forward.8} parent=11 // pred_check_branch
        %164 = sbr.rel (%p162) target = $region16
      $region15: #{feature_extractor_forward.8} parent=11 // pred_region
        _
      $region16: #{feature_extractor_forward.8} parent=11 // pred_fallthru
        _
      // Predicated region
      $region17: #{feature_extractor_forward.8} parent=11 // pred_check
        %p165 = pneg %p79
      $region18: #{feature_extractor_forward.8} parent=11 // pred_check_branch
        %167 = sbr.rel (%p165) target = $region20
      $region19: #{feature_extractor_forward.8} parent=11 // pred_region
        _
      $region20: #{feature_extractor_forward.8} parent=11 // pred_fallthru
        _
      // Predicated region
      $region21: #{feature_extractor_forward.8} parent=11 // pred_check
        %p168 = pneg %p100
      $region22: #{feature_extractor_forward.8} parent=11 // pred_check_branch
        %170 = sbr.rel (%p168) target = $region24
      $region23: #{feature_extractor_forward.8} parent=11 // pred_region
        _
      $region24: #{feature_extractor_forward.8} parent=11 // pred_fallthru
        _
      // Predicated region
      $region25: #{feature_extractor_forward.8} parent=11 // pred_check
        %p171 = pneg %p121
      $region26: #{feature_extractor_forward.8} parent=11 // pred_check_branch
        %173 = sbr.rel (%p171) target = $region28
      $region27: #{feature_extractor_forward.8} parent=11 // pred_region
        _
      $region28: #{feature_extractor_forward.8} parent=11 // pred_fallthru
        _
    $region12: #{feature_extractor_forward.8} parent=5 // pred_fallthru
      _
    %p174 = scmp.lt.s32.totalorder %s11, 2
    // Predicated region
    $region29: #{feature_extractor_forward.8} parent=5 // pred_check
      %p175 = pneg %p174
    $region30: #{feature_extractor_forward.8} parent=5 // pred_check_branch
      %177 = sbr.rel (%p175) target = $region32
    $region31: #{feature_extractor_forward.8} parent=5 // pred_region
      // Predicated region
      $region33: #{feature_extractor_forward.8} parent=31 // pred_check
        %p178 = pneg %p31
      $region34: #{feature_extractor_forward.8} parent=31 // pred_check_branch
        %180 = sbr.rel (%p178) target = $region36
      $region35: #{feature_extractor_forward.8} parent=31 // pred_region
        %p181 = scmp.lt.s32.totalorder %s11, 1
        %s182 = scalar_select %p181, %s11, 1
        %s183 = smul.addr %s182, 32
        %s184 = smul.addr %s183, 8
        %s185 = scalar_lea.vmem %s0, %s184
      $region36: #{feature_extractor_forward.8} parent=31 // pred_fallthru
        _
    $region32: #{feature_extractor_forward.8} parent=5 // pred_fallthru
      _
    %p186 = scmp.le.s32.totalorder 1, %s11
    %p187 = scmp.lt.s32.totalorder %s11, 3
    %p188 = pnand %p186, %p187
    %p189 = pneg %p188
    // Predicated region
    $region37: #{feature_extractor_forward.8} parent=5 // pred_check
      _
    $region38: #{feature_extractor_forward.8} parent=5 // pred_check_branch
      %191 = sbr.rel (%p188) target = $region40
    $region39: #{feature_extractor_forward.8} parent=5 // pred_region
      %s192 = ssub.s32 %s11, 1
      %p193 = scmp.lt.s32.totalorder %s16, 1
      %s194 = scalar_select %p193, %s16, 1
      %s195 = smul.addr %s194, 32
      %s196 = smul.addr %s195, 8
      %s197 = scalar_lea.vmem %s0, %s196
      %p198 = pneg %p37
      %p199 = pneg %p34
      %p200 = pneg %p58
      %p201 = pneg %p55
      %p202 = pneg %p79
      %p203 = pneg %p76
      %p204 = pneg %p100
      %p205 = pneg %p97
      %p206 = pneg %p121
      %p207 = pneg %p118
      %p208 = pneg %p147
      %p209 = pneg %p144
      %p210 = scmp.lt.s32.totalorder %s16, 1
      %s211 = scalar_select %p210, %s16, 1
      %s212 = smul.addr %s211, 32
      %s213 = smul.addr %s212, 8
      %s214 = scalar_lea.vmem %s5, %s213
      %p215 = scmp.lt.s32.totalorder %s16, 1
      %s216 = scalar_select %p215, %s16, 1
      %s217 = smul.addr %s216, 32
      %s218 = smul.addr %s217, 8
      %s219 = scalar_lea.vmem %s0, %s218
      %p220 = scmp.lt.s32.totalorder %s16, 1
      %s221 = scalar_select %p220, %s16, 1
      %s222 = smul.addr %s221, 32
      %s223 = smul.addr %s222, 8
      %s224 = scalar_lea.vmem %s5, %s223
      %vm225 = vcmask 261120
      %226 = vst.msk [vmem:[#allocation2] sm:$0xff] %vm225, 0.0
      %227 = vst.msk [vmem:[#allocation2 + $0x8] sm:$0xff] %vm225, 0.0
      %228 = vst.msk [vmem:[#allocation2 + $0x10] sm:$0xff] %vm225, 0.0
      %229 = vst.msk [vmem:[#allocation2 + $0x18] sm:$0xff] %vm225, 0.0
      %230 = vst.msk [vmem:[#allocation2 + $0x20] sm:$0xff] %vm225, 0.0
      %231 = vst.msk [vmem:[#allocation2 + $0x28] sm:$0xff] %vm225, 0.0
      %232 = vst.msk [vmem:[#allocation2 + $0x30] sm:$0xff] %vm225, 0.0
      %233 = vst.msk [vmem:[#allocation2 + $0x38] sm:$0xff] %vm225, 0.0
      %234 = vst.msk [vmem:[#allocation2 + $0x40] sm:$0xff] %vm225, 0.0
      %235 = vst.msk [vmem:[#allocation2 + $0x48] sm:$0xff] %vm225, 0.0
      %236 = vst.msk [vmem:[#allocation2 + $0x50] sm:$0xff] %vm225, 0.0
      %237 = vst.msk [vmem:[#allocation2 + $0x58] sm:$0xff] %vm225, 0.0
      %238 = vst.msk [vmem:[#allocation2 + $0x60] sm:$0xff] %vm225, 0.0
      %239 = vst.msk [vmem:[#allocation2 + $0x68] sm:$0xff] %vm225, 0.0
      %240 = vst.msk [vmem:[#allocation2 + $0x70] sm:$0xff] %vm225, 0.0
      %241 = vst.msk [vmem:[#allocation2 + $0x78] sm:$0xff] %vm225, 0.0
      %242 = vst.msk [vmem:[#allocation2 + $0x80] sm:$0xff] %vm225, 0.0
      %243 = vst.msk [vmem:[#allocation2 + $0x88] sm:$0xff] %vm225, 0.0
      %244 = vst.msk [vmem:[#allocation2 + $0x90] sm:$0xff] %vm225, 0.0
      %245 = vst.msk [vmem:[#allocation2 + $0x98] sm:$0xff] %vm225, 0.0
      %246 = vst.msk [vmem:[#allocation2 + $0xa0] sm:$0xff] %vm225, 0.0
      %247 = vst.msk [vmem:[#allocation2 + $0xa8] sm:$0xff] %vm225, 0.0
      %248 = vst.msk [vmem:[#allocation2 + $0xb0] sm:$0xff] %vm225, 0.0
      %249 = vst.msk [vmem:[#allocation2 + $0xb8] sm:$0xff] %vm225, 0.0
      %250 = vst.msk [vmem:[#allocation2 + $0xc0] sm:$0xff] %vm225, 0.0
      %251 = vst.msk [vmem:[#allocation2 + $0xc8] sm:$0xff] %vm225, 0.0
      %252 = vst.msk [vmem:[#allocation2 + $0xd0] sm:$0xff] %vm225, 0.0
      %253 = vst.msk [vmem:[#allocation2 + $0xd8] sm:$0xff] %vm225, 0.0
      %254 = vst.msk [vmem:[#allocation2 + $0xe0] sm:$0xff] %vm225, 0.0
      %255 = vst.msk [vmem:[#allocation2 + $0xe8] sm:$0xff] %vm225, 0.0
      %256 = vst.msk [vmem:[#allocation2 + $0xf0] sm:$0xff] %vm225, 0.0
      %257 = vst.msk [vmem:[#allocation2 + $0xf8] sm:$0xff] %vm225, 0.0
      %258 = vst.msk [vmem:[#allocation2 + $0x100] sm:$0xff] %vm225, 0.0
      %259 = vst.msk [vmem:[#allocation2 + $0x108] sm:$0xff] %vm225, 0.0
      %260 = vst.msk [vmem:[#allocation2 + $0x110] sm:$0xff] %vm225, 0.0
      %261 = vst.msk [vmem:[#allocation2 + $0x118] sm:$0xff] %vm225, 0.0
      %262 = vst.msk [vmem:[#allocation2 + $0x120] sm:$0xff] %vm225, 0.0
      %263 = vst.msk [vmem:[#allocation2 + $0x128] sm:$0xff] %vm225, 0.0
      %264 = vst.msk [vmem:[#allocation2 + $0x130] sm:$0xff] %vm225, 0.0
      %265 = vst.msk [vmem:[#allocation2 + $0x138] sm:$0xff] %vm225, 0.0
      %266 = vst.msk [vmem:[#allocation2 + $0x140] sm:$0xff] %vm225, 0.0
      %267 = vst.msk [vmem:[#allocation2 + $0x148] sm:$0xff] %vm225, 0.0
      %268 = vst.msk [vmem:[#allocation2 + $0x150] sm:$0xff] %vm225, 0.0
      %269 = vst.msk [vmem:[#allocation2 + $0x158] sm:$0xff] %vm225, 0.0
      %270 = vst.msk [vmem:[#allocation2 + $0x160] sm:$0xff] %vm225, 0.0
      %271 = vst.msk [vmem:[#allocation2 + $0x168] sm:$0xff] %vm225, 0.0
      %272 = vst.msk [vmem:[#allocation2 + $0x170] sm:$0xff] %vm225, 0.0
      %273 = vst.msk [vmem:[#allocation2 + $0x178] sm:$0xff] %vm225, 0.0
      %274 = vst.msk [vmem:[#allocation2 + $0x180] sm:$0xff] %vm225, 0.0
      %275 = vst.msk [vmem:[#allocation2 + $0x188] sm:$0xff] %vm225, 0.0
      %276 = vst.msk [vmem:[#allocation2 + $0x190] sm:$0xff] %vm225, 0.0
      %277 = vst.msk [vmem:[#allocation2 + $0x198] sm:$0xff] %vm225, 0.0
      %278 = vst.msk [vmem:[#allocation2 + $0x1a0] sm:$0xff] %vm225, 0.0
      %279 = vst.msk [vmem:[#allocation2 + $0x1a8] sm:$0xff] %vm225, 0.0
      %280 = vst.msk [vmem:[#allocation2 + $0x1b0] sm:$0xff] %vm225, 0.0
      %281 = vst.msk [vmem:[#allocation2 + $0x1b8] sm:$0xff] %vm225, 0.0
      %282 = vst.msk [vmem:[#allocation2 + $0x1c0] sm:$0xff] %vm225, 0.0
      %283 = vst.msk [vmem:[#allocation2 + $0x1c8] sm:$0xff] %vm225, 0.0
      %284 = vst.msk [vmem:[#allocation2 + $0x1d0] sm:$0xff] %vm225, 0.0
      %285 = vst.msk [vmem:[#allocation2 + $0x1d8] sm:$0xff] %vm225, 0.0
      %286 = vst.msk [vmem:[#allocation2 + $0x1e0] sm:$0xff] %vm225, 0.0
      %287 = vst.msk [vmem:[#allocation2 + $0x1e8] sm:$0xff] %vm225, 0.0
      %288 = vst.msk [vmem:[#allocation2 + $0x1f0] sm:$0xff] %vm225, 0.0
      %289 = vst.msk [vmem:[#allocation2 + $0x1f8] sm:$0xff] %vm225, 0.0
      %290 = vst.msk [vmem:[#allocation2 + $0x200] sm:$0xff] %vm225, 0.0
      %291 = vst.msk [vmem:[#allocation2 + $0x208] sm:$0xff] %vm225, 0.0
      %292 = vst.msk [vmem:[#allocation2 + $0x210] sm:$0xff] %vm225, 0.0
      %293 = vst.msk [vmem:[#allocation2 + $0x218] sm:$0xff] %vm225, 0.0
      %294 = vst.msk [vmem:[#allocation2 + $0x220] sm:$0xff] %vm225, 0.0
      %295 = vst.msk [vmem:[#allocation2 + $0x228] sm:$0xff] %vm225, 0.0
      %296 = vst.msk [vmem:[#allocation2 + $0x230] sm:$0xff] %vm225, 0.0
      %297 = vst.msk [vmem:[#allocation2 + $0x238] sm:$0xff] %vm225, 0.0
      %v298 = vld [vmem:[%s219] sm:$0xff]
      %v299 = vld [vmem:[%s219 + $0x8] sm:$0xff]
      %v300 = vld [vmem:[%s219 + $0x10] sm:$0xff]
      %v301 = vld [vmem:[%s219 + $0x18] sm:$0xff]
      %v302 = vld [vmem:[%s219 + $0x20] sm:$0xff]
      %v303 = vld [vmem:[%s219 + $0x28] sm:$0xff]
      %v304 = vld [vmem:[%s219 + $0x30] sm:$0xff]
      %v305 = vld [vmem:[%s219 + $0x38] sm:$0xff]
      %v306 = vld [vmem:[%s219 + $0x40] sm:$0xff]
      %v307 = vld [vmem:[%s219 + $0x48] sm:$0xff]
      %v308 = vld [vmem:[%s219 + $0x50] sm:$0xff]
      %v309 = vld [vmem:[%s219 + $0x58] sm:$0xff]
      %v310 = vld [vmem:[%s219 + $0x60] sm:$0xff]
      %v311 = vld [vmem:[%s219 + $0x68] sm:$0xff]
      %v312 = vld [vmem:[%s219 + $0x70] sm:$0xff]
      %v313 = vld [vmem:[%s219 + $0x78] sm:$0xff]
      %v314 = vld [vmem:[%s219 + $0x80] sm:$0xff]
      %v315 = vld [vmem:[%s219 + $0x88] sm:$0xff]
      %v316 = vld [vmem:[%s219 + $0x90] sm:$0xff]
      %v317 = vld [vmem:[%s219 + $0x98] sm:$0xff]
      %v318 = vld [vmem:[%s219 + $0xa0] sm:$0xff]
      %v319 = vld [vmem:[%s219 + $0xa8] sm:$0xff]
      %v320 = vld [vmem:[%s219 + $0xb0] sm:$0xff]
      %v321 = vld [vmem:[%s219 + $0xb8] sm:$0xff]
      %v322 = vld [vmem:[%s219 + $0xc0] sm:$0xff]
      %v323 = vld [vmem:[%s219 + $0xc8] sm:$0xff]
      %v324 = vld [vmem:[%s219 + $0xd0] sm:$0xff]
      %v325 = vld [vmem:[%s219 + $0xd8] sm:$0xff]
      %v326 = vld [vmem:[%s219 + $0xe0] sm:$0xff]
      %v327 = vld [vmem:[%s219 + $0xe8] sm:$0xff]
      %v328 = vld [vmem:[%s219 + $0xf0] sm:$0xff]
      %v329 = vld [vmem:[%s219 + $0xf8] sm:$0xff]
      %s330 = scalar_lea.vmem [#allocation2], 32
      %331 = vst.msk [vmem:[%s330 + $0x8] sm:$0xff] %vm225, %v298
      %332 = vst.msk [vmem:[%s330 + $0x10] sm:$0xff] %vm225, %v299
      %333 = vst.msk [vmem:[%s330 + $0x28] sm:$0xff] %vm225, %v300
      %334 = vst.msk [vmem:[%s330 + $0x30] sm:$0xff] %vm225, %v301
      %335 = vst.msk [vmem:[%s330 + $0x48] sm:$0xff] %vm225, %v302
      %336 = vst.msk [vmem:[%s330 + $0x50] sm:$0xff] %vm225, %v303
      %337 = vst.msk [vmem:[%s330 + $0x68] sm:$0xff] %vm225, %v304
      %338 = vst.msk [vmem:[%s330 + $0x70] sm:$0xff] %vm225, %v305
      %339 = vst.msk [vmem:[%s330 + $0x88] sm:$0xff] %vm225, %v306
      %340 = vst.msk [vmem:[%s330 + $0x90] sm:$0xff] %vm225, %v307
      %341 = vst.msk [vmem:[%s330 + $0xa8] sm:$0xff] %vm225, %v308
      %342 = vst.msk [vmem:[%s330 + $0xb0] sm:$0xff] %vm225, %v309
      %343 = vst.msk [vmem:[%s330 + $0xc8] sm:$0xff] %vm225, %v310
      %344 = vst.msk [vmem:[%s330 + $0xd0] sm:$0xff] %vm225, %v311
      %345 = vst.msk [vmem:[%s330 + $0xe8] sm:$0xff] %vm225, %v312
      %346 = vst.msk [vmem:[%s330 + $0xf0] sm:$0xff] %vm225, %v313
      %347 = vst.msk [vmem:[%s330 + $0x108] sm:$0xff] %vm225, %v314
      %348 = vst.msk [vmem:[%s330 + $0x110] sm:$0xff] %vm225, %v315
      %349 = vst.msk [vmem:[%s330 + $0x128] sm:$0xff] %vm225, %v316
      %350 = vst.msk [vmem:[%s330 + $0x130] sm:$0xff] %vm225, %v317
      %351 = vst.msk [vmem:[%s330 + $0x148] sm:$0xff] %vm225, %v318
      %352 = vst.msk [vmem:[%s330 + $0x150] sm:$0xff] %vm225, %v319
      %353 = vst.msk [vmem:[%s330 + $0x168] sm:$0xff] %vm225, %v320
      %354 = vst.msk [vmem:[%s330 + $0x170] sm:$0xff] %vm225, %v321
      %355 = vst.msk [vmem:[%s330 + $0x188] sm:$0xff] %vm225, %v322
      %356 = vst.msk [vmem:[%s330 + $0x190] sm:$0xff] %vm225, %v323
      %357 = vst.msk [vmem:[%s330 + $0x1a8] sm:$0xff] %vm225, %v324
      %358 = vst.msk [vmem:[%s330 + $0x1b0] sm:$0xff] %vm225, %v325
      %359 = vst.msk [vmem:[%s330 + $0x1c8] sm:$0xff] %vm225, %v326
      %360 = vst.msk [vmem:[%s330 + $0x1d0] sm:$0xff] %vm225, %v327
      %361 = vst.msk [vmem:[%s330 + $0x1e8] sm:$0xff] %vm225, %v328
      %362 = vst.msk [vmem:[%s330 + $0x1f0] sm:$0xff] %vm225, %v329
      %v363 = vld [vmem:[%s1] sm:$0xff]
      %v364 = vld [vmem:[%s1 + $0x8] sm:$0x1]
      %v365 = vld [vmem:[#allocation2 + $0x7] sm:$0xff]
      %v366 = vld [vmem:[#allocation2 + $0xf] sm:$0xff]
      %v367 = vld [vmem:[#allocation2 + $0x27] sm:$0xff]
      %v368 = vld [vmem:[#allocation2 + $0x2f] sm:$0xff]
      %v369 = vld [vmem:[#allocation2 + $0x47] sm:$0xff]
      %v370 = vld [vmem:[#allocation2 + $0x4f] sm:$0xff]
      %v371 = vld [vmem:[#allocation2 + $0x67] sm:$0xff]
      %v372 = vld [vmem:[#allocation2 + $0x6f] sm:$0xff]
      %v373 = vld [vmem:[#allocation2 + $0x87] sm:$0xff]
      %v374 = vld [vmem:[#allocation2 + $0x8f] sm:$0xff]
      %v375 = vld [vmem:[#allocation2 + $0xa7] sm:$0xff]
      %v376 = vld [vmem:[#allocation2 + $0xaf] sm:$0xff]
      %v377 = vld [vmem:[#allocation2 + $0xc7] sm:$0xff]
      %v378 = vld [vmem:[#allocation2 + $0xcf] sm:$0xff]
      %v379 = vld [vmem:[#allocation2 + $0xe7] sm:$0xff]
      %v380 = vld [vmem:[#allocation2 + $0xef] sm:$0xff]
      %v381 = vld [vmem:[#allocation2 + $0x107] sm:$0xff]
      %v382 = vld [vmem:[#allocation2 + $0x10f] sm:$0xff]
      %v383 = vld [vmem:[#allocation2 + $0x127] sm:$0xff]
      %v384 = vld [vmem:[#allocation2 + $0x12f] sm:$0xff]
      %v385 = vld [vmem:[#allocation2 + $0x147] sm:$0xff]
      %v386 = vld [vmem:[#allocation2 + $0x14f] sm:$0xff]
      %v387 = vld [vmem:[#allocation2 + $0x167] sm:$0xff]
      %v388 = vld [vmem:[#allocation2 + $0x16f] sm:$0xff]
      %v389 = vld [vmem:[#allocation2 + $0x187] sm:$0xff]
      %v390 = vld [vmem:[#allocation2 + $0x18f] sm:$0xff]
      %v391 = vld [vmem:[#allocation2 + $0x1a7] sm:$0xff]
      %v392 = vld [vmem:[#allocation2 + $0x1af] sm:$0xff]
      %v393 = vld [vmem:[#allocation2 + $0x1c7] sm:$0xff]
      %v394 = vld [vmem:[#allocation2 + $0x1cf] sm:$0xff]
      %v395 = vld [vmem:[#allocation2 + $0x1e7] sm:$0xff]
      %v396 = vld [vmem:[#allocation2 + $0x1ef] sm:$0xff]
      %v397 = vlaneseq
      %v398 = vshrl.u32 %v397, 7
      %v399 = vsub.s32 0, %v398
      %v400 = vrot.slane %v363, %v399
      %v401 = vmul.f32 %v365, %v400
      %v402 = vmul.f32 %v366, %v400
      %v403 = vmul.f32 %v367, %v400
      %v404 = vmul.f32 %v368, %v400
      %v405 = vmul.f32 %v369, %v400
      %v406 = vmul.f32 %v370, %v400
      %v407 = vmul.f32 %v371, %v400
      %v408 = vmul.f32 %v372, %v400
      %v409 = vmul.f32 %v373, %v400
      %v410 = vmul.f32 %v374, %v400
      %v411 = vmul.f32 %v375, %v400
      %v412 = vmul.f32 %v376, %v400
      %v413 = vmul.f32 %v377, %v400
      %v414 = vmul.f32 %v378, %v400
      %v415 = vmul.f32 %v379, %v400
      %v416 = vmul.f32 %v380, %v400
      %v417 = vmul.f32 %v381, %v400
      %v418 = vmul.f32 %v382, %v400
      %v419 = vmul.f32 %v383, %v400
      %v420 = vmul.f32 %v384, %v400
      %v421 = vmul.f32 %v385, %v400
      %v422 = vmul.f32 %v386, %v400
      %v423 = vmul.f32 %v387, %v400
      %v424 = vmul.f32 %v388, %v400
      %v425 = vmul.f32 %v389, %v400
      %v426 = vmul.f32 %v390, %v400
      %v427 = vmul.f32 %v391, %v400
      %v428 = vmul.f32 %v392, %v400
      %v429 = vmul.f32 %v393, %v400
      %v430 = vmul.f32 %v394, %v400
      %v431 = vmul.f32 %v395, %v400
      %v432 = vmul.f32 %v396, %v400
      %v433 = vadd.f32 %v401, 0.0
      %v434 = vadd.f32 %v402, 0.0
      %v435 = vadd.f32 %v403, 0.0
      %v436 = vadd.f32 %v404, 0.0
      %v437 = vadd.f32 %v405, 0.0
      %v438 = vadd.f32 %v406, 0.0
      %v439 = vadd.f32 %v407, 0.0
      %v440 = vadd.f32 %v408, 0.0
      %v441 = vadd.f32 %v409, 0.0
      %v442 = vadd.f32 %v410, 0.0
      %v443 = vadd.f32 %v411, 0.0
      %v444 = vadd.f32 %v412, 0.0
      %v445 = vadd.f32 %v413, 0.0
      %v446 = vadd.f32 %v414, 0.0
      %v447 = vadd.f32 %v415, 0.0
      %v448 = vadd.f32 %v416, 0.0
      %v449 = vadd.f32 %v417, 0.0
      %v450 = vadd.f32 %v418, 0.0
      %v451 = vadd.f32 %v419, 0.0
      %v452 = vadd.f32 %v420, 0.0
      %v453 = vadd.f32 %v421, 0.0
      %v454 = vadd.f32 %v422, 0.0
      %v455 = vadd.f32 %v423, 0.0
      %v456 = vadd.f32 %v424, 0.0
      %v457 = vadd.f32 %v425, 0.0
      %v458 = vadd.f32 %v426, 0.0
      %v459 = vadd.f32 %v427, 0.0
      %v460 = vadd.f32 %v428, 0.0
      %v461 = vadd.f32 %v429, 0.0
      %v462 = vadd.f32 %v430, 0.0
      %v463 = vadd.f32 %v431, 0.0
      %v464 = vadd.f32 %v432, 0.0
      %v465 = vld [vmem:[#allocation2 + $0x8] sm:$0xff]
      %v466 = vld [vmem:[#allocation2 + $0x10] sm:$0xff]
      %v467 = vld [vmem:[#allocation2 + $0x28] sm:$0xff]
      %v468 = vld [vmem:[#allocation2 + $0x30] sm:$0xff]
      %v469 = vld [vmem:[#allocation2 + $0x48] sm:$0xff]
      %v470 = vld [vmem:[#allocation2 + $0x50] sm:$0xff]
      %v471 = vld [vmem:[#allocation2 + $0x68] sm:$0xff]
      %v472 = vld [vmem:[#allocation2 + $0x70] sm:$0xff]
      %v473 = vld [vmem:[#allocation2 + $0x88] sm:$0xff]
      %v474 = vld [vmem:[#allocation2 + $0x90] sm:$0xff]
      %v475 = vld [vmem:[#allocation2 + $0xa8] sm:$0xff]
      %v476 = vld [vmem:[#allocation2 + $0xb0] sm:$0xff]
      %v477 = vld [vmem:[#allocation2 + $0xc8] sm:$0xff]
      %v478 = vld [vmem:[#allocation2 + $0xd0] sm:$0xff]
      %v479 = vld [vmem:[#allocation2 + $0xe8] sm:$0xff]
      %v480 = vld [vmem:[#allocation2 + $0xf0] sm:$0xff]
      %v481 = vld [vmem:[#allocation2 + $0x108] sm:$0xff]
      %v482 = vld [vmem:[#allocation2 + $0x110] sm:$0xff]
      %v483 = vld [vmem:[#allocation2 + $0x128] sm:$0xff]
      %v484 = vld [vmem:[#allocation2 + $0x130] sm:$0xff]
      %v485 = vld [vmem:[#allocation2 + $0x148] sm:$0xff]
      %v486 = vld [vmem:[#allocation2 + $0x150] sm:$0xff]
      %v487 = vld [vmem:[#allocation2 + $0x168] sm:$0xff]
      %v488 = vld [vmem:[#allocation2 + $0x170] sm:$0xff]
      %v489 = vld [vmem:[#allocation2 + $0x188] sm:$0xff]
      %v490 = vld [vmem:[#allocation2 + $0x190] sm:$0xff]
      %v491 = vld [vmem:[#allocation2 + $0x1a8] sm:$0xff]
      %v492 = vld [vmem:[#allocation2 + $0x1b0] sm:$0xff]
      %v493 = vld [vmem:[#allocation2 + $0x1c8] sm:$0xff]
      %v494 = vld [vmem:[#allocation2 + $0x1d0] sm:$0xff]
      %v495 = vld [vmem:[#allocation2 + $0x1e8] sm:$0xff]
      %v496 = vld [vmem:[#allocation2 + $0x1f0] sm:$0xff]
      %v497 = vlaneseq
      %v498 = vshrl.u32 %v497, 7
      %v499 = vsub.s32 1, %v498
      %v500 = vrot.slane %v363, %v499
      %v501 = vmul.f32 %v465, %v500
      %v502 = vmul.f32 %v466, %v500
      %v503 = vmul.f32 %v467, %v500
      %v504 = vmul.f32 %v468, %v500
      %v505 = vmul.f32 %v469, %v500
      %v506 = vmul.f32 %v470, %v500
      %v507 = vmul.f32 %v471, %v500
      %v508 = vmul.f32 %v472, %v500
      %v509 = vmul.f32 %v473, %v500
      %v510 = vmul.f32 %v474, %v500
      %v511 = vmul.f32 %v475, %v500
      %v512 = vmul.f32 %v476, %v500
      %v513 = vmul.f32 %v477, %v500
      %v514 = vmul.f32 %v478, %v500
      %v515 = vmul.f32 %v479, %v500
      %v516 = vmul.f32 %v480, %v500
      %v517 = vmul.f32 %v481, %v500
      %v518 = vmul.f32 %v482, %v500
      %v519 = vmul.f32 %v483, %v500
      %v520 = vmul.f32 %v484, %v500
      %v521 = vmul.f32 %v485, %v500
      %v522 = vmul.f32 %v486, %v500
      %v523 = vmul.f32 %v487, %v500
      %v524 = vmul.f32 %v488, %v500
      %v525 = vmul.f32 %v489, %v500
      %v526 = vmul.f32 %v490, %v500
      %v527 = vmul.f32 %v491, %v500
      %v528 = vmul.f32 %v492, %v500
      %v529 = vmul.f32 %v493, %v500
      %v530 = vmul.f32 %v494, %v500
      %v531 = vmul.f32 %v495, %v500
      %v532 = vmul.f32 %v496, %v500
      %v533 = vadd.f32 %v433, %v501
      %v534 = vadd.f32 %v434, %v502
      %v535 = vadd.f32 %v435, %v503
      %v536 = vadd.f32 %v436, %v504
      %v537 = vadd.f32 %v437, %v505
      %v538 = vadd.f32 %v438, %v506
      %v539 = vadd.f32 %v439, %v507
      %v540 = vadd.f32 %v440, %v508
      %v541 = vadd.f32 %v441, %v509
      %v542 = vadd.f32 %v442, %v510
      %v543 = vadd.f32 %v443, %v511
      %v544 = vadd.f32 %v444, %v512
      %v545 = vadd.f32 %v445, %v513
      %v546 = vadd.f32 %v446, %v514
      %v547 = vadd.f32 %v447, %v515
      %v548 = vadd.f32 %v448, %v516
      %v549 = vadd.f32 %v449, %v517
      %v550 = vadd.f32 %v450, %v518
      %v551 = vadd.f32 %v451, %v519
      %v552 = vadd.f32 %v452, %v520
      %v553 = vadd.f32 %v453, %v521
      %v554 = vadd.f32 %v454, %v522
      %v555 = vadd.f32 %v455, %v523
      %v556 = vadd.f32 %v456, %v524
      %v557 = vadd.f32 %v457, %v525
      %v558 = vadd.f32 %v458, %v526
      %v559 = vadd.f32 %v459, %v527
      %v560 = vadd.f32 %v460, %v528
      %v561 = vadd.f32 %v461, %v529
      %v562 = vadd.f32 %v462, %v530
      %v563 = vadd.f32 %v463, %v531
      %v564 = vadd.f32 %v464, %v532
      %v565 = vld [vmem:[#allocation2 + $0x9] sm:$0xff]
      %v566 = vld [vmem:[#allocation2 + $0x11] sm:$0xff]
      %v567 = vld [vmem:[#allocation2 + $0x29] sm:$0xff]
      %v568 = vld [vmem:[#allocation2 + $0x31] sm:$0xff]
      %v569 = vld [vmem:[#allocation2 + $0x49] sm:$0xff]
      %v570 = vld [vmem:[#allocation2 + $0x51] sm:$0xff]
      %v571 = vld [vmem:[#allocation2 + $0x69] sm:$0xff]
      %v572 = vld [vmem:[#allocation2 + $0x71] sm:$0xff]
      %v573 = vld [vmem:[#allocation2 + $0x89] sm:$0xff]
      %v574 = vld [vmem:[#allocation2 + $0x91] sm:$0xff]
      %v575 = vld [vmem:[#allocation2 + $0xa9] sm:$0xff]
      %v576 = vld [vmem:[#allocation2 + $0xb1] sm:$0xff]
      %v577 = vld [vmem:[#allocation2 + $0xc9] sm:$0xff]
      %v578 = vld [vmem:[#allocation2 + $0xd1] sm:$0xff]
      %v579 = vld [vmem:[#allocation2 + $0xe9] sm:$0xff]
      %v580 = vld [vmem:[#allocation2 + $0xf1] sm:$0xff]
      %v581 = vld [vmem:[#allocation2 + $0x109] sm:$0xff]
      %v582 = vld [vmem:[#allocation2 + $0x111] sm:$0xff]
      %v583 = vld [vmem:[#allocation2 + $0x129] sm:$0xff]
      %v584 = vld [vmem:[#allocation2 + $0x131] sm:$0xff]
      %v585 = vld [vmem:[#allocation2 + $0x149] sm:$0xff]
      %v586 = vld [vmem:[#allocation2 + $0x151] sm:$0xff]
      %v587 = vld [vmem:[#allocation2 + $0x169] sm:$0xff]
      %v588 = vld [vmem:[#allocation2 + $0x171] sm:$0xff]
      %v589 = vld [vmem:[#allocation2 + $0x189] sm:$0xff]
      %v590 = vld [vmem:[#allocation2 + $0x191] sm:$0xff]
      %v591 = vld [vmem:[#allocation2 + $0x1a9] sm:$0xff]
      %v592 = vld [vmem:[#allocation2 + $0x1b1] sm:$0xff]
      %v593 = vld [vmem:[#allocation2 + $0x1c9] sm:$0xff]
      %v594 = vld [vmem:[#allocation2 + $0x1d1] sm:$0xff]
      %v595 = vld [vmem:[#allocation2 + $0x1e9] sm:$0xff]
      %v596 = vld [vmem:[#allocation2 + $0x1f1] sm:$0xff]
      %v597 = vlaneseq
      %v598 = vshrl.u32 %v597, 7
      %v599 = vsub.s32 2, %v598
      %v600 = vrot.slane %v363, %v599
      %v601 = vmul.f32 %v565, %v600
      %v602 = vmul.f32 %v566, %v600
      %v603 = vmul.f32 %v567, %v600
      %v604 = vmul.f32 %v568, %v600
      %v605 = vmul.f32 %v569, %v600
      %v606 = vmul.f32 %v570, %v600
      %v607 = vmul.f32 %v571, %v600
      %v608 = vmul.f32 %v572, %v600
      %v609 = vmul.f32 %v573, %v600
      %v610 = vmul.f32 %v574, %v600
      %v611 = vmul.f32 %v575, %v600
      %v612 = vmul.f32 %v576, %v600
      %v613 = vmul.f32 %v577, %v600
      %v614 = vmul.f32 %v578, %v600
      %v615 = vmul.f32 %v579, %v600
      %v616 = vmul.f32 %v580, %v600
      %v617 = vmul.f32 %v581, %v600
      %v618 = vmul.f32 %v582, %v600
      %v619 = vmul.f32 %v583, %v600
      %v620 = vmul.f32 %v584, %v600
      %v621 = vmul.f32 %v585, %v600
      %v622 = vmul.f32 %v586, %v600
      %v623 = vmul.f32 %v587, %v600
      %v624 = vmul.f32 %v588, %v600
      %v625 = vmul.f32 %v589, %v600
      %v626 = vmul.f32 %v590, %v600
      %v627 = vmul.f32 %v591, %v600
      %v628 = vmul.f32 %v592, %v600
      %v629 = vmul.f32 %v593, %v600
      %v630 = vmul.f32 %v594, %v600
      %v631 = vmul.f32 %v595, %v600
      %v632 = vmul.f32 %v596, %v600
      %v633 = vadd.f32 %v533, %v601
      %v634 = vadd.f32 %v534, %v602
      %v635 = vadd.f32 %v535, %v603
      %v636 = vadd.f32 %v536, %v604
      %v637 = vadd.f32 %v537, %v605
      %v638 = vadd.f32 %v538, %v606
      %v639 = vadd.f32 %v539, %v607
      %v640 = vadd.f32 %v540, %v608
      %v641 = vadd.f32 %v541, %v609
      %v642 = vadd.f32 %v542, %v610
      %v643 = vadd.f32 %v543, %v611
      %v644 = vadd.f32 %v544, %v612
      %v645 = vadd.f32 %v545, %v613
      %v646 = vadd.f32 %v546, %v614
      %v647 = vadd.f32 %v547, %v615
      %v648 = vadd.f32 %v548, %v616
      %v649 = vadd.f32 %v549, %v617
      %v650 = vadd.f32 %v550, %v618
      %v651 = vadd.f32 %v551, %v619
      %v652 = vadd.f32 %v552, %v620
      %v653 = vadd.f32 %v553, %v621
      %v654 = vadd.f32 %v554, %v622
      %v655 = vadd.f32 %v555, %v623
      %v656 = vadd.f32 %v556, %v624
      %v657 = vadd.f32 %v557, %v625
      %v658 = vadd.f32 %v558, %v626
      %v659 = vadd.f32 %v559, %v627
      %v660 = vadd.f32 %v560, %v628
      %v661 = vadd.f32 %v561, %v629
      %v662 = vadd.f32 %v562, %v630
      %v663 = vadd.f32 %v563, %v631
      %v664 = vadd.f32 %v564, %v632
      %v665 = vld [vmem:[%s330 + $0x7] sm:$0xff]
      %v666 = vld [vmem:[%s330 + $0xf] sm:$0xff]
      %v667 = vld [vmem:[%s330 + $0x27] sm:$0xff]
      %v668 = vld [vmem:[%s330 + $0x2f] sm:$0xff]
      %v669 = vld [vmem:[%s330 + $0x47] sm:$0xff]
      %v670 = vld [vmem:[%s330 + $0x4f] sm:$0xff]
      %v671 = vld [vmem:[%s330 + $0x67] sm:$0xff]
      %v672 = vld [vmem:[%s330 + $0x6f] sm:$0xff]
      %v673 = vld [vmem:[%s330 + $0x87] sm:$0xff]
      %v674 = vld [vmem:[%s330 + $0x8f] sm:$0xff]
      %v675 = vld [vmem:[%s330 + $0xa7] sm:$0xff]
      %v676 = vld [vmem:[%s330 + $0xaf] sm:$0xff]
      %v677 = vld [vmem:[%s330 + $0xc7] sm:$0xff]
      %v678 = vld [vmem:[%s330 + $0xcf] sm:$0xff]
      %v679 = vld [vmem:[%s330 + $0xe7] sm:$0xff]
      %v680 = vld [vmem:[%s330 + $0xef] sm:$0xff]
      %v681 = vld [vmem:[%s330 + $0x107] sm:$0xff]
      %v682 = vld [vmem:[%s330 + $0x10f] sm:$0xff]
      %v683 = vld [vmem:[%s330 + $0x127] sm:$0xff]
      %v684 = vld [vmem:[%s330 + $0x12f] sm:$0xff]
      %v685 = vld [vmem:[%s330 + $0x147] sm:$0xff]
      %v686 = vld [vmem:[%s330 + $0x14f] sm:$0xff]
      %v687 = vld [vmem:[%s330 + $0x167] sm:$0xff]
      %v688 = vld [vmem:[%s330 + $0x16f] sm:$0xff]
      %v689 = vld [vmem:[%s330 + $0x187] sm:$0xff]
      %v690 = vld [vmem:[%s330 + $0x18f] sm:$0xff]
      %v691 = vld [vmem:[%s330 + $0x1a7] sm:$0xff]
      %v692 = vld [vmem:[%s330 + $0x1af] sm:$0xff]
      %v693 = vld [vmem:[%s330 + $0x1c7] sm:$0xff]
      %v694 = vld [vmem:[%s330 + $0x1cf] sm:$0xff]
      %v695 = vld [vmem:[%s330 + $0x1e7] sm:$0xff]
      %v696 = vld [vmem:[%s330 + $0x1ef] sm:$0xff]
      %v697 = vlaneseq
      %v698 = vshrl.u32 %v697, 7
      %v699 = vsub.s32 3, %v698
      %v700 = vrot.slane %v363, %v699
      %v701 = vmul.f32 %v665, %v700
      %v702 = vmul.f32 %v666, %v700
      %v703 = vmul.f32 %v667, %v700
      %v704 = vmul.f32 %v668, %v700
      %v705 = vmul.f32 %v669, %v700
      %v706 = vmul.f32 %v670, %v700
      %v707 = vmul.f32 %v671, %v700
      %v708 = vmul.f32 %v672, %v700
      %v709 = vmul.f32 %v673, %v700
      %v710 = vmul.f32 %v674, %v700
      %v711 = vmul.f32 %v675, %v700
      %v712 = vmul.f32 %v676, %v700
      %v713 = vmul.f32 %v677, %v700
      %v714 = vmul.f32 %v678, %v700
      %v715 = vmul.f32 %v679, %v700
      %v716 = vmul.f32 %v680, %v700
      %v717 = vmul.f32 %v681, %v700
      %v718 = vmul.f32 %v682, %v700
      %v719 = vmul.f32 %v683, %v700
      %v720 = vmul.f32 %v684, %v700
      %v721 = vmul.f32 %v685, %v700
      %v722 = vmul.f32 %v686, %v700
      %v723 = vmul.f32 %v687, %v700
      %v724 = vmul.f32 %v688, %v700
      %v725 = vmul.f32 %v689, %v700
      %v726 = vmul.f32 %v690, %v700
      %v727 = vmul.f32 %v691, %v700
      %v728 = vmul.f32 %v692, %v700
      %v729 = vmul.f32 %v693, %v700
      %v730 = vmul.f32 %v694, %v700
      %v731 = vmul.f32 %v695, %v700
      %v732 = vmul.f32 %v696, %v700
      %v733 = vadd.f32 %v633, %v701
      %v734 = vadd.f32 %v634, %v702
      %v735 = vadd.f32 %v635, %v703
      %v736 = vadd.f32 %v636, %v704
      %v737 = vadd.f32 %v637, %v705
      %v738 = vadd.f32 %v638, %v706
      %v739 = vadd.f32 %v639, %v707
      %v740 = vadd.f32 %v640, %v708
      %v741 = vadd.f32 %v641, %v709
      %v742 = vadd.f32 %v642, %v710
      %v743 = vadd.f32 %v643, %v711
      %v744 = vadd.f32 %v644, %v712
      %v745 = vadd.f32 %v645, %v713
      %v746 = vadd.f32 %v646, %v714
      %v747 = vadd.f32 %v647, %v715
      %v748 = vadd.f32 %v648, %v716
      %v749 = vadd.f32 %v649, %v717
      %v750 = vadd.f32 %v650, %v718
      %v751 = vadd.f32 %v651, %v719
      %v752 = vadd.f32 %v652, %v720
      %v753 = vadd.f32 %v653, %v721
      %v754 = vadd.f32 %v654, %v722
      %v755 = vadd.f32 %v655, %v723
      %v756 = vadd.f32 %v656, %v724
      %v757 = vadd.f32 %v657, %v725
      %v758 = vadd.f32 %v658, %v726
      %v759 = vadd.f32 %v659, %v727
      %v760 = vadd.f32 %v660, %v728
      %v761 = vadd.f32 %v661, %v729
      %v762 = vadd.f32 %v662, %v730
      %v763 = vadd.f32 %v663, %v731
      %v764 = vadd.f32 %v664, %v732
      %v765 = vld [vmem:[%s330 + $0x8] sm:$0xff]
      %v766 = vld [vmem:[%s330 + $0x10] sm:$0xff]
      %v767 = vld [vmem:[%s330 + $0x28] sm:$0xff]
      %v768 = vld [vmem:[%s330 + $0x30] sm:$0xff]
      %v769 = vld [vmem:[%s330 + $0x48] sm:$0xff]
      %v770 = vld [vmem:[%s330 + $0x50] sm:$0xff]
      %v771 = vld [vmem:[%s330 + $0x68] sm:$0xff]
      %v772 = vld [vmem:[%s330 + $0x70] sm:$0xff]
      %v773 = vld [vmem:[%s330 + $0x88] sm:$0xff]
      %v774 = vld [vmem:[%s330 + $0x90] sm:$0xff]
      %v775 = vld [vmem:[%s330 + $0xa8] sm:$0xff]
      %v776 = vld [vmem:[%s330 + $0xb0] sm:$0xff]
      %v777 = vld [vmem:[%s330 + $0xc8] sm:$0xff]
      %v778 = vld [vmem:[%s330 + $0xd0] sm:$0xff]
      %v779 = vld [vmem:[%s330 + $0xe8] sm:$0xff]
      %v780 = vld [vmem:[%s330 + $0xf0] sm:$0xff]
      %v781 = vld [vmem:[%s330 + $0x108] sm:$0xff]
      %v782 = vld [vmem:[%s330 + $0x110] sm:$0xff]
      %v783 = vld [vmem:[%s330 + $0x128] sm:$0xff]
      %v784 = vld [vmem:[%s330 + $0x130] sm:$0xff]
      %v785 = vld [vmem:[%s330 + $0x148] sm:$0xff]
      %v786 = vld [vmem:[%s330 + $0x150] sm:$0xff]
      %v787 = vld [vmem:[%s330 + $0x168] sm:$0xff]
      %v788 = vld [vmem:[%s330 + $0x170] sm:$0xff]
      %v789 = vld [vmem:[%s330 + $0x188] sm:$0xff]
      %v790 = vld [vmem:[%s330 + $0x190] sm:$0xff]
      %v791 = vld [vmem:[%s330 + $0x1a8] sm:$0xff]
      %v792 = vld [vmem:[%s330 + $0x1b0] sm:$0xff]
      %v793 = vld [vmem:[%s330 + $0x1c8] sm:$0xff]
      %v794 = vld [vmem:[%s330 + $0x1d0] sm:$0xff]
      %v795 = vld [vmem:[%s330 + $0x1e8] sm:$0xff]
      %v796 = vld [vmem:[%s330 + $0x1f0] sm:$0xff]
      %v797 = vlaneseq
      %v798 = vshrl.u32 %v797, 7
      %v799 = vsub.s32 4, %v798
      %v800 = vrot.slane %v363, %v799
      %v801 = vmul.f32 %v765, %v800
      %v802 = vmul.f32 %v766, %v800
      %v803 = vmul.f32 %v767, %v800
      %v804 = vmul.f32 %v768, %v800
      %v805 = vmul.f32 %v769, %v800
      %v806 = vmul.f32 %v770, %v800
      %v807 = vmul.f32 %v771, %v800
      %v808 = vmul.f32 %v772, %v800
      %v809 = vmul.f32 %v773, %v800
      %v810 = vmul.f32 %v774, %v800
      %v811 = vmul.f32 %v775, %v800
      %v812 = vmul.f32 %v776, %v800
      %v813 = vmul.f32 %v777, %v800
      %v814 = vmul.f32 %v778, %v800
      %v815 = vmul.f32 %v779, %v800
      %v816 = vmul.f32 %v780, %v800
      %v817 = vmul.f32 %v781, %v800
      %v818 = vmul.f32 %v782, %v800
      %v819 = vmul.f32 %v783, %v800
      %v820 = vmul.f32 %v784, %v800
      %v821 = vmul.f32 %v785, %v800
      %v822 = vmul.f32 %v786, %v800
      %v823 = vmul.f32 %v787, %v800
      %v824 = vmul.f32 %v788, %v800
      %v825 = vmul.f32 %v789, %v800
      %v826 = vmul.f32 %v790, %v800
      %v827 = vmul.f32 %v791, %v800
      %v828 = vmul.f32 %v792, %v800
      %v829 = vmul.f32 %v793, %v800
      %v830 = vmul.f32 %v794, %v800
      %v831 = vmul.f32 %v795, %v800
      %v832 = vmul.f32 %v796, %v800
      %v833 = vadd.f32 %v733, %v801
      %v834 = vadd.f32 %v734, %v802
      %v835 = vadd.f32 %v735, %v803
      %v836 = vadd.f32 %v736, %v804
      %v837 = vadd.f32 %v737, %v805
      %v838 = vadd.f32 %v738, %v806
      %v839 = vadd.f32 %v739, %v807
      %v840 = vadd.f32 %v740, %v808
      %v841 = vadd.f32 %v741, %v809
      %v842 = vadd.f32 %v742, %v810
      %v843 = vadd.f32 %v743, %v811
      %v844 = vadd.f32 %v744, %v812
      %v845 = vadd.f32 %v745, %v813
      %v846 = vadd.f32 %v746, %v814
      %v847 = vadd.f32 %v747, %v815
      %v848 = vadd.f32 %v748, %v816
      %v849 = vadd.f32 %v749, %v817
      %v850 = vadd.f32 %v750, %v818
      %v851 = vadd.f32 %v751, %v819
      %v852 = vadd.f32 %v752, %v820
      %v853 = vadd.f32 %v753, %v821
      %v854 = vadd.f32 %v754, %v822
      %v855 = vadd.f32 %v755, %v823
      %v856 = vadd.f32 %v756, %v824
      %v857 = vadd.f32 %v757, %v825
      %v858 = vadd.f32 %v758, %v826
      %v859 = vadd.f32 %v759, %v827
      %v860 = vadd.f32 %v760, %v828
      %v861 = vadd.f32 %v761, %v829
      %v862 = vadd.f32 %v762, %v830
      %v863 = vadd.f32 %v763, %v831
      %v864 = vadd.f32 %v764, %v832
      %v865 = vld [vmem:[%s330 + $0x9] sm:$0xff]
      %v866 = vld [vmem:[%s330 + $0x11] sm:$0xff]
      %v867 = vld [vmem:[%s330 + $0x29] sm:$0xff]
      %v868 = vld [vmem:[%s330 + $0x31] sm:$0xff]
      %v869 = vld [vmem:[%s330 + $0x49] sm:$0xff]
      %v870 = vld [vmem:[%s330 + $0x51] sm:$0xff]
      %v871 = vld [vmem:[%s330 + $0x69] sm:$0xff]
      %v872 = vld [vmem:[%s330 + $0x71] sm:$0xff]
      %v873 = vld [vmem:[%s330 + $0x89] sm:$0xff]
      %v874 = vld [vmem:[%s330 + $0x91] sm:$0xff]
      %v875 = vld [vmem:[%s330 + $0xa9] sm:$0xff]
      %v876 = vld [vmem:[%s330 + $0xb1] sm:$0xff]
      %v877 = vld [vmem:[%s330 + $0xc9] sm:$0xff]
      %v878 = vld [vmem:[%s330 + $0xd1] sm:$0xff]
      %v879 = vld [vmem:[%s330 + $0xe9] sm:$0xff]
      %v880 = vld [vmem:[%s330 + $0xf1] sm:$0xff]
      %v881 = vld [vmem:[%s330 + $0x109] sm:$0xff]
      %v882 = vld [vmem:[%s330 + $0x111] sm:$0xff]
      %v883 = vld [vmem:[%s330 + $0x129] sm:$0xff]
      %v884 = vld [vmem:[%s330 + $0x131] sm:$0xff]
      %v885 = vld [vmem:[%s330 + $0x149] sm:$0xff]
      %v886 = vld [vmem:[%s330 + $0x151] sm:$0xff]
      %v887 = vld [vmem:[%s330 + $0x169] sm:$0xff]
      %v888 = vld [vmem:[%s330 + $0x171] sm:$0xff]
      %v889 = vld [vmem:[%s330 + $0x189] sm:$0xff]
      %v890 = vld [vmem:[%s330 + $0x191] sm:$0xff]
      %v891 = vld [vmem:[%s330 + $0x1a9] sm:$0xff]
      %v892 = vld [vmem:[%s330 + $0x1b1] sm:$0xff]
      %v893 = vld [vmem:[%s330 + $0x1c9] sm:$0xff]
      %v894 = vld [vmem:[%s330 + $0x1d1] sm:$0xff]
      %v895 = vld [vmem:[%s330 + $0x1e9] sm:$0xff]
      %v896 = vld [vmem:[%s330 + $0x1f1] sm:$0xff]
      %v897 = vlaneseq
      %v898 = vshrl.u32 %v897, 7
      %v899 = vsub.s32 5, %v898
      %v900 = vrot.slane %v363, %v899
      %v901 = vmul.f32 %v865, %v900
      %v902 = vmul.f32 %v866, %v900
      %v903 = vmul.f32 %v867, %v900
      %v904 = vmul.f32 %v868, %v900
      %v905 = vmul.f32 %v869, %v900
      %v906 = vmul.f32 %v870, %v900
      %v907 = vmul.f32 %v871, %v900
      %v908 = vmul.f32 %v872, %v900
      %v909 = vmul.f32 %v873, %v900
      %v910 = vmul.f32 %v874, %v900
      %v911 = vmul.f32 %v875, %v900
      %v912 = vmul.f32 %v876, %v900
      %v913 = vmul.f32 %v877, %v900
      %v914 = vmul.f32 %v878, %v900
      %v915 = vmul.f32 %v879, %v900
      %v916 = vmul.f32 %v880, %v900
      %v917 = vmul.f32 %v881, %v900
      %v918 = vmul.f32 %v882, %v900
      %v919 = vmul.f32 %v883, %v900
      %v920 = vmul.f32 %v884, %v900
      %v921 = vmul.f32 %v885, %v900
      %v922 = vmul.f32 %v886, %v900
      %v923 = vmul.f32 %v887, %v900
      %v924 = vmul.f32 %v888, %v900
      %v925 = vmul.f32 %v889, %v900
      %v926 = vmul.f32 %v890, %v900
      %v927 = vmul.f32 %v891, %v900
      %v928 = vmul.f32 %v892, %v900
      %v929 = vmul.f32 %v893, %v900
      %v930 = vmul.f32 %v894, %v900
      %v931 = vmul.f32 %v895, %v900
      %v932 = vmul.f32 %v896, %v900
      %v933 = vadd.f32 %v833, %v901
      %v934 = vadd.f32 %v834, %v902
      %v935 = vadd.f32 %v835, %v903
      %v936 = vadd.f32 %v836, %v904
      %v937 = vadd.f32 %v837, %v905
      %v938 = vadd.f32 %v838, %v906
      %v939 = vadd.f32 %v839, %v907
      %v940 = vadd.f32 %v840, %v908
      %v941 = vadd.f32 %v841, %v909
      %v942 = vadd.f32 %v842, %v910
      %v943 = vadd.f32 %v843, %v911
      %v944 = vadd.f32 %v844, %v912
      %v945 = vadd.f32 %v845, %v913
      %v946 = vadd.f32 %v846, %v914
      %v947 = vadd.f32 %v847, %v915
      %v948 = vadd.f32 %v848, %v916
      %v949 = vadd.f32 %v849, %v917
      %v950 = vadd.f32 %v850, %v918
      %v951 = vadd.f32 %v851, %v919
      %v952 = vadd.f32 %v852, %v920
      %v953 = vadd.f32 %v853, %v921
      %v954 = vadd.f32 %v854, %v922
      %v955 = vadd.f32 %v855, %v923
      %v956 = vadd.f32 %v856, %v924
      %v957 = vadd.f32 %v857, %v925
      %v958 = vadd.f32 %v858, %v926
      %v959 = vadd.f32 %v859, %v927
      %v960 = vadd.f32 %v860, %v928
      %v961 = vadd.f32 %v861, %v929
      %v962 = vadd.f32 %v862, %v930
      %v963 = vadd.f32 %v863, %v931
      %v964 = vadd.f32 %v864, %v932
      %s965 = scalar_lea.vmem [#allocation2], 64
      %v966 = vld [vmem:[%s965 + $0x7] sm:$0xff]
      %v967 = vld [vmem:[%s965 + $0xf] sm:$0xff]
      %v968 = vld [vmem:[%s965 + $0x27] sm:$0xff]
      %v969 = vld [vmem:[%s965 + $0x2f] sm:$0xff]
      %v970 = vld [vmem:[%s965 + $0x47] sm:$0xff]
      %v971 = vld [vmem:[%s965 + $0x4f] sm:$0xff]
      %v972 = vld [vmem:[%s965 + $0x67] sm:$0xff]
      %v973 = vld [vmem:[%s965 + $0x6f] sm:$0xff]
      %v974 = vld [vmem:[%s965 + $0x87] sm:$0xff]
      %v975 = vld [vmem:[%s965 + $0x8f] sm:$0xff]
      %v976 = vld [vmem:[%s965 + $0xa7] sm:$0xff]
      %v977 = vld [vmem:[%s965 + $0xaf] sm:$0xff]
      %v978 = vld [vmem:[%s965 + $0xc7] sm:$0xff]
      %v979 = vld [vmem:[%s965 + $0xcf] sm:$0xff]
      %v980 = vld [vmem:[%s965 + $0xe7] sm:$0xff]
      %v981 = vld [vmem:[%s965 + $0xef] sm:$0xff]
      %v982 = vld [vmem:[%s965 + $0x107] sm:$0xff]
      %v983 = vld [vmem:[%s965 + $0x10f] sm:$0xff]
      %v984 = vld [vmem:[%s965 + $0x127] sm:$0xff]
      %v985 = vld [vmem:[%s965 + $0x12f] sm:$0xff]
      %v986 = vld [vmem:[%s965 + $0x147] sm:$0xff]
      %v987 = vld [vmem:[%s965 + $0x14f] sm:$0xff]
      %v988 = vld [vmem:[%s965 + $0x167] sm:$0xff]
      %v989 = vld [vmem:[%s965 + $0x16f] sm:$0xff]
      %v990 = vld [vmem:[%s965 + $0x187] sm:$0xff]
      %v991 = vld [vmem:[%s965 + $0x18f] sm:$0xff]
      %v992 = vld [vmem:[%s965 + $0x1a7] sm:$0xff]
      %v993 = vld [vmem:[%s965 + $0x1af] sm:$0xff]
      %v994 = vld [vmem:[%s965 + $0x1c7] sm:$0xff]
      %v995 = vld [vmem:[%s965 + $0x1cf] sm:$0xff]
      %v996 = vld [vmem:[%s965 + $0x1e7] sm:$0xff]
      %v997 = vld [vmem:[%s965 + $0x1ef] sm:$0xff]
      %v998 = vlaneseq
      %v999 = vshrl.u32 %v998, 7
      %v1000 = vsub.s32 6, %v999
      %v1001 = vrot.slane %v363, %v1000
      %v1002 = vmul.f32 %v966, %v1001
      %v1003 = vmul.f32 %v967, %v1001
      %v1004 = vmul.f32 %v968, %v1001
      %v1005 = vmul.f32 %v969, %v1001
      %v1006 = vmul.f32 %v970, %v1001
      %v1007 = vmul.f32 %v971, %v1001
      %v1008 = vmul.f32 %v972, %v1001
      %v1009 = vmul.f32 %v973, %v1001
      %v1010 = vmul.f32 %v974, %v1001
      %v1011 = vmul.f32 %v975, %v1001
      %v1012 = vmul.f32 %v976, %v1001
      %v1013 = vmul.f32 %v977, %v1001
      %v1014 = vmul.f32 %v978, %v1001
      %v1015 = vmul.f32 %v979, %v1001
      %v1016 = vmul.f32 %v980, %v1001
      %v1017 = vmul.f32 %v981, %v1001
      %v1018 = vmul.f32 %v982, %v1001
      %v1019 = vmul.f32 %v983, %v1001
      %v1020 = vmul.f32 %v984, %v1001
      %v1021 = vmul.f32 %v985, %v1001
      %v1022 = vmul.f32 %v986, %v1001
      %v1023 = vmul.f32 %v987, %v1001
      %v1024 = vmul.f32 %v988, %v1001
      %v1025 = vmul.f32 %v989, %v1001
      %v1026 = vmul.f32 %v990, %v1001
      %v1027 = vmul.f32 %v991, %v1001
      %v1028 = vmul.f32 %v992, %v1001
      %v1029 = vmul.f32 %v993, %v1001
      %v1030 = vmul.f32 %v994, %v1001
      %v1031 = vmul.f32 %v995, %v1001
      %v1032 = vmul.f32 %v996, %v1001
      %v1033 = vmul.f32 %v997, %v1001
      %v1034 = vadd.f32 %v933, %v1002
      %v1035 = vadd.f32 %v934, %v1003
      %v1036 = vadd.f32 %v935, %v1004
      %v1037 = vadd.f32 %v936, %v1005
      %v1038 = vadd.f32 %v937, %v1006
      %v1039 = vadd.f32 %v938, %v1007
      %v1040 = vadd.f32 %v939, %v1008
      %v1041 = vadd.f32 %v940, %v1009
      %v1042 = vadd.f32 %v941, %v1010
      %v1043 = vadd.f32 %v942, %v1011
      %v1044 = vadd.f32 %v943, %v1012
      %v1045 = vadd.f32 %v944, %v1013
      %v1046 = vadd.f32 %v945, %v1014
      %v1047 = vadd.f32 %v946, %v1015
      %v1048 = vadd.f32 %v947, %v1016
      %v1049 = vadd.f32 %v948, %v1017
      %v1050 = vadd.f32 %v949, %v1018
      %v1051 = vadd.f32 %v950, %v1019
      %v1052 = vadd.f32 %v951, %v1020
      %v1053 = vadd.f32 %v952, %v1021
      %v1054 = vadd.f32 %v953, %v1022
      %v1055 = vadd.f32 %v954, %v1023
      %v1056 = vadd.f32 %v955, %v1024
      %v1057 = vadd.f32 %v956, %v1025
      %v1058 = vadd.f32 %v957, %v1026
      %v1059 = vadd.f32 %v958, %v1027
      %v1060 = vadd.f32 %v959, %v1028
      %v1061 = vadd.f32 %v960, %v1029
      %v1062 = vadd.f32 %v961, %v1030
      %v1063 = vadd.f32 %v962, %v1031
      %v1064 = vadd.f32 %v963, %v1032
      %v1065 = vadd.f32 %v964, %v1033
      %v1066 = vld [vmem:[%s965 + $0x8] sm:$0xff]
      %v1067 = vld [vmem:[%s965 + $0x10] sm:$0xff]
      %v1068 = vld [vmem:[%s965 + $0x28] sm:$0xff]
      %v1069 = vld [vmem:[%s965 + $0x30] sm:$0xff]
      %v1070 = vld [vmem:[%s965 + $0x48] sm:$0xff]
      %v1071 = vld [vmem:[%s965 + $0x50] sm:$0xff]
      %v1072 = vld [vmem:[%s965 + $0x68] sm:$0xff]
      %v1073 = vld [vmem:[%s965 + $0x70] sm:$0xff]
      %v1074 = vld [vmem:[%s965 + $0x88] sm:$0xff]
      %v1075 = vld [vmem:[%s965 + $0x90] sm:$0xff]
      %v1076 = vld [vmem:[%s965 + $0xa8] sm:$0xff]
      %v1077 = vld [vmem:[%s965 + $0xb0] sm:$0xff]
      %v1078 = vld [vmem:[%s965 + $0xc8] sm:$0xff]
      %v1079 = vld [vmem:[%s965 + $0xd0] sm:$0xff]
      %v1080 = vld [vmem:[%s965 + $0xe8] sm:$0xff]
      %v1081 = vld [vmem:[%s965 + $0xf0] sm:$0xff]
      %v1082 = vld [vmem:[%s965 + $0x108] sm:$0xff]
      %v1083 = vld [vmem:[%s965 + $0x110] sm:$0xff]
      %v1084 = vld [vmem:[%s965 + $0x128] sm:$0xff]
      %v1085 = vld [vmem:[%s965 + $0x130] sm:$0xff]
      %v1086 = vld [vmem:[%s965 + $0x148] sm:$0xff]
      %v1087 = vld [vmem:[%s965 + $0x150] sm:$0xff]
      %v1088 = vld [vmem:[%s965 + $0x168] sm:$0xff]
      %v1089 = vld [vmem:[%s965 + $0x170] sm:$0xff]
      %v1090 = vld [vmem:[%s965 + $0x188] sm:$0xff]
      %v1091 = vld [vmem:[%s965 + $0x190] sm:$0xff]
      %v1092 = vld [vmem:[%s965 + $0x1a8] sm:$0xff]
      %v1093 = vld [vmem:[%s965 + $0x1b0] sm:$0xff]
      %v1094 = vld [vmem:[%s965 + $0x1c8] sm:$0xff]
      %v1095 = vld [vmem:[%s965 + $0x1d0] sm:$0xff]
      %v1096 = vld [vmem:[%s965 + $0x1e8] sm:$0xff]
      %v1097 = vld [vmem:[%s965 + $0x1f0] sm:$0xff]
      %v1098 = vlaneseq
      %v1099 = vshrl.u32 %v1098, 7
      %v1100 = vsub.s32 7, %v1099
      %v1101 = vrot.slane %v363, %v1100
      %v1102 = vmul.f32 %v1066, %v1101
      %v1103 = vmul.f32 %v1067, %v1101
      %v1104 = vmul.f32 %v1068, %v1101
      %v1105 = vmul.f32 %v1069, %v1101
      %v1106 = vmul.f32 %v1070, %v1101
      %v1107 = vmul.f32 %v1071, %v1101
      %v1108 = vmul.f32 %v1072, %v1101
      %v1109 = vmul.f32 %v1073, %v1101
      %v1110 = vmul.f32 %v1074, %v1101
      %v1111 = vmul.f32 %v1075, %v1101
      %v1112 = vmul.f32 %v1076, %v1101
      %v1113 = vmul.f32 %v1077, %v1101
      %v1114 = vmul.f32 %v1078, %v1101
      %v1115 = vmul.f32 %v1079, %v1101
      %v1116 = vmul.f32 %v1080, %v1101
      %v1117 = vmul.f32 %v1081, %v1101
      %v1118 = vmul.f32 %v1082, %v1101
      %v1119 = vmul.f32 %v1083, %v1101
      %v1120 = vmul.f32 %v1084, %v1101
      %v1121 = vmul.f32 %v1085, %v1101
      %v1122 = vmul.f32 %v1086, %v1101
      %v1123 = vmul.f32 %v1087, %v1101
      %v1124 = vmul.f32 %v1088, %v1101
      %v1125 = vmul.f32 %v1089, %v1101
      %v1126 = vmul.f32 %v1090, %v1101
      %v1127 = vmul.f32 %v1091, %v1101
      %v1128 = vmul.f32 %v1092, %v1101
      %v1129 = vmul.f32 %v1093, %v1101
      %v1130 = vmul.f32 %v1094, %v1101
      %v1131 = vmul.f32 %v1095, %v1101
      %v1132 = vmul.f32 %v1096, %v1101
      %v1133 = vmul.f32 %v1097, %v1101
      %v1134 = vadd.f32 %v1034, %v1102
      %v1135 = vadd.f32 %v1035, %v1103
      %v1136 = vadd.f32 %v1036, %v1104
      %v1137 = vadd.f32 %v1037, %v1105
      %v1138 = vadd.f32 %v1038, %v1106
      %v1139 = vadd.f32 %v1039, %v1107
      %v1140 = vadd.f32 %v1040, %v1108
      %v1141 = vadd.f32 %v1041, %v1109
      %v1142 = vadd.f32 %v1042, %v1110
      %v1143 = vadd.f32 %v1043, %v1111
      %v1144 = vadd.f32 %v1044, %v1112
      %v1145 = vadd.f32 %v1045, %v1113
      %v1146 = vadd.f32 %v1046, %v1114
      %v1147 = vadd.f32 %v1047, %v1115
      %v1148 = vadd.f32 %v1048, %v1116
      %v1149 = vadd.f32 %v1049, %v1117
      %v1150 = vadd.f32 %v1050, %v1118
      %v1151 = vadd.f32 %v1051, %v1119
      %v1152 = vadd.f32 %v1052, %v1120
      %v1153 = vadd.f32 %v1053, %v1121
      %v1154 = vadd.f32 %v1054, %v1122
      %v1155 = vadd.f32 %v1055, %v1123
      %v1156 = vadd.f32 %v1056, %v1124
      %v1157 = vadd.f32 %v1057, %v1125
      %v1158 = vadd.f32 %v1058, %v1126
      %v1159 = vadd.f32 %v1059, %v1127
      %v1160 = vadd.f32 %v1060, %v1128
      %v1161 = vadd.f32 %v1061, %v1129
      %v1162 = vadd.f32 %v1062, %v1130
      %v1163 = vadd.f32 %v1063, %v1131
      %v1164 = vadd.f32 %v1064, %v1132
      %v1165 = vadd.f32 %v1065, %v1133
      %v1166 = vld [vmem:[%s965 + $0x9] sm:$0xff]
      %v1167 = vld [vmem:[%s965 + $0x11] sm:$0xff]
      %v1168 = vld [vmem:[%s965 + $0x29] sm:$0xff]
      %v1169 = vld [vmem:[%s965 + $0x31] sm:$0xff]
      %v1170 = vld [vmem:[%s965 + $0x49] sm:$0xff]
      %v1171 = vld [vmem:[%s965 + $0x51] sm:$0xff]
      %v1172 = vld [vmem:[%s965 + $0x69] sm:$0xff]
      %v1173 = vld [vmem:[%s965 + $0x71] sm:$0xff]
      %v1174 = vld [vmem:[%s965 + $0x89] sm:$0xff]
      %v1175 = vld [vmem:[%s965 + $0x91] sm:$0xff]
      %v1176 = vld [vmem:[%s965 + $0xa9] sm:$0xff]
      %v1177 = vld [vmem:[%s965 + $0xb1] sm:$0xff]
      %v1178 = vld [vmem:[%s965 + $0xc9] sm:$0xff]
      %v1179 = vld [vmem:[%s965 + $0xd1] sm:$0xff]
      %v1180 = vld [vmem:[%s965 + $0xe9] sm:$0xff]
      %v1181 = vld [vmem:[%s965 + $0xf1] sm:$0xff]
      %v1182 = vld [vmem:[%s965 + $0x109] sm:$0xff]
      %v1183 = vld [vmem:[%s965 + $0x111] sm:$0xff]
      %v1184 = vld [vmem:[%s965 + $0x129] sm:$0xff]
      %v1185 = vld [vmem:[%s965 + $0x131] sm:$0xff]
      %v1186 = vld [vmem:[%s965 + $0x149] sm:$0xff]
      %v1187 = vld [vmem:[%s965 + $0x151] sm:$0xff]
      %v1188 = vld [vmem:[%s965 + $0x169] sm:$0xff]
      %v1189 = vld [vmem:[%s965 + $0x171] sm:$0xff]
      %v1190 = vld [vmem:[%s965 + $0x189] sm:$0xff]
      %v1191 = vld [vmem:[%s965 + $0x191] sm:$0xff]
      %v1192 = vld [vmem:[%s965 + $0x1a9] sm:$0xff]
      %v1193 = vld [vmem:[%s965 + $0x1b1] sm:$0xff]
      %v1194 = vld [vmem:[%s965 + $0x1c9] sm:$0xff]
      %v1195 = vld [vmem:[%s965 + $0x1d1] sm:$0xff]
      %v1196 = vld [vmem:[%s965 + $0x1e9] sm:$0xff]
      %v1197 = vld [vmem:[%s965 + $0x1f1] sm:$0xff]
      %v1198 = vlaneseq
      %v1199 = vshrl.u32 %v1198, 7
      %v1200 = vsub.s32 0, %v1199
      %v1201 = vrot.slane %v364, %v1200
      %v1202 = vmul.f32 %v1166, %v1201
      %v1203 = vmul.f32 %v1167, %v1201
      %v1204 = vmul.f32 %v1168, %v1201
      %v1205 = vmul.f32 %v1169, %v1201
      %v1206 = vmul.f32 %v1170, %v1201
      %v1207 = vmul.f32 %v1171, %v1201
      %v1208 = vmul.f32 %v1172, %v1201
      %v1209 = vmul.f32 %v1173, %v1201
      %v1210 = vmul.f32 %v1174, %v1201
      %v1211 = vmul.f32 %v1175, %v1201
      %v1212 = vmul.f32 %v1176, %v1201
      %v1213 = vmul.f32 %v1177, %v1201
      %v1214 = vmul.f32 %v1178, %v1201
      %v1215 = vmul.f32 %v1179, %v1201
      %v1216 = vmul.f32 %v1180, %v1201
      %v1217 = vmul.f32 %v1181, %v1201
      %v1218 = vmul.f32 %v1182, %v1201
      %v1219 = vmul.f32 %v1183, %v1201
      %v1220 = vmul.f32 %v1184, %v1201
      %v1221 = vmul.f32 %v1185, %v1201
      %v1222 = vmul.f32 %v1186, %v1201
      %v1223 = vmul.f32 %v1187, %v1201
      %v1224 = vmul.f32 %v1188, %v1201
      %v1225 = vmul.f32 %v1189, %v1201
      %v1226 = vmul.f32 %v1190, %v1201
      %v1227 = vmul.f32 %v1191, %v1201
      %v1228 = vmul.f32 %v1192, %v1201
      %v1229 = vmul.f32 %v1193, %v1201
      %v1230 = vmul.f32 %v1194, %v1201
      %v1231 = vmul.f32 %v1195, %v1201
      %v1232 = vmul.f32 %v1196, %v1201
      %v1233 = vmul.f32 %v1197, %v1201
      %v1234 = vadd.f32 %v1134, %v1202
      %v1235 = vadd.f32 %v1135, %v1203
      %v1236 = vadd.f32 %v1136, %v1204
      %v1237 = vadd.f32 %v1137, %v1205
      %v1238 = vadd.f32 %v1138, %v1206
      %v1239 = vadd.f32 %v1139, %v1207
      %v1240 = vadd.f32 %v1140, %v1208
      %v1241 = vadd.f32 %v1141, %v1209
      %v1242 = vadd.f32 %v1142, %v1210
      %v1243 = vadd.f32 %v1143, %v1211
      %v1244 = vadd.f32 %v1144, %v1212
      %v1245 = vadd.f32 %v1145, %v1213
      %v1246 = vadd.f32 %v1146, %v1214
      %v1247 = vadd.f32 %v1147, %v1215
      %v1248 = vadd.f32 %v1148, %v1216
      %v1249 = vadd.f32 %v1149, %v1217
      %v1250 = vadd.f32 %v1150, %v1218
      %v1251 = vadd.f32 %v1151, %v1219
      %v1252 = vadd.f32 %v1152, %v1220
      %v1253 = vadd.f32 %v1153, %v1221
      %v1254 = vadd.f32 %v1154, %v1222
      %v1255 = vadd.f32 %v1155, %v1223
      %v1256 = vadd.f32 %v1156, %v1224
      %v1257 = vadd.f32 %v1157, %v1225
      %v1258 = vadd.f32 %v1158, %v1226
      %v1259 = vadd.f32 %v1159, %v1227
      %v1260 = vadd.f32 %v1160, %v1228
      %v1261 = vadd.f32 %v1161, %v1229
      %v1262 = vadd.f32 %v1162, %v1230
      %v1263 = vadd.f32 %v1163, %v1231
      %v1264 = vadd.f32 %v1164, %v1232
      %v1265 = vadd.f32 %v1165, %v1233
      %v1266 = vld [vmem:[%s2] sm:$0x1]
      %v1268 = vlaneseq
      %v1269 = vshrl.u32 %v1268, 7
      %v1270 = vsub.s32 0, %v1269
      %v1271 = vrot.slane %v1266, %v1270
      %v1273 = vadd.f32 %v1234, %v1271
      %v1274 = vadd.f32 %v1235, %v1271
      %v1275 = vadd.f32 %v1236, %v1271
      %v1276 = vadd.f32 %v1237, %v1271
      %v1277 = vadd.f32 %v1238, %v1271
      %v1278 = vadd.f32 %v1239, %v1271
      %v1279 = vadd.f32 %v1240, %v1271
      %v1280 = vadd.f32 %v1241, %v1271
      %v1281 = vadd.f32 %v1242, %v1271
      %v1282 = vadd.f32 %v1243, %v1271
      %v1283 = vadd.f32 %v1244, %v1271
      %v1284 = vadd.f32 %v1245, %v1271
      %v1285 = vadd.f32 %v1246, %v1271
      %v1286 = vadd.f32 %v1247, %v1271
      %v1287 = vadd.f32 %v1248, %v1271
      %v1288 = vadd.f32 %v1249, %v1271
      %v1289 = vadd.f32 %v1250, %v1271
      %v1290 = vadd.f32 %v1251, %v1271
      %v1291 = vadd.f32 %v1252, %v1271
      %v1292 = vadd.f32 %v1253, %v1271
      %v1293 = vadd.f32 %v1254, %v1271
      %v1294 = vadd.f32 %v1255, %v1271
      %v1295 = vadd.f32 %v1256, %v1271
      %v1296 = vadd.f32 %v1257, %v1271
      %v1297 = vadd.f32 %v1258, %v1271
      %v1298 = vadd.f32 %v1259, %v1271
      %v1299 = vadd.f32 %v1260, %v1271
      %v1300 = vadd.f32 %v1261, %v1271
      %v1301 = vadd.f32 %v1262, %v1271
      %v1302 = vadd.f32 %v1263, %v1271
      %v1303 = vadd.f32 %v1264, %v1271
      %v1304 = vadd.f32 %v1265, %v1271
      %v1305 = vld [vmem:[%s3] sm:$0xff]
      %v1306 = vld [vmem:[%s3 + $0x8] sm:$0xff]
      %v1307 = vld [vmem:[%s3 + $0x10] sm:$0xff]
      %v1308 = vld [vmem:[%s3 + $0x18] sm:$0xff]
      %v1309 = vld [vmem:[%s4] sm:$0x1]
      %v1311 = vlaneseq
      %v1312 = vshrl.u32 %v1311, 7
      %v1313 = vsub.s32 0, %v1312
      %v1314 = vrot.slane %v1309, %v1313
      %v1317 = vsel %vm225, %v1273, 0
      %v1320 = vsel %vm225, %v1274, 0
      %v1323 = vsel %vm225, %v1275, 0
      %v1326 = vsel %vm225, %v1276, 0
      %v1329 = vsel %vm225, %v1277, 0
      %v1332 = vsel %vm225, %v1278, 0
      %v1335 = vsel %vm225, %v1279, 0
      %v1338 = vsel %vm225, %v1280, 0
      %v1341 = vsel %vm225, %v1281, 0
      %v1344 = vsel %vm225, %v1282, 0
      %v1347 = vsel %vm225, %v1283, 0
      %v1350 = vsel %vm225, %v1284, 0
      %v1353 = vsel %vm225, %v1285, 0
      %v1356 = vsel %vm225, %v1286, 0
      %v1359 = vsel %vm225, %v1287, 0
      %v1362 = vsel %vm225, %v1288, 0
      %v1365 = vsel %vm225, %v1289, 0
      %v1368 = vsel %vm225, %v1290, 0
      %v1371 = vsel %vm225, %v1291, 0
      %v1374 = vsel %vm225, %v1292, 0
      %v1377 = vsel %vm225, %v1293, 0
      %v1380 = vsel %vm225, %v1294, 0
      %v1383 = vsel %vm225, %v1295, 0
      %v1386 = vsel %vm225, %v1296, 0
      %v1389 = vsel %vm225, %v1297, 0
      %v1392 = vsel %vm225, %v1298, 0
      %v1395 = vsel %vm225, %v1299, 0
      %v1398 = vsel %vm225, %v1300, 0
      %v1401 = vsel %vm225, %v1301, 0
      %v1404 = vsel %vm225, %v1302, 0
      %v1407 = vsel %vm225, %v1303, 0
      %v1410 = vsel %vm225, %v1304, 0
      %1412 = vmatprep.subr.mxu0 0.0
      %1413 = vmatpush1.msra.mxu0 0.0
      %1414 = vmatprep.subr.mxu0 0.0
      %1415 = vmatpush1.msra.mxu0 0.0
      %1416 = vmatprep.subr.mxu0 0.0
      %1417 = vmatpush1.msra.mxu0 0.0
      %1418 = vmatprep.subr.mxu0 0.0
      %1419 = vmatpush1.msra.mxu0 0.0
      %1420 = vmatprep.subr.mxu0 0.0
      %1421 = vmatpush1.msra.mxu0 0.0
      %1422 = vmatprep.subr.mxu0 0.0
      %1423 = vmatpush1.msra.mxu0 0.0
      %1424 = vmatprep.subr.mxu0 0.0
      %1425 = vmatpush1.msra.mxu0 0.0
      %1426 = vmatprep.subr.mxu0 0.0
      %1427 = vmatpush1.msra.mxu0 0.0
      %1428 = vmatprep.subr.mxu0 0.0
      %1429 = vmatpush1.msra.mxu0 0.0
      %1430 = vmatprep.subr.mxu0 0.0
      %1431 = vmatpush1.msra.mxu0 0.0
      %1432 = vmatprep.subr.mxu0 0.0
      %1433 = vmatpush1.msra.mxu0 0.0
      %1434 = vmatprep.subr.mxu0 0.0
      %1435 = vmatpush1.msra.mxu0 0.0
      %1436 = vmatprep.subr.mxu0 0.0
      %1437 = vmatpush1.msra.mxu0 %v1308
      %1438 = vmatprep.subr.mxu0 0.0
      %1439 = vmatpush1.msra.mxu0 %v1307
      %1440 = vmatprep.subr.mxu0 0.0
      %1441 = vmatpush1.msra.mxu0 %v1306
      %1442 = vmatprep.subr.mxu0 0.0
      %1443 = vmatpush1.msra.mxu0 %v1305
      %1444 = vmatprep.subr.mxu0 0.0
      %1445 = vmatpush2.msra.mxu0 0.0
      %1446 = vmatprep.subr.mxu0 0.0
      %1447 = vmatpush2.msra.mxu0 0.0
      %1448 = vmatprep.subr.mxu0 0.0
      %1449 = vmatpush2.msra.mxu0 0.0
      %1450 = vmatprep.subr.mxu0 0.0
      %1451 = vmatpush2.msra.mxu0 0.0
      %1452 = vmatprep.subr.mxu0 0.0
      %1453 = vmatpush2.msra.mxu0 0.0
      %1454 = vmatprep.subr.mxu0 0.0
      %1455 = vmatpush2.msra.mxu0 0.0
      %1456 = vmatprep.subr.mxu0 0.0
      %1457 = vmatpush2.msra.mxu0 0.0
      %1458 = vmatprep.subr.mxu0 0.0
      %1459 = vmatpush2.msra.mxu0 0.0
      %1460 = vmatprep.subr.mxu0 0.0
      %1461 = vmatpush2.msra.mxu0 0.0
      %1462 = vmatprep.subr.mxu0 0.0
      %1463 = vmatpush2.msra.mxu0 0.0
      %1464 = vmatprep.subr.mxu0 0.0
      %1465 = vmatpush2.msra.mxu0 0.0
      %1466 = vmatprep.subr.mxu0 0.0
      %1467 = vmatpush2.msra.mxu0 0.0
      %1468 = vmatprep.subr.mxu0 0.0
      %1469 = vmatpush2.msra.mxu0 0.0
      %1470 = vmatprep.subr.mxu0 0.0
      %1471 = vmatpush2.msra.mxu0 0.0
      %1472 = vmatprep.subr.mxu0 0.0
      %1473 = vmatpush2.msra.mxu0 0.0
      %1474 = vmatprep.subr.mxu0 0.0
      %1475 = vmatpush2.msra.mxu0 0.0
      %1476 = vmatprep.mubr.f32.mxu0 0.0
      %1477 = vmatmul.mubr.f32.gmra.mxu0 %v1317
      %v1478 = vpop.f32.mrf.mxu0
      %v1479 = vadd.f32 %v1314, %v1478
      %v1480 = vpop.f32.mrf.mxu0
      %1481 = vmatprep.mubr.f32.mxu0 0.0
      %1482 = vmatmul.mubr.f32.gmra.mxu0 %v1320
      %v1483 = vpop.f32.mrf.mxu0
      %v1484 = vadd.f32 %v1314, %v1483
      %v1485 = vpop.f32.mrf.mxu0
      %1486 = vmatprep.mubr.f32.mxu0 0.0
      %1487 = vmatmul.mubr.f32.gmra.mxu0 %v1323
      %v1488 = vpop.f32.mrf.mxu0
      %v1489 = vadd.f32 %v1314, %v1488
      %v1490 = vpop.f32.mrf.mxu0
      %1491 = vmatprep.mubr.f32.mxu0 0.0
      %1492 = vmatmul.mubr.f32.gmra.mxu0 %v1326
      %v1493 = vpop.f32.mrf.mxu0
      %v1494 = vadd.f32 %v1314, %v1493
      %v1495 = vpop.f32.mrf.mxu0
      %1496 = vmatprep.mubr.f32.mxu0 0.0
      %1497 = vmatmul.mubr.f32.gmra.mxu0 %v1329
      %v1498 = vpop.f32.mrf.mxu0
      %v1499 = vadd.f32 %v1314, %v1498
      %v1500 = vpop.f32.mrf.mxu0
      %1501 = vmatprep.mubr.f32.mxu0 0.0
      %1502 = vmatmul.mubr.f32.gmra.mxu0 %v1332
      %v1503 = vpop.f32.mrf.mxu0
      %v1504 = vadd.f32 %v1314, %v1503
      %v1505 = vpop.f32.mrf.mxu0
      %1506 = vmatprep.mubr.f32.mxu0 0.0
      %1507 = vmatmul.mubr.f32.gmra.mxu0 %v1335
      %v1508 = vpop.f32.mrf.mxu0
      %v1509 = vadd.f32 %v1314, %v1508
      %v1510 = vpop.f32.mrf.mxu0
      %1511 = vmatprep.mubr.f32.mxu0 0.0
      %1512 = vmatmul.mubr.f32.gmra.mxu0 %v1338
      %v1513 = vpop.f32.mrf.mxu0
      %v1514 = vadd.f32 %v1314, %v1513
      %v1515 = vpop.f32.mrf.mxu0
      %1516 = vmatprep.mubr.f32.mxu0 0.0
      %1517 = vmatmul.mubr.f32.gmra.mxu0 %v1341
      %v1518 = vpop.f32.mrf.mxu0
      %v1519 = vadd.f32 %v1314, %v1518
      %v1520 = vpop.f32.mrf.mxu0
      %1521 = vmatprep.mubr.f32.mxu0 0.0
      %1522 = vmatmul.mubr.f32.gmra.mxu0 %v1344
      %v1523 = vpop.f32.mrf.mxu0
      %v1524 = vadd.f32 %v1314, %v1523
      %v1525 = vpop.f32.mrf.mxu0
      %1526 = vmatprep.mubr.f32.mxu0 0.0
      %1527 = vmatmul.mubr.f32.gmra.mxu0 %v1347
      %v1528 = vpop.f32.mrf.mxu0
      %v1529 = vadd.f32 %v1314, %v1528
      %v1530 = vpop.f32.mrf.mxu0
      %1531 = vmatprep.mubr.f32.mxu0 0.0
      %1532 = vmatmul.mubr.f32.gmra.mxu0 %v1350
      %v1533 = vpop.f32.mrf.mxu0
      %v1534 = vadd.f32 %v1314, %v1533
      %v1535 = vpop.f32.mrf.mxu0
      %1536 = vmatprep.mubr.f32.mxu0 0.0
      %1537 = vmatmul.mubr.f32.gmra.mxu0 %v1353
      %v1538 = vpop.f32.mrf.mxu0
      %v1539 = vadd.f32 %v1314, %v1538
      %v1540 = vpop.f32.mrf.mxu0
      %1541 = vmatprep.mubr.f32.mxu0 0.0
      %1542 = vmatmul.mubr.f32.gmra.mxu0 %v1356
      %v1543 = vpop.f32.mrf.mxu0
      %v1544 = vadd.f32 %v1314, %v1543
      %v1545 = vpop.f32.mrf.mxu0
      %1546 = vmatprep.mubr.f32.mxu0 0.0
      %1547 = vmatmul.mubr.f32.gmra.mxu0 %v1359
      %v1548 = vpop.f32.mrf.mxu0
      %v1549 = vadd.f32 %v1314, %v1548
      %v1550 = vpop.f32.mrf.mxu0
      %1551 = vmatprep.mubr.f32.mxu0 0.0
      %1552 = vmatmul.mubr.f32.gmra.mxu0 %v1362
      %v1553 = vpop.f32.mrf.mxu0
      %v1554 = vadd.f32 %v1314, %v1553
      %v1555 = vpop.f32.mrf.mxu0
      %1556 = vmatprep.mubr.f32.mxu0 0.0
      %1557 = vmatmul.mubr.f32.gmra.mxu0 %v1365
      %v1558 = vpop.f32.mrf.mxu0
      %v1559 = vadd.f32 %v1314, %v1558
      %v1560 = vpop.f32.mrf.mxu0
      %1561 = vmatprep.mubr.f32.mxu0 0.0
      %1562 = vmatmul.mubr.f32.gmra.mxu0 %v1368
      %v1563 = vpop.f32.mrf.mxu0
      %v1564 = vadd.f32 %v1314, %v1563
      %v1565 = vpop.f32.mrf.mxu0
      %1566 = vmatprep.mubr.f32.mxu0 0.0
      %1567 = vmatmul.mubr.f32.gmra.mxu0 %v1371
      %v1568 = vpop.f32.mrf.mxu0
      %v1569 = vadd.f32 %v1314, %v1568
      %v1570 = vpop.f32.mrf.mxu0
      %1571 = vmatprep.mubr.f32.mxu0 0.0
      %1572 = vmatmul.mubr.f32.gmra.mxu0 %v1374
      %v1573 = vpop.f32.mrf.mxu0
      %v1574 = vadd.f32 %v1314, %v1573
      %v1575 = vpop.f32.mrf.mxu0
      %1576 = vmatprep.mubr.f32.mxu0 0.0
      %1577 = vmatmul.mubr.f32.gmra.mxu0 %v1377
      %v1578 = vpop.f32.mrf.mxu0
      %v1579 = vadd.f32 %v1314, %v1578
      %v1580 = vpop.f32.mrf.mxu0
      %1581 = vmatprep.mubr.f32.mxu0 0.0
      %1582 = vmatmul.mubr.f32.gmra.mxu0 %v1380
      %v1583 = vpop.f32.mrf.mxu0
      %v1584 = vadd.f32 %v1314, %v1583
      %v1585 = vpop.f32.mrf.mxu0
      %1586 = vmatprep.mubr.f32.mxu0 0.0
      %1587 = vmatmul.mubr.f32.gmra.mxu0 %v1383
      %v1588 = vpop.f32.mrf.mxu0
      %v1589 = vadd.f32 %v1314, %v1588
      %v1590 = vpop.f32.mrf.mxu0
      %1591 = vmatprep.mubr.f32.mxu0 0.0
      %1592 = vmatmul.mubr.f32.gmra.mxu0 %v1386
      %v1593 = vpop.f32.mrf.mxu0
      %v1594 = vadd.f32 %v1314, %v1593
      %v1595 = vpop.f32.mrf.mxu0
      %1596 = vmatprep.mubr.f32.mxu0 0.0
      %1597 = vmatmul.mubr.f32.gmra.mxu0 %v1389
      %v1598 = vpop.f32.mrf.mxu0
      %v1599 = vadd.f32 %v1314, %v1598
      %v1600 = vpop.f32.mrf.mxu0
      %1601 = vmatprep.mubr.f32.mxu0 0.0
      %1602 = vmatmul.mubr.f32.gmra.mxu0 %v1392
      %v1603 = vpop.f32.mrf.mxu0
      %v1604 = vadd.f32 %v1314, %v1603
      %v1605 = vpop.f32.mrf.mxu0
      %1606 = vmatprep.mubr.f32.mxu0 0.0
      %1607 = vmatmul.mubr.f32.gmra.mxu0 %v1395
      %v1608 = vpop.f32.mrf.mxu0
      %v1609 = vadd.f32 %v1314, %v1608
      %v1610 = vpop.f32.mrf.mxu0
      %1611 = vmatprep.mubr.f32.mxu0 0.0
      %1612 = vmatmul.mubr.f32.gmra.mxu0 %v1398
      %v1613 = vpop.f32.mrf.mxu0
      %v1614 = vadd.f32 %v1314, %v1613
      %v1615 = vpop.f32.mrf.mxu0
      %1616 = vmatprep.mubr.f32.mxu0 0.0
      %1617 = vmatmul.mubr.f32.gmra.mxu0 %v1401
      %v1618 = vpop.f32.mrf.mxu0
      %v1619 = vadd.f32 %v1314, %v1618
      %v1620 = vpop.f32.mrf.mxu0
      %1621 = vmatprep.mubr.f32.mxu0 0.0
      %1622 = vmatmul.mubr.f32.gmra.mxu0 %v1404
      %v1623 = vpop.f32.mrf.mxu0
      %v1624 = vadd.f32 %v1314, %v1623
      %v1625 = vpop.f32.mrf.mxu0
      %1626 = vmatprep.mubr.f32.mxu0 0.0
      %1627 = vmatmul.mubr.f32.gmra.mxu0 %v1407
      %v1628 = vpop.f32.mrf.mxu0
      %v1629 = vadd.f32 %v1314, %v1628
      %v1630 = vpop.f32.mrf.mxu0
      %1631 = vmatprep.mubr.f32.mxu0 0.0
      %1632 = vmatmul.mubr.f32.gmra.mxu0 %v1410
      %v1633 = vpop.f32.mrf.mxu0
      %v1634 = vadd.f32 %v1314, %v1633
      %v1635 = vpop.f32.mrf.mxu0
      %1636 = vdwg.mxu0
      %1637 = vst.msk [vmem:[%s224] sm:$0xff] %vm225, %v1479
      %1638 = vst.msk [vmem:[%s224 + $0x8] sm:$0xff] %vm225, %v1484
      %1639 = vst.msk [vmem:[%s224 + $0x10] sm:$0xff] %vm225, %v1489
      %1640 = vst.msk [vmem:[%s224 + $0x18] sm:$0xff] %vm225, %v1494
      %1641 = vst.msk [vmem:[%s224 + $0x20] sm:$0xff] %vm225, %v1499
      %1642 = vst.msk [vmem:[%s224 + $0x28] sm:$0xff] %vm225, %v1504
      %1643 = vst.msk [vmem:[%s224 + $0x30] sm:$0xff] %vm225, %v1509
      %1644 = vst.msk [vmem:[%s224 + $0x38] sm:$0xff] %vm225, %v1514
      %1645 = vst.msk [vmem:[%s224 + $0x40] sm:$0xff] %vm225, %v1519
      %1646 = vst.msk [vmem:[%s224 + $0x48] sm:$0xff] %vm225, %v1524
      %1647 = vst.msk [vmem:[%s224 + $0x50] sm:$0xff] %vm225, %v1529
      %1648 = vst.msk [vmem:[%s224 + $0x58] sm:$0xff] %vm225, %v1534
      %1649 = vst.msk [vmem:[%s224 + $0x60] sm:$0xff] %vm225, %v1539
      %1650 = vst.msk [vmem:[%s224 + $0x68] sm:$0xff] %vm225, %v1544
      %1651 = vst.msk [vmem:[%s224 + $0x70] sm:$0xff] %vm225, %v1549
      %1652 = vst.msk [vmem:[%s224 + $0x78] sm:$0xff] %vm225, %v1554
      %1653 = vst.msk [vmem:[%s224 + $0x80] sm:$0xff] %vm225, %v1559
      %1654 = vst.msk [vmem:[%s224 + $0x88] sm:$0xff] %vm225, %v1564
      %1655 = vst.msk [vmem:[%s224 + $0x90] sm:$0xff] %vm225, %v1569
      %1656 = vst.msk [vmem:[%s224 + $0x98] sm:$0xff] %vm225, %v1574
      %1657 = vst.msk [vmem:[%s224 + $0xa0] sm:$0xff] %vm225, %v1579
      %1658 = vst.msk [vmem:[%s224 + $0xa8] sm:$0xff] %vm225, %v1584
      %1659 = vst.msk [vmem:[%s224 + $0xb0] sm:$0xff] %vm225, %v1589
      %1660 = vst.msk [vmem:[%s224 + $0xb8] sm:$0xff] %vm225, %v1594
      %1661 = vst.msk [vmem:[%s224 + $0xc0] sm:$0xff] %vm225, %v1599
      %1662 = vst.msk [vmem:[%s224 + $0xc8] sm:$0xff] %vm225, %v1604
      %1663 = vst.msk [vmem:[%s224 + $0xd0] sm:$0xff] %vm225, %v1609
      %1664 = vst.msk [vmem:[%s224 + $0xd8] sm:$0xff] %vm225, %v1614
      %1665 = vst.msk [vmem:[%s224 + $0xe0] sm:$0xff] %vm225, %v1619
      %1666 = vst.msk [vmem:[%s224 + $0xe8] sm:$0xff] %vm225, %v1624
      %1667 = vst.msk [vmem:[%s224 + $0xf0] sm:$0xff] %vm225, %v1629
      %1668 = vst.msk [vmem:[%s224 + $0xf8] sm:$0xff] %vm225, %v1634
      %p1669 = scmp.lt.s32.totalorder %s16, 1
      %s1670 = scalar_select %p1669, %s16, 1
      %s1671 = smul.addr %s1670, 32
      %s1672 = smul.addr %s1671, 8
      %s1673 = scalar_lea.vmem %s5, %s1672
      // Predicated region
      $region41: #{feature_extractor_forward.8} parent=39 // pred_check
        %p1674 = pneg %p144
      $region42: #{feature_extractor_forward.8} parent=39 // pred_check_branch
        %1676 = sbr.rel (%p1674) target = $region44
      $region43: #{feature_extractor_forward.8} parent=39 // pred_region
        _
      $region44: #{feature_extractor_forward.8} parent=39 // pred_fallthru
        _
    $region40: #{feature_extractor_forward.8} parent=5 // pred_fallthru
      _
    %p1677 = scmp.le.s32.totalorder 2, %s11
    // Predicated region
    $region45: #{feature_extractor_forward.8} parent=5 // pred_check
      %p1678 = pneg %p1677
    $region46: #{feature_extractor_forward.8} parent=5 // pred_check_branch
      %1680 = sbr.rel (%p1678) target = $region48
    $region47: #{feature_extractor_forward.8} parent=5 // pred_region
      %s1681 = ssub.s32 %s11, 2
      // Predicated region
      $region49: #{feature_extractor_forward.8} parent=47 // pred_check
        %p1682 = pneg %p150
      $region50: #{feature_extractor_forward.8} parent=47 // pred_check_branch
        %1684 = sbr.rel (%p1682) target = $region52
      $region51: #{feature_extractor_forward.8} parent=47 // pred_region
        %p1685 = scmp.lt.s32.totalorder %s17, 1
        %s1686 = scalar_select %p1685, %s17, 1
        %s1687 = smul.addr %s1686, 32
        %s1688 = smul.addr %s1687, 8
        %s1689 = scalar_lea.vmem %s5, %s1688
      $region52: #{feature_extractor_forward.8} parent=47 // pred_fallthru
        _
    $region48: #{feature_extractor_forward.8} parent=5 // pred_fallthru
      _
  $region6: #{feature_extractor_forward.8} parent=0 // loop_footer
    %s15 = sadd.s32 1, %s11
  $region7: #{feature_extractor_forward.8} parent=0 // loop_footer_branch
    %10 = sbr.rel target = $region3
  $region8: #{feature_extractor_forward.8} parent=0 // loop_exit
    _

// kernel: feature_extractor_forward.10
$region0: #{feature_extractor_forward.10}
  #allocation0 [shape = 'u32[]', space=smem, size = 0x4, offset = 0x4, fixed_abs, tag = 'smem constant byte address 0x4 - core index']
  #allocation1 [shape = 'u32[144,128]{1,0:T(1,128)}', space=vmem, size = 0x12000, scoped, tag = 'internal scratch']
  #allocation2 [shape = 'f32[18,32,32]{2,1,0:T(8,128)}', space=vmem, size = 0x48000, scoped, tag = 'scratch operand']
  %s0 = inlined_call_operand.vmem [shape: f32[2,16,16,32], index: 0, kind: input, shape index: {}]
  %s1 = inlined_call_operand.vmem [shape: f32[9,32], index: 1, kind: input, shape index: {}]
  %s2 = inlined_call_operand.vmem [shape: f32[1,32], index: 2, kind: input, shape index: {}]
  %s3 = inlined_call_operand.vmem [shape: f32[32,32], index: 3, kind: input, shape index: {}]
  %s4 = inlined_call_operand.vmem [shape: f32[1,32], index: 4, kind: input, shape index: {}]
  %s5 = inlined_call_operand.hbm [shape: f32[2,16,16,32], index: 5, kind: output, shape index: {}]
  %s6 = sld [smem:[#allocation0]]
  $region53: #{feature_extractor_forward.10} parent=0
    _
  %s8 = ssub.s32 1, %s6
  %s9 = scalar_select 0, %s8, %s6
  $region1: #{feature_extractor_forward.10} parent=0
    #allocation3 [shape = 'u8[262144]{0}', space=vmem, size = 0x40000, scoped, tag = 'output window, operand 0']
    #allocation4 [shape = 's32[2]{0}', space=sflag, size = 0x8, scoped, tag = 'scoped memory for feature_extractor_forward.10']
    %10 = vsyncpa [#allocation4], 0
    %s11 = scalar_lea.sflag [#allocation4], 1
    %12 = vsyncpa %s11, 0
    loop: start=0, step=1, limit=4
    $region2: #{feature_extractor_forward.10} parent=1 // loop_pre_header
      _
    $region3: #{feature_extractor_forward.10} parent=1 // loop_header
      %s14 = sphi 0, %s18
      %p15 = scmp.ge.s32.totalorder %s14, 4
      %s24 = sphi 0, %s26
      %s27 = sphi 0, %s24
      %s28 = sphi 0, %s27
      %s44 = sphi 0, %s28
      %s48 = sphi 0, %s48
      %s50 = sphi 0, %s48
      %s51 = sphi 0, %s50
      %s65 = sphi 0, %s51
      %s69 = sphi 0, %s69
      %s71 = sphi 0, %s69
      %s72 = sphi 0, %s71
      %s86 = sphi 0, %s72
      %s90 = sphi 0, %s90
      %s92 = sphi 0, %s90
      %s93 = sphi 0, %s92
      %s107 = sphi 0, %s93
      %s111 = sphi 0, %s111
      %s113 = sphi 0, %s111
      %s114 = sphi 0, %s113
      %s128 = sphi 0, %s114
      %s134 = sphi 0, %s136
      %s137 = sphi 0, %s134
      %s138 = sphi 0, %s137
      %s154 = sphi 0, %s138
    $region4: #{feature_extractor_forward.10} parent=1 // loop_header_branch
      %17 = sbr.rel (%p15) target = $region8
    $region5: #{feature_extractor_forward.10} parent=1 // loop_body
      %s19 = ssub.s32 %s14, 1
      %s20 = ssub.s32 %s14, 2
      %s21 = sadd.s32 %s14, 1
      %s22 = ssub.s32 %s14, %s21
      %p23 = scmp.eq.s32.totalorder %s22, 0
      %s25 = sadd.s32 %s24, 1
      %s26 = scalar_select %p23, %s24, %s25
      %p29 = pneg %p23
      %p30 = scmp.eq.s32.totalorder %s14, 1
      %p31 = por %p29, %p30
      %p32 = scmp.ne.s32.totalorder %s24, %s27
      %p33 = scmp.eq.s32.totalorder %s14, 0
      %p34 = por %p32, %p33
      %p35 = scmp.ne.s32.totalorder %s24, %s27
      %p36 = scmp.eq.s32.totalorder %s19, 1
      %p37 = por %p35, %p36
      %p38 = scmp.ne.s32.totalorder %s27, %s28
      %p39 = scmp.eq.s32.totalorder %s19, 0
      %p40 = por %p38, %p39
      %p41 = scmp.ne.s32.totalorder %s27, %s28
      %p42 = scmp.eq.s32.totalorder %s20, 1
      %p43 = por %p41, %p42
      %p45 = scmp.ne.s32.totalorder %s28, %s44
      %p46 = scmp.eq.s32.totalorder %s20, 0
      %p47 = por %p45, %p46
      %s49 = sadd.s32 %s48, 1
      %p52 = scmp.eq.s32.totalorder %s14, 1
      %p53 = scmp.ne.s32.totalorder %s48, %s50
      %p54 = scmp.eq.s32.totalorder %s14, 0
      %p55 = por %p53, %p54
      %p56 = scmp.ne.s32.totalorder %s48, %s50
      %p57 = scmp.eq.s32.totalorder %s19, 1
      %p58 = por %p56, %p57
      %p59 = scmp.ne.s32.totalorder %s50, %s51
      %p60 = scmp.eq.s32.totalorder %s19, 0
      %p61 = por %p59, %p60
      %p62 = scmp.ne.s32.totalorder %s50, %s51
      %p63 = scmp.eq.s32.totalorder %s20, 1
      %p64 = por %p62, %p63
      %p66 = scmp.ne.s32.totalorder %s51, %s65
      %p67 = scmp.eq.s32.totalorder %s20, 0
      %p68 = por %p66, %p67
      %s70 = sadd.s32 %s69, 1
      %p73 = scmp.eq.s32.totalorder %s14, 1
      %p74 = scmp.ne.s32.totalorder %s69, %s71
      %p75 = scmp.eq.s32.totalorder %s14, 0
      %p76 = por %p74, %p75
      %p77 = scmp.ne.s32.totalorder %s69, %s71
      %p78 = scmp.eq.s32.totalorder %s19, 1
      %p79 = por %p77, %p78
      %p80 = scmp.ne.s32.totalorder %s71, %s72
      %p81 = scmp.eq.s32.totalorder %s19, 0
      %p82 = por %p80, %p81
      %p83 = scmp.ne.s32.totalorder %s71, %s72
      %p84 = scmp.eq.s32.totalorder %s20, 1
      %p85 = por %p83, %p84
      %p87 = scmp.ne.s32.totalorder %s72, %s86
      %p88 = scmp.eq.s32.totalorder %s20, 0
      %p89 = por %p87, %p88
      %s91 = sadd.s32 %s90, 1
      %p94 = scmp.eq.s32.totalorder %s14, 1
      %p95 = scmp.ne.s32.totalorder %s90, %s92
      %p96 = scmp.eq.s32.totalorder %s14, 0
      %p97 = por %p95, %p96
      %p98 = scmp.ne.s32.totalorder %s90, %s92
      %p99 = scmp.eq.s32.totalorder %s19, 1
      %p100 = por %p98, %p99
      %p101 = scmp.ne.s32.totalorder %s92, %s93
      %p102 = scmp.eq.s32.totalorder %s19, 0
      %p103 = por %p101, %p102
      %p104 = scmp.ne.s32.totalorder %s92, %s93
      %p105 = scmp.eq.s32.totalorder %s20, 1
      %p106 = por %p104, %p105
      %p108 = scmp.ne.s32.totalorder %s93, %s107
      %p109 = scmp.eq.s32.totalorder %s20, 0
      %p110 = por %p108, %p109
      %s112 = sadd.s32 %s111, 1
      %p115 = scmp.eq.s32.totalorder %s14, 1
      %p116 = scmp.ne.s32.totalorder %s111, %s113
      %p117 = scmp.eq.s32.totalorder %s14, 0
      %p118 = por %p116, %p117
      %p119 = scmp.ne.s32.totalorder %s111, %s113
      %p120 = scmp.eq.s32.totalorder %s19, 1
      %p121 = por %p119, %p120
      %p122 = scmp.ne.s32.totalorder %s113, %s114
      %p123 = scmp.eq.s32.totalorder %s19, 0
      %p124 = por %p122, %p123
      %p125 = scmp.ne.s32.totalorder %s113, %s114
      %p126 = scmp.eq.s32.totalorder %s20, 1
      %p127 = por %p125, %p126
      %p129 = scmp.ne.s32.totalorder %s114, %s128
      %p130 = scmp.eq.s32.totalorder %s20, 0
      %p131 = por %p129, %p130
      %s132 = ssub.s32 %s14, %s21
      %p133 = scmp.eq.s32.totalorder %s132, 0
      %s135 = sadd.s32 %s134, 1
      %s136 = scalar_select %p133, %s134, %s135
      %p139 = pneg %p133
      %p140 = scmp.eq.s32.totalorder %s14, 1
      %p141 = por %p139, %p140
      %p142 = scmp.ne.s32.totalorder %s134, %s137
      %p143 = scmp.eq.s32.totalorder %s14, 0
      %p144 = por %p142, %p143
      %p145 = scmp.ne.s32.totalorder %s134, %s137
      %p146 = scmp.eq.s32.totalorder %s19, 1
      %p147 = por %p145, %p146
      %p148 = scmp.ne.s32.totalorder %s137, %s138
      %p149 = scmp.eq.s32.totalorder %s19, 0
      %p150 = por %p148, %p149
      %p151 = scmp.ne.s32.totalorder %s137, %s138
      %p152 = scmp.eq.s32.totalorder %s20, 1
      %p153 = por %p151, %p152
      %p155 = scmp.ne.s32.totalorder %s138, %s154
      %p156 = scmp.eq.s32.totalorder %s20, 0
      %p157 = por %p155, %p156
      %p158 = scmp.le.s32.totalorder 1, %s14
      %p159 = scmp.lt.s32.totalorder %s14, 3
      %p160 = pnand %p158, %p159
      %p161 = pneg %p160
      // Predicated region
      $region9: #{feature_extractor_forward.10} parent=5 // pred_check
        _
      $region10: #{feature_extractor_forward.10} parent=5 // pred_check_branch
        %163 = sbr.rel (%p160) target = $region12
      $region11: #{feature_extractor_forward.10} parent=5 // pred_region
        %s164 = ssub.s32 %s14, 1
        // Predicated region
        $region13: #{feature_extractor_forward.10} parent=11 // pred_check
          %p165 = pneg %p61
        $region14: #{feature_extractor_forward.10} parent=11 // pred_check_branch
          %167 = sbr.rel (%p165) target = $region16
        $region15: #{feature_extractor_forward.10} parent=11 // pred_region
          _
        $region16: #{feature_extractor_forward.10} parent=11 // pred_fallthru
          _
        // Predicated region
        $region17: #{feature_extractor_forward.10} parent=11 // pred_check
          %p168 = pneg %p82
        $region18: #{feature_extractor_forward.10} parent=11 // pred_check_branch
          %170 = sbr.rel (%p168) target = $region20
        $region19: #{feature_extractor_forward.10} parent=11 // pred_region
          _
        $region20: #{feature_extractor_forward.10} parent=11 // pred_fallthru
          _
        // Predicated region
        $region21: #{feature_extractor_forward.10} parent=11 // pred_check
          %p171 = pneg %p103
        $region22: #{feature_extractor_forward.10} parent=11 // pred_check_branch
          %173 = sbr.rel (%p171) target = $region24
        $region23: #{feature_extractor_forward.10} parent=11 // pred_region
          _
        $region24: #{feature_extractor_forward.10} parent=11 // pred_fallthru
          _
        // Predicated region
        $region25: #{feature_extractor_forward.10} parent=11 // pred_check
          %p174 = pneg %p124
        $region26: #{feature_extractor_forward.10} parent=11 // pred_check_branch
          %176 = sbr.rel (%p174) target = $region28
        $region27: #{feature_extractor_forward.10} parent=11 // pred_region
          _
        $region28: #{feature_extractor_forward.10} parent=11 // pred_fallthru
          _
      $region12: #{feature_extractor_forward.10} parent=5 // pred_fallthru
        _
      %p177 = scmp.lt.s32.totalorder %s14, 2
      // Predicated region
      $region29: #{feature_extractor_forward.10} parent=5 // pred_check
        %p178 = pneg %p177
      $region30: #{feature_extractor_forward.10} parent=5 // pred_check_branch
        %180 = sbr.rel (%p178) target = $region32
      $region31: #{feature_extractor_forward.10} parent=5 // pred_region
        // Predicated region
        $region33: #{feature_extractor_forward.10} parent=31 // pred_check
          %p181 = pneg %p34
        $region34: #{feature_extractor_forward.10} parent=31 // pred_check_branch
          %183 = sbr.rel (%p181) target = $region36
        $region35: #{feature_extractor_forward.10} parent=31 // pred_region
          %p184 = scmp.lt.s32.totalorder %s14, 1
          %s185 = scalar_select %p184, %s14, 1
          %s186 = smul.addr %s185, 32
          %s187 = smul.addr %s186, 8
          %s188 = scalar_lea.vmem %s0, %s187
        $region36: #{feature_extractor_forward.10} parent=31 // pred_fallthru
          _
      $region32: #{feature_extractor_forward.10} parent=5 // pred_fallthru
        _
      %p189 = scmp.le.s32.totalorder 1, %s14
      %p190 = scmp.lt.s32.totalorder %s14, 3
      %p191 = pnand %p189, %p190
      %p192 = pneg %p191
      // Predicated region
      $region37: #{feature_extractor_forward.10} parent=5 // pred_check
        _
      $region38: #{feature_extractor_forward.10} parent=5 // pred_check_branch
        %194 = sbr.rel (%p191) target = $region40
      $region39: #{feature_extractor_forward.10} parent=5 // pred_region
        %s195 = ssub.s32 %s14, 1
        %p196 = scmp.lt.s32.totalorder %s19, 1
        %s197 = scalar_select %p196, %s19, 1
        %s198 = smul.addr %s197, 32
        %s199 = smul.addr %s198, 8
        %s200 = scalar_lea.vmem %s0, %s199
        %p201 = pneg %p40
        %p202 = pneg %p37
        %p203 = pneg %p61
        %p204 = pneg %p58
        %p205 = pneg %p82
        %p206 = pneg %p79
        %p207 = pneg %p103
        %p208 = pneg %p100
        %p209 = pneg %p124
        %p210 = pneg %p121
        %p211 = pneg %p150
        %p212 = pneg %p147
        %s213 = sand.u32 %s137, 1
        %s214 = scalar_lea.sflag [#allocation4], %s213
        %s215 = sand.u32 %s137, 1
        %s216 = smul.addr %s215, 256
        %s217 = scalar_lea.vmem [#allocation3], %s216
        %p218 = scmp.lt.s32.totalorder %s19, 1
        %s219 = scalar_select %p218, %s19, 1
        %s220 = smul.addr %s219, 32
        %s221 = smul.addr %s220, 8
        %s222 = scalar_lea.vmem %s0, %s221
        %vm223 = vcmask 261120
        %224 = vst.msk [vmem:[#allocation2] sm:$0xff] %vm223, 0.0
        %225 = vst.msk [vmem:[#allocation2 + $0x8] sm:$0xff] %vm223, 0.0
        %226 = vst.msk [vmem:[#allocation2 + $0x10] sm:$0xff] %vm223, 0.0
        %227 = vst.msk [vmem:[#allocation2 + $0x18] sm:$0xff] %vm223, 0.0
        %228 = vst.msk [vmem:[#allocation2 + $0x20] sm:$0xff] %vm223, 0.0
        %229 = vst.msk [vmem:[#allocation2 + $0x28] sm:$0xff] %vm223, 0.0
        %230 = vst.msk [vmem:[#allocation2 + $0x30] sm:$0xff] %vm223, 0.0
        %231 = vst.msk [vmem:[#allocation2 + $0x38] sm:$0xff] %vm223, 0.0
        %232 = vst.msk [vmem:[#allocation2 + $0x40] sm:$0xff] %vm223, 0.0
        %233 = vst.msk [vmem:[#allocation2 + $0x48] sm:$0xff] %vm223, 0.0
        %234 = vst.msk [vmem:[#allocation2 + $0x50] sm:$0xff] %vm223, 0.0
        %235 = vst.msk [vmem:[#allocation2 + $0x58] sm:$0xff] %vm223, 0.0
        %236 = vst.msk [vmem:[#allocation2 + $0x60] sm:$0xff] %vm223, 0.0
        %237 = vst.msk [vmem:[#allocation2 + $0x68] sm:$0xff] %vm223, 0.0
        %238 = vst.msk [vmem:[#allocation2 + $0x70] sm:$0xff] %vm223, 0.0
        %239 = vst.msk [vmem:[#allocation2 + $0x78] sm:$0xff] %vm223, 0.0
        %240 = vst.msk [vmem:[#allocation2 + $0x80] sm:$0xff] %vm223, 0.0
        %241 = vst.msk [vmem:[#allocation2 + $0x88] sm:$0xff] %vm223, 0.0
        %242 = vst.msk [vmem:[#allocation2 + $0x90] sm:$0xff] %vm223, 0.0
        %243 = vst.msk [vmem:[#allocation2 + $0x98] sm:$0xff] %vm223, 0.0
        %244 = vst.msk [vmem:[#allocation2 + $0xa0] sm:$0xff] %vm223, 0.0
        %245 = vst.msk [vmem:[#allocation2 + $0xa8] sm:$0xff] %vm223, 0.0
        %246 = vst.msk [vmem:[#allocation2 + $0xb0] sm:$0xff] %vm223, 0.0
        %247 = vst.msk [vmem:[#allocation2 + $0xb8] sm:$0xff] %vm223, 0.0
        %248 = vst.msk [vmem:[#allocation2 + $0xc0] sm:$0xff] %vm223, 0.0
        %249 = vst.msk [vmem:[#allocation2 + $0xc8] sm:$0xff] %vm223, 0.0
        %250 = vst.msk [vmem:[#allocation2 + $0xd0] sm:$0xff] %vm223, 0.0
        %251 = vst.msk [vmem:[#allocation2 + $0xd8] sm:$0xff] %vm223, 0.0
        %252 = vst.msk [vmem:[#allocation2 + $0xe0] sm:$0xff] %vm223, 0.0
        %253 = vst.msk [vmem:[#allocation2 + $0xe8] sm:$0xff] %vm223, 0.0
        %254 = vst.msk [vmem:[#allocation2 + $0xf0] sm:$0xff] %vm223, 0.0
        %255 = vst.msk [vmem:[#allocation2 + $0xf8] sm:$0xff] %vm223, 0.0
        %256 = vst.msk [vmem:[#allocation2 + $0x100] sm:$0xff] %vm223, 0.0
        %257 = vst.msk [vmem:[#allocation2 + $0x108] sm:$0xff] %vm223, 0.0
        %258 = vst.msk [vmem:[#allocation2 + $0x110] sm:$0xff] %vm223, 0.0
        %259 = vst.msk [vmem:[#allocation2 + $0x118] sm:$0xff] %vm223, 0.0
        %260 = vst.msk [vmem:[#allocation2 + $0x120] sm:$0xff] %vm223, 0.0
        %261 = vst.msk [vmem:[#allocation2 + $0x128] sm:$0xff] %vm223, 0.0
        %262 = vst.msk [vmem:[#allocation2 + $0x130] sm:$0xff] %vm223, 0.0
        %263 = vst.msk [vmem:[#allocation2 + $0x138] sm:$0xff] %vm223, 0.0
        %264 = vst.msk [vmem:[#allocation2 + $0x140] sm:$0xff] %vm223, 0.0
        %265 = vst.msk [vmem:[#allocation2 + $0x148] sm:$0xff] %vm223, 0.0
        %266 = vst.msk [vmem:[#allocation2 + $0x150] sm:$0xff] %vm223, 0.0
        %267 = vst.msk [vmem:[#allocation2 + $0x158] sm:$0xff] %vm223, 0.0
        %268 = vst.msk [vmem:[#allocation2 + $0x160] sm:$0xff] %vm223, 0.0
        %269 = vst.msk [vmem:[#allocation2 + $0x168] sm:$0xff] %vm223, 0.0
        %270 = vst.msk [vmem:[#allocation2 + $0x170] sm:$0xff] %vm223, 0.0
        %271 = vst.msk [vmem:[#allocation2 + $0x178] sm:$0xff] %vm223, 0.0
        %272 = vst.msk [vmem:[#allocation2 + $0x180] sm:$0xff] %vm223, 0.0
        %273 = vst.msk [vmem:[#allocation2 + $0x188] sm:$0xff] %vm223, 0.0
        %274 = vst.msk [vmem:[#allocation2 + $0x190] sm:$0xff] %vm223, 0.0
        %275 = vst.msk [vmem:[#allocation2 + $0x198] sm:$0xff] %vm223, 0.0
        %276 = vst.msk [vmem:[#allocation2 + $0x1a0] sm:$0xff] %vm223, 0.0
        %277 = vst.msk [vmem:[#allocation2 + $0x1a8] sm:$0xff] %vm223, 0.0
        %278 = vst.msk [vmem:[#allocation2 + $0x1b0] sm:$0xff] %vm223, 0.0
        %279 = vst.msk [vmem:[#allocation2 + $0x1b8] sm:$0xff] %vm223, 0.0
        %280 = vst.msk [vmem:[#allocation2 + $0x1c0] sm:$0xff] %vm223, 0.0
        %281 = vst.msk [vmem:[#allocation2 + $0x1c8] sm:$0xff] %vm223, 0.0
        %282 = vst.msk [vmem:[#allocation2 + $0x1d0] sm:$0xff] %vm223, 0.0
        %283 = vst.msk [vmem:[#allocation2 + $0x1d8] sm:$0xff] %vm223, 0.0
        %284 = vst.msk [vmem:[#allocation2 + $0x1e0] sm:$0xff] %vm223, 0.0
        %285 = vst.msk [vmem:[#allocation2 + $0x1e8] sm:$0xff] %vm223, 0.0
        %286 = vst.msk [vmem:[#allocation2 + $0x1f0] sm:$0xff] %vm223, 0.0
        %287 = vst.msk [vmem:[#allocation2 + $0x1f8] sm:$0xff] %vm223, 0.0
        %288 = vst.msk [vmem:[#allocation2 + $0x200] sm:$0xff] %vm223, 0.0
        %289 = vst.msk [vmem:[#allocation2 + $0x208] sm:$0xff] %vm223, 0.0
        %290 = vst.msk [vmem:[#allocation2 + $0x210] sm:$0xff] %vm223, 0.0
        %291 = vst.msk [vmem:[#allocation2 + $0x218] sm:$0xff] %vm223, 0.0
        %292 = vst.msk [vmem:[#allocation2 + $0x220] sm:$0xff] %vm223, 0.0
        %293 = vst.msk [vmem:[#allocation2 + $0x228] sm:$0xff] %vm223, 0.0
        %294 = vst.msk [vmem:[#allocation2 + $0x230] sm:$0xff] %vm223, 0.0
        %295 = vst.msk [vmem:[#allocation2 + $0x238] sm:$0xff] %vm223, 0.0
        %v296 = vld [vmem:[%s222] sm:$0xff]
        %v297 = vld [vmem:[%s222 + $0x8] sm:$0xff]
        %v298 = vld [vmem:[%s222 + $0x10] sm:$0xff]
        %v299 = vld [vmem:[%s222 + $0x18] sm:$0xff]
        %v300 = vld [vmem:[%s222 + $0x20] sm:$0xff]
        %v301 = vld [vmem:[%s222 + $0x28] sm:$0xff]
        %v302 = vld [vmem:[%s222 + $0x30] sm:$0xff]
        %v303 = vld [vmem:[%s222 + $0x38] sm:$0xff]
        %v304 = vld [vmem:[%s222 + $0x40] sm:$0xff]
        %v305 = vld [vmem:[%s222 + $0x48] sm:$0xff]
        %v306 = vld [vmem:[%s222 + $0x50] sm:$0xff]
        %v307 = vld [vmem:[%s222 + $0x58] sm:$0xff]
        %v308 = vld [vmem:[%s222 + $0x60] sm:$0xff]
        %v309 = vld [vmem:[%s222 + $0x68] sm:$0xff]
        %v310 = vld [vmem:[%s222 + $0x70] sm:$0xff]
        %v311 = vld [vmem:[%s222 + $0x78] sm:$0xff]
        %v312 = vld [vmem:[%s222 + $0x80] sm:$0xff]
        %v313 = vld [vmem:[%s222 + $0x88] sm:$0xff]
        %v314 = vld [vmem:[%s222 + $0x90] sm:$0xff]
        %v315 = vld [vmem:[%s222 + $0x98] sm:$0xff]
        %v316 = vld [vmem:[%s222 + $0xa0] sm:$0xff]
        %v317 = vld [vmem:[%s222 + $0xa8] sm:$0xff]
        %v318 = vld [vmem:[%s222 + $0xb0] sm:$0xff]
        %v319 = vld [vmem:[%s222 + $0xb8] sm:$0xff]
        %v320 = vld [vmem:[%s222 + $0xc0] sm:$0xff]
        %v321 = vld [vmem:[%s222 + $0xc8] sm:$0xff]
        %v322 = vld [vmem:[%s222 + $0xd0] sm:$0xff]
        %v323 = vld [vmem:[%s222 + $0xd8] sm:$0xff]
        %v324 = vld [vmem:[%s222 + $0xe0] sm:$0xff]
        %v325 = vld [vmem:[%s222 + $0xe8] sm:$0xff]
        %v326 = vld [vmem:[%s222 + $0xf0] sm:$0xff]
        %v327 = vld [vmem:[%s222 + $0xf8] sm:$0xff]
        %s328 = scalar_lea.vmem [#allocation2], 32
        %329 = vst.msk [vmem:[%s328 + $0x8] sm:$0xff] %vm223, %v296
        %330 = vst.msk [vmem:[%s328 + $0x10] sm:$0xff] %vm223, %v297
        %331 = vst.msk [vmem:[%s328 + $0x28] sm:$0xff] %vm223, %v298
        %332 = vst.msk [vmem:[%s328 + $0x30] sm:$0xff] %vm223, %v299
        %333 = vst.msk [vmem:[%s328 + $0x48] sm:$0xff] %vm223, %v300
        %334 = vst.msk [vmem:[%s328 + $0x50] sm:$0xff] %vm223, %v301
        %335 = vst.msk [vmem:[%s328 + $0x68] sm:$0xff] %vm223, %v302
        %336 = vst.msk [vmem:[%s328 + $0x70] sm:$0xff] %vm223, %v303
        %337 = vst.msk [vmem:[%s328 + $0x88] sm:$0xff] %vm223, %v304
        %338 = vst.msk [vmem:[%s328 + $0x90] sm:$0xff] %vm223, %v305
        %339 = vst.msk [vmem:[%s328 + $0xa8] sm:$0xff] %vm223, %v306
        %340 = vst.msk [vmem:[%s328 + $0xb0] sm:$0xff] %vm223, %v307
        %341 = vst.msk [vmem:[%s328 + $0xc8] sm:$0xff] %vm223, %v308
        %342 = vst.msk [vmem:[%s328 + $0xd0] sm:$0xff] %vm223, %v309
        %343 = vst.msk [vmem:[%s328 + $0xe8] sm:$0xff] %vm223, %v310
        %344 = vst.msk [vmem:[%s328 + $0xf0] sm:$0xff] %vm223, %v311
        %345 = vst.msk [vmem:[%s328 + $0x108] sm:$0xff] %vm223, %v312
        %346 = vst.msk [vmem:[%s328 + $0x110] sm:$0xff] %vm223, %v313
        %347 = vst.msk [vmem:[%s328 + $0x128] sm:$0xff] %vm223, %v314
        %348 = vst.msk [vmem:[%s328 + $0x130] sm:$0xff] %vm223, %v315
        %349 = vst.msk [vmem:[%s328 + $0x148] sm:$0xff] %vm223, %v316
        %350 = vst.msk [vmem:[%s328 + $0x150] sm:$0xff] %vm223, %v317
        %351 = vst.msk [vmem:[%s328 + $0x168] sm:$0xff] %vm223, %v318
        %352 = vst.msk [vmem:[%s328 + $0x170] sm:$0xff] %vm223, %v319
        %353 = vst.msk [vmem:[%s328 + $0x188] sm:$0xff] %vm223, %v320
        %354 = vst.msk [vmem:[%s328 + $0x190] sm:$0xff] %vm223, %v321
        %355 = vst.msk [vmem:[%s328 + $0x1a8] sm:$0xff] %vm223, %v322
        %356 = vst.msk [vmem:[%s328 + $0x1b0] sm:$0xff] %vm223, %v323
        %357 = vst.msk [vmem:[%s328 + $0x1c8] sm:$0xff] %vm223, %v324
        %358 = vst.msk [vmem:[%s328 + $0x1d0] sm:$0xff] %vm223, %v325
        %359 = vst.msk [vmem:[%s328 + $0x1e8] sm:$0xff] %vm223, %v326
        %360 = vst.msk [vmem:[%s328 + $0x1f0] sm:$0xff] %vm223, %v327
        %v361 = vld [vmem:[%s1] sm:$0xff]
        %v362 = vld [vmem:[%s1 + $0x8] sm:$0x1]
        %v363 = vld [vmem:[#allocation2 + $0x7] sm:$0xff]
        %v364 = vld [vmem:[#allocation2 + $0xf] sm:$0xff]
        %v365 = vld [vmem:[#allocation2 + $0x27] sm:$0xff]
        %v366 = vld [vmem:[#allocation2 + $0x2f] sm:$0xff]
        %v367 = vld [vmem:[#allocation2 + $0x47] sm:$0xff]
        %v368 = vld [vmem:[#allocation2 + $0x4f] sm:$0xff]
        %v369 = vld [vmem:[#allocation2 + $0x67] sm:$0xff]
        %v370 = vld [vmem:[#allocation2 + $0x6f] sm:$0xff]
        %v371 = vld [vmem:[#allocation2 + $0x87] sm:$0xff]
        %v372 = vld [vmem:[#allocation2 + $0x8f] sm:$0xff]
        %v373 = vld [vmem:[#allocation2 + $0xa7] sm:$0xff]
        %v374 = vld [vmem:[#allocation2 + $0xaf] sm:$0xff]
        %v375 = vld [vmem:[#allocation2 + $0xc7] sm:$0xff]
        %v376 = vld [vmem:[#allocation2 + $0xcf] sm:$0xff]
        %v377 = vld [vmem:[#allocation2 + $0xe7] sm:$0xff]
        %v378 = vld [vmem:[#allocation2 + $0xef] sm:$0xff]
        %v379 = vld [vmem:[#allocation2 + $0x107] sm:$0xff]
        %v380 = vld [vmem:[#allocation2 + $0x10f] sm:$0xff]
        %v381 = vld [vmem:[#allocation2 + $0x127] sm:$0xff]
        %v382 = vld [vmem:[#allocation2 + $0x12f] sm:$0xff]
        %v383 = vld [vmem:[#allocation2 + $0x147] sm:$0xff]
        %v384 = vld [vmem:[#allocation2 + $0x14f] sm:$0xff]
        %v385 = vld [vmem:[#allocation2 + $0x167] sm:$0xff]
        %v386 = vld [vmem:[#allocation2 + $0x16f] sm:$0xff]
        %v387 = vld [vmem:[#allocation2 + $0x187] sm:$0xff]
        %v388 = vld [vmem:[#allocation2 + $0x18f] sm:$0xff]
        %v389 = vld [vmem:[#allocation2 + $0x1a7] sm:$0xff]
        %v390 = vld [vmem:[#allocation2 + $0x1af] sm:$0xff]
        %v391 = vld [vmem:[#allocation2 + $0x1c7] sm:$0xff]
        %v392 = vld [vmem:[#allocation2 + $0x1cf] sm:$0xff]
        %v393 = vld [vmem:[#allocation2 + $0x1e7] sm:$0xff]
        %v394 = vld [vmem:[#allocation2 + $0x1ef] sm:$0xff]
        %v395 = vlaneseq
        %v396 = vshrl.u32 %v395, 7
        %v397 = vsub.s32 0, %v396
        %v398 = vrot.slane %v361, %v397
        %v399 = vmul.f32 %v363, %v398
        %v400 = vmul.f32 %v364, %v398
        %v401 = vmul.f32 %v365, %v398
        %v402 = vmul.f32 %v366, %v398
        %v403 = vmul.f32 %v367, %v398
        %v404 = vmul.f32 %v368, %v398
        %v405 = vmul.f32 %v369, %v398
        %v406 = vmul.f32 %v370, %v398
        %v407 = vmul.f32 %v371, %v398
        %v408 = vmul.f32 %v372, %v398
        %v409 = vmul.f32 %v373, %v398
        %v410 = vmul.f32 %v374, %v398
        %v411 = vmul.f32 %v375, %v398
        %v412 = vmul.f32 %v376, %v398
        %v413 = vmul.f32 %v377, %v398
        %v414 = vmul.f32 %v378, %v398
        %v415 = vmul.f32 %v379, %v398
        %v416 = vmul.f32 %v380, %v398
        %v417 = vmul.f32 %v381, %v398
        %v418 = vmul.f32 %v382, %v398
        %v419 = vmul.f32 %v383, %v398
        %v420 = vmul.f32 %v384, %v398
        %v421 = vmul.f32 %v385, %v398
        %v422 = vmul.f32 %v386, %v398
        %v423 = vmul.f32 %v387, %v398
        %v424 = vmul.f32 %v388, %v398
        %v425 = vmul.f32 %v389, %v398
        %v426 = vmul.f32 %v390, %v398
        %v427 = vmul.f32 %v391, %v398
        %v428 = vmul.f32 %v392, %v398
        %v429 = vmul.f32 %v393, %v398
        %v430 = vmul.f32 %v394, %v398
        %v431 = vadd.f32 %v399, 0.0
        %v432 = vadd.f32 %v400, 0.0
        %v433 = vadd.f32 %v401, 0.0
        %v434 = vadd.f32 %v402, 0.0
        %v435 = vadd.f32 %v403, 0.0
        %v436 = vadd.f32 %v404, 0.0
        %v437 = vadd.f32 %v405, 0.0
        %v438 = vadd.f32 %v406, 0.0
        %v439 = vadd.f32 %v407, 0.0
        %v440 = vadd.f32 %v408, 0.0
        %v441 = vadd.f32 %v409, 0.0
        %v442 = vadd.f32 %v410, 0.0
        %v443 = vadd.f32 %v411, 0.0
        %v444 = vadd.f32 %v412, 0.0
        %v445 = vadd.f32 %v413, 0.0
        %v446 = vadd.f32 %v414, 0.0
        %v447 = vadd.f32 %v415, 0.0
        %v448 = vadd.f32 %v416, 0.0
        %v449 = vadd.f32 %v417, 0.0
        %v450 = vadd.f32 %v418, 0.0
        %v451 = vadd.f32 %v419, 0.0
        %v452 = vadd.f32 %v420, 0.0
        %v453 = vadd.f32 %v421, 0.0
        %v454 = vadd.f32 %v422, 0.0
        %v455 = vadd.f32 %v423, 0.0
        %v456 = vadd.f32 %v424, 0.0
        %v457 = vadd.f32 %v425, 0.0
        %v458 = vadd.f32 %v426, 0.0
        %v459 = vadd.f32 %v427, 0.0
        %v460 = vadd.f32 %v428, 0.0
        %v461 = vadd.f32 %v429, 0.0
        %v462 = vadd.f32 %v430, 0.0
        %v463 = vld [vmem:[#allocation2 + $0x8] sm:$0xff]
        %v464 = vld [vmem:[#allocation2 + $0x10] sm:$0xff]
        %v465 = vld [vmem:[#allocation2 + $0x28] sm:$0xff]
        %v466 = vld [vmem:[#allocation2 + $0x30] sm:$0xff]
        %v467 = vld [vmem:[#allocation2 + $0x48] sm:$0xff]
        %v468 = vld [vmem:[#allocation2 + $0x50] sm:$0xff]
        %v469 = vld [vmem:[#allocation2 + $0x68] sm:$0xff]
        %v470 = vld [vmem:[#allocation2 + $0x70] sm:$0xff]
        %v471 = vld [vmem:[#allocation2 + $0x88] sm:$0xff]
        %v472 = vld [vmem:[#allocation2 + $0x90] sm:$0xff]
        %v473 = vld [vmem:[#allocation2 + $0xa8] sm:$0xff]
        %v474 = vld [vmem:[#allocation2 + $0xb0] sm:$0xff]
        %v475 = vld [vmem:[#allocation2 + $0xc8] sm:$0xff]
        %v476 = vld [vmem:[#allocation2 + $0xd0] sm:$0xff]
        %v477 = vld [vmem:[#allocation2 + $0xe8] sm:$0xff]
        %v478 = vld [vmem:[#allocation2 + $0xf0] sm:$0xff]
        %v479 = vld [vmem:[#allocation2 + $0x108] sm:$0xff]
        %v480 = vld [vmem:[#allocation2 + $0x110] sm:$0xff]
        %v481 = vld [vmem:[#allocation2 + $0x128] sm:$0xff]
        %v482 = vld [vmem:[#allocation2 + $0x130] sm:$0xff]
        %v483 = vld [vmem:[#allocation2 + $0x148] sm:$0xff]
        %v484 = vld [vmem:[#allocation2 + $0x150] sm:$0xff]
        %v485 = vld [vmem:[#allocation2 + $0x168] sm:$0xff]
        %v486 = vld [vmem:[#allocation2 + $0x170] sm:$0xff]
        %v487 = vld [vmem:[#allocation2 + $0x188] sm:$0xff]
        %v488 = vld [vmem:[#allocation2 + $0x190] sm:$0xff]
        %v489 = vld [vmem:[#allocation2 + $0x1a8] sm:$0xff]
        %v490 = vld [vmem:[#allocation2 + $0x1b0] sm:$0xff]
        %v491 = vld [vmem:[#allocation2 + $0x1c8] sm:$0xff]
        %v492 = vld [vmem:[#allocation2 + $0x1d0] sm:$0xff]
        %v493 = vld [vmem:[#allocation2 + $0x1e8] sm:$0xff]
        %v494 = vld [vmem:[#allocation2 + $0x1f0] sm:$0xff]
        %v495 = vlaneseq
        %v496 = vshrl.u32 %v495, 7
        %v497 = vsub.s32 1, %v496
        %v498 = vrot.slane %v361, %v497
        %v499 = vmul.f32 %v463, %v498
        %v500 = vmul.f32 %v464, %v498
        %v501 = vmul.f32 %v465, %v498
        %v502 = vmul.f32 %v466, %v498
        %v503 = vmul.f32 %v467, %v498
        %v504 = vmul.f32 %v468, %v498
        %v505 = vmul.f32 %v469, %v498
        %v506 = vmul.f32 %v470, %v498
        %v507 = vmul.f32 %v471, %v498
        %v508 = vmul.f32 %v472, %v498
        %v509 = vmul.f32 %v473, %v498
        %v510 = vmul.f32 %v474, %v498
        %v511 = vmul.f32 %v475, %v498
        %v512 = vmul.f32 %v476, %v498
        %v513 = vmul.f32 %v477, %v498
        %v514 = vmul.f32 %v478, %v498
        %v515 = vmul.f32 %v479, %v498
        %v516 = vmul.f32 %v480, %v498
        %v517 = vmul.f32 %v481, %v498
        %v518 = vmul.f32 %v482, %v498
        %v519 = vmul.f32 %v483, %v498
        %v520 = vmul.f32 %v484, %v498
        %v521 = vmul.f32 %v485, %v498
        %v522 = vmul.f32 %v486, %v498
        %v523 = vmul.f32 %v487, %v498
        %v524 = vmul.f32 %v488, %v498
        %v525 = vmul.f32 %v489, %v498
        %v526 = vmul.f32 %v490, %v498
        %v527 = vmul.f32 %v491, %v498
        %v528 = vmul.f32 %v492, %v498
        %v529 = vmul.f32 %v493, %v498
        %v530 = vmul.f32 %v494, %v498
        %v531 = vadd.f32 %v431, %v499
        %v532 = vadd.f32 %v432, %v500
        %v533 = vadd.f32 %v433, %v501
        %v534 = vadd.f32 %v434, %v502
        %v535 = vadd.f32 %v435, %v503
        %v536 = vadd.f32 %v436, %v504
        %v537 = vadd.f32 %v437, %v505
        %v538 = vadd.f32 %v438, %v506
        %v539 = vadd.f32 %v439, %v507
        %v540 = vadd.f32 %v440, %v508
        %v541 = vadd.f32 %v441, %v509
        %v542 = vadd.f32 %v442, %v510
        %v543 = vadd.f32 %v443, %v511
        %v544 = vadd.f32 %v444, %v512
        %v545 = vadd.f32 %v445, %v513
        %v546 = vadd.f32 %v446, %v514
        %v547 = vadd.f32 %v447, %v515
        %v548 = vadd.f32 %v448, %v516
        %v549 = vadd.f32 %v449, %v517
        %v550 = vadd.f32 %v450, %v518
        %v551 = vadd.f32 %v451, %v519
        %v552 = vadd.f32 %v452, %v520
        %v553 = vadd.f32 %v453, %v521
        %v554 = vadd.f32 %v454, %v522
        %v555 = vadd.f32 %v455, %v523
        %v556 = vadd.f32 %v456, %v524
        %v557 = vadd.f32 %v457, %v525
        %v558 = vadd.f32 %v458, %v526
        %v559 = vadd.f32 %v459, %v527
        %v560 = vadd.f32 %v460, %v528
        %v561 = vadd.f32 %v461, %v529
        %v562 = vadd.f32 %v462, %v530
        %v563 = vld [vmem:[#allocation2 + $0x9] sm:$0xff]
        %v564 = vld [vmem:[#allocation2 + $0x11] sm:$0xff]
        %v565 = vld [vmem:[#allocation2 + $0x29] sm:$0xff]
        %v566 = vld [vmem:[#allocation2 + $0x31] sm:$0xff]
        %v567 = vld [vmem:[#allocation2 + $0x49] sm:$0xff]
        %v568 = vld [vmem:[#allocation2 + $0x51] sm:$0xff]
        %v569 = vld [vmem:[#allocation2 + $0x69] sm:$0xff]
        %v570 = vld [vmem:[#allocation2 + $0x71] sm:$0xff]
        %v571 = vld [vmem:[#allocation2 + $0x89] sm:$0xff]
        %v572 = vld [vmem:[#allocation2 + $0x91] sm:$0xff]
        %v573 = vld [vmem:[#allocation2 + $0xa9] sm:$0xff]
        %v574 = vld [vmem:[#allocation2 + $0xb1] sm:$0xff]
        %v575 = vld [vmem:[#allocation2 + $0xc9] sm:$0xff]
        %v576 = vld [vmem:[#allocation2 + $0xd1] sm:$0xff]
        %v577 = vld [vmem:[#allocation2 + $0xe9] sm:$0xff]
        %v578 = vld [vmem:[#allocation2 + $0xf1] sm:$0xff]
        %v579 = vld [vmem:[#allocation2 + $0x109] sm:$0xff]
        %v580 = vld [vmem:[#allocation2 + $0x111] sm:$0xff]
        %v581 = vld [vmem:[#allocation2 + $0x129] sm:$0xff]
        %v582 = vld [vmem:[#allocation2 + $0x131] sm:$0xff]
        %v583 = vld [vmem:[#allocation2 + $0x149] sm:$0xff]
        %v584 = vld [vmem:[#allocation2 + $0x151] sm:$0xff]
        %v585 = vld [vmem:[#allocation2 + $0x169] sm:$0xff]
        %v586 = vld [vmem:[#allocation2 + $0x171] sm:$0xff]
        %v587 = vld [vmem:[#allocation2 + $0x189] sm:$0xff]
        %v588 = vld [vmem:[#allocation2 + $0x191] sm:$0xff]
        %v589 = vld [vmem:[#allocation2 + $0x1a9] sm:$0xff]
        %v590 = vld [vmem:[#allocation2 + $0x1b1] sm:$0xff]
        %v591 = vld [vmem:[#allocation2 + $0x1c9] sm:$0xff]
        %v592 = vld [vmem:[#allocation2 + $0x1d1] sm:$0xff]
        %v593 = vld [vmem:[#allocation2 + $0x1e9] sm:$0xff]
        %v594 = vld [vmem:[#allocation2 + $0x1f1] sm:$0xff]
        %v595 = vlaneseq
        %v596 = vshrl.u32 %v595, 7
        %v597 = vsub.s32 2, %v596
        %v598 = vrot.slane %v361, %v597
        %v599 = vmul.f32 %v563, %v598
        %v600 = vmul.f32 %v564, %v598
        %v601 = vmul.f32 %v565, %v598
        %v602 = vmul.f32 %v566, %v598
        %v603 = vmul.f32 %v567, %v598
        %v604 = vmul.f32 %v568, %v598
        %v605 = vmul.f32 %v569, %v598
        %v606 = vmul.f32 %v570, %v598
        %v607 = vmul.f32 %v571, %v598
        %v608 = vmul.f32 %v572, %v598
        %v609 = vmul.f32 %v573, %v598
        %v610 = vmul.f32 %v574, %v598
        %v611 = vmul.f32 %v575, %v598
        %v612 = vmul.f32 %v576, %v598
        %v613 = vmul.f32 %v577, %v598
        %v614 = vmul.f32 %v578, %v598
        %v615 = vmul.f32 %v579, %v598
        %v616 = vmul.f32 %v580, %v598
        %v617 = vmul.f32 %v581, %v598
        %v618 = vmul.f32 %v582, %v598
        %v619 = vmul.f32 %v583, %v598
        %v620 = vmul.f32 %v584, %v598
        %v621 = vmul.f32 %v585, %v598
        %v622 = vmul.f32 %v586, %v598
        %v623 = vmul.f32 %v587, %v598
        %v624 = vmul.f32 %v588, %v598
        %v625 = vmul.f32 %v589, %v598
        %v626 = vmul.f32 %v590, %v598
        %v627 = vmul.f32 %v591, %v598
        %v628 = vmul.f32 %v592, %v598
        %v629 = vmul.f32 %v593, %v598
        %v630 = vmul.f32 %v594, %v598
        %v631 = vadd.f32 %v531, %v599
        %v632 = vadd.f32 %v532, %v600
        %v633 = vadd.f32 %v533, %v601
        %v634 = vadd.f32 %v534, %v602
        %v635 = vadd.f32 %v535, %v603
        %v636 = vadd.f32 %v536, %v604
        %v637 = vadd.f32 %v537, %v605
        %v638 = vadd.f32 %v538, %v606
        %v639 = vadd.f32 %v539, %v607
        %v640 = vadd.f32 %v540, %v608
        %v641 = vadd.f32 %v541, %v609
        %v642 = vadd.f32 %v542, %v610
        %v643 = vadd.f32 %v543, %v611
        %v644 = vadd.f32 %v544, %v612
        %v645 = vadd.f32 %v545, %v613
        %v646 = vadd.f32 %v546, %v614
        %v647 = vadd.f32 %v547, %v615
        %v648 = vadd.f32 %v548, %v616
        %v649 = vadd.f32 %v549, %v617
        %v650 = vadd.f32 %v550, %v618
        %v651 = vadd.f32 %v551, %v619
        %v652 = vadd.f32 %v552, %v620
        %v653 = vadd.f32 %v553, %v621
        %v654 = vadd.f32 %v554, %v622
        %v655 = vadd.f32 %v555, %v623
        %v656 = vadd.f32 %v556, %v624
        %v657 = vadd.f32 %v557, %v625
        %v658 = vadd.f32 %v558, %v626
        %v659 = vadd.f32 %v559, %v627
        %v660 = vadd.f32 %v560, %v628
        %v661 = vadd.f32 %v561, %v629
        %v662 = vadd.f32 %v562, %v630
        %v663 = vld [vmem:[%s328 + $0x7] sm:$0xff]
        %v664 = vld [vmem:[%s328 + $0xf] sm:$0xff]
        %v665 = vld [vmem:[%s328 + $0x27] sm:$0xff]
        %v666 = vld [vmem:[%s328 + $0x2f] sm:$0xff]
        %v667 = vld [vmem:[%s328 + $0x47] sm:$0xff]
        %v668 = vld [vmem:[%s328 + $0x4f] sm:$0xff]
        %v669 = vld [vmem:[%s328 + $0x67] sm:$0xff]
        %v670 = vld [vmem:[%s328 + $0x6f] sm:$0xff]
        %v671 = vld [vmem:[%s328 + $0x87] sm:$0xff]
        %v672 = vld [vmem:[%s328 + $0x8f] sm:$0xff]
        %v673 = vld [vmem:[%s328 + $0xa7] sm:$0xff]
        %v674 = vld [vmem:[%s328 + $0xaf] sm:$0xff]
        %v675 = vld [vmem:[%s328 + $0xc7] sm:$0xff]
        %v676 = vld [vmem:[%s328 + $0xcf] sm:$0xff]
        %v677 = vld [vmem:[%s328 + $0xe7] sm:$0xff]
        %v678 = vld [vmem:[%s328 + $0xef] sm:$0xff]
        %v679 = vld [vmem:[%s328 + $0x107] sm:$0xff]
        %v680 = vld [vmem:[%s328 + $0x10f] sm:$0xff]
        %v681 = vld [vmem:[%s328 + $0x127] sm:$0xff]
        %v682 = vld [vmem:[%s328 + $0x12f] sm:$0xff]
        %v683 = vld [vmem:[%s328 + $0x147] sm:$0xff]
        %v684 = vld [vmem:[%s328 + $0x14f] sm:$0xff]
        %v685 = vld [vmem:[%s328 + $0x167] sm:$0xff]
        %v686 = vld [vmem:[%s328 + $0x16f] sm:$0xff]
        %v687 = vld [vmem:[%s328 + $0x187] sm:$0xff]
        %v688 = vld [vmem:[%s328 + $0x18f] sm:$0xff]
        %v689 = vld [vmem:[%s328 + $0x1a7] sm:$0xff]
        %v690 = vld [vmem:[%s328 + $0x1af] sm:$0xff]
        %v691 = vld [vmem:[%s328 + $0x1c7] sm:$0xff]
        %v692 = vld [vmem:[%s328 + $0x1cf] sm:$0xff]
        %v693 = vld [vmem:[%s328 + $0x1e7] sm:$0xff]
        %v694 = vld [vmem:[%s328 + $0x1ef] sm:$0xff]
        %v695 = vlaneseq
        %v696 = vshrl.u32 %v695, 7
        %v697 = vsub.s32 3, %v696
        %v698 = vrot.slane %v361, %v697
        %v699 = vmul.f32 %v663, %v698
        %v700 = vmul.f32 %v664, %v698
        %v701 = vmul.f32 %v665, %v698
        %v702 = vmul.f32 %v666, %v698
        %v703 = vmul.f32 %v667, %v698
        %v704 = vmul.f32 %v668, %v698
        %v705 = vmul.f32 %v669, %v698
        %v706 = vmul.f32 %v670, %v698
        %v707 = vmul.f32 %v671, %v698
        %v708 = vmul.f32 %v672, %v698
        %v709 = vmul.f32 %v673, %v698
        %v710 = vmul.f32 %v674, %v698
        %v711 = vmul.f32 %v675, %v698
        %v712 = vmul.f32 %v676, %v698
        %v713 = vmul.f32 %v677, %v698
        %v714 = vmul.f32 %v678, %v698
        %v715 = vmul.f32 %v679, %v698
        %v716 = vmul.f32 %v680, %v698
        %v717 = vmul.f32 %v681, %v698
        %v718 = vmul.f32 %v682, %v698
        %v719 = vmul.f32 %v683, %v698
        %v720 = vmul.f32 %v684, %v698
        %v721 = vmul.f32 %v685, %v698
        %v722 = vmul.f32 %v686, %v698
        %v723 = vmul.f32 %v687, %v698
        %v724 = vmul.f32 %v688, %v698
        %v725 = vmul.f32 %v689, %v698
        %v726 = vmul.f32 %v690, %v698
        %v727 = vmul.f32 %v691, %v698
        %v728 = vmul.f32 %v692, %v698
        %v729 = vmul.f32 %v693, %v698
        %v730 = vmul.f32 %v694, %v698
        %v731 = vadd.f32 %v631, %v699
        %v732 = vadd.f32 %v632, %v700
        %v733 = vadd.f32 %v633, %v701
        %v734 = vadd.f32 %v634, %v702
        %v735 = vadd.f32 %v635, %v703
        %v736 = vadd.f32 %v636, %v704
        %v737 = vadd.f32 %v637, %v705
        %v738 = vadd.f32 %v638, %v706
        %v739 = vadd.f32 %v639, %v707
        %v740 = vadd.f32 %v640, %v708
        %v741 = vadd.f32 %v641, %v709
        %v742 = vadd.f32 %v642, %v710
        %v743 = vadd.f32 %v643, %v711
        %v744 = vadd.f32 %v644, %v712
        %v745 = vadd.f32 %v645, %v713
        %v746 = vadd.f32 %v646, %v714
        %v747 = vadd.f32 %v647, %v715
        %v748 = vadd.f32 %v648, %v716
        %v749 = vadd.f32 %v649, %v717
        %v750 = vadd.f32 %v650, %v718
        %v751 = vadd.f32 %v651, %v719
        %v752 = vadd.f32 %v652, %v720
        %v753 = vadd.f32 %v653, %v721
        %v754 = vadd.f32 %v654, %v722
        %v755 = vadd.f32 %v655, %v723
        %v756 = vadd.f32 %v656, %v724
        %v757 = vadd.f32 %v657, %v725
        %v758 = vadd.f32 %v658, %v726
        %v759 = vadd.f32 %v659, %v727
        %v760 = vadd.f32 %v660, %v728
        %v761 = vadd.f32 %v661, %v729
        %v762 = vadd.f32 %v662, %v730
        %v763 = vld [vmem:[%s328 + $0x8] sm:$0xff]
        %v764 = vld [vmem:[%s328 + $0x10] sm:$0xff]
        %v765 = vld [vmem:[%s328 + $0x28] sm:$0xff]
        %v766 = vld [vmem:[%s328 + $0x30] sm:$0xff]
        %v767 = vld [vmem:[%s328 + $0x48] sm:$0xff]
        %v768 = vld [vmem:[%s328 + $0x50] sm:$0xff]
        %v769 = vld [vmem:[%s328 + $0x68] sm:$0xff]
        %v770 = vld [vmem:[%s328 + $0x70] sm:$0xff]
        %v771 = vld [vmem:[%s328 + $0x88] sm:$0xff]
        %v772 = vld [vmem:[%s328 + $0x90] sm:$0xff]
        %v773 = vld [vmem:[%s328 + $0xa8] sm:$0xff]
        %v774 = vld [vmem:[%s328 + $0xb0] sm:$0xff]
        %v775 = vld [vmem:[%s328 + $0xc8] sm:$0xff]
        %v776 = vld [vmem:[%s328 + $0xd0] sm:$0xff]
        %v777 = vld [vmem:[%s328 + $0xe8] sm:$0xff]
        %v778 = vld [vmem:[%s328 + $0xf0] sm:$0xff]
        %v779 = vld [vmem:[%s328 + $0x108] sm:$0xff]
        %v780 = vld [vmem:[%s328 + $0x110] sm:$0xff]
        %v781 = vld [vmem:[%s328 + $0x128] sm:$0xff]
        %v782 = vld [vmem:[%s328 + $0x130] sm:$0xff]
        %v783 = vld [vmem:[%s328 + $0x148] sm:$0xff]
        %v784 = vld [vmem:[%s328 + $0x150] sm:$0xff]
        %v785 = vld [vmem:[%s328 + $0x168] sm:$0xff]
        %v786 = vld [vmem:[%s328 + $0x170] sm:$0xff]
        %v787 = vld [vmem:[%s328 + $0x188] sm:$0xff]
        %v788 = vld [vmem:[%s328 + $0x190] sm:$0xff]
        %v789 = vld [vmem:[%s328 + $0x1a8] sm:$0xff]
        %v790 = vld [vmem:[%s328 + $0x1b0] sm:$0xff]
        %v791 = vld [vmem:[%s328 + $0x1c8] sm:$0xff]
        %v792 = vld [vmem:[%s328 + $0x1d0] sm:$0xff]
        %v793 = vld [vmem:[%s328 + $0x1e8] sm:$0xff]
        %v794 = vld [vmem:[%s328 + $0x1f0] sm:$0xff]
        %v795 = vlaneseq
        %v796 = vshrl.u32 %v795, 7
        %v797 = vsub.s32 4, %v796
        %v798 = vrot.slane %v361, %v797
        %v799 = vmul.f32 %v763, %v798
        %v800 = vmul.f32 %v764, %v798
        %v801 = vmul.f32 %v765, %v798
        %v802 = vmul.f32 %v766, %v798
        %v803 = vmul.f32 %v767, %v798
        %v804 = vmul.f32 %v768, %v798
        %v805 = vmul.f32 %v769, %v798
        %v806 = vmul.f32 %v770, %v798
        %v807 = vmul.f32 %v771, %v798
        %v808 = vmul.f32 %v772, %v798
        %v809 = vmul.f32 %v773, %v798
        %v810 = vmul.f32 %v774, %v798
        %v811 = vmul.f32 %v775, %v798
        %v812 = vmul.f32 %v776, %v798
        %v813 = vmul.f32 %v777, %v798
        %v814 = vmul.f32 %v778, %v798
        %v815 = vmul.f32 %v779, %v798
        %v816 = vmul.f32 %v780, %v798
        %v817 = vmul.f32 %v781, %v798
        %v818 = vmul.f32 %v782, %v798
        %v819 = vmul.f32 %v783, %v798
        %v820 = vmul.f32 %v784, %v798
        %v821 = vmul.f32 %v785, %v798
        %v822 = vmul.f32 %v786, %v798
        %v823 = vmul.f32 %v787, %v798
        %v824 = vmul.f32 %v788, %v798
        %v825 = vmul.f32 %v789, %v798
        %v826 = vmul.f32 %v790, %v798
        %v827 = vmul.f32 %v791, %v798
        %v828 = vmul.f32 %v792, %v798
        %v829 = vmul.f32 %v793, %v798
        %v830 = vmul.f32 %v794, %v798
        %v831 = vadd.f32 %v731, %v799
        %v832 = vadd.f32 %v732, %v800
        %v833 = vadd.f32 %v733, %v801
        %v834 = vadd.f32 %v734, %v802
        %v835 = vadd.f32 %v735, %v803
        %v836 = vadd.f32 %v736, %v804
        %v837 = vadd.f32 %v737, %v805
        %v838 = vadd.f32 %v738, %v806
        %v839 = vadd.f32 %v739, %v807
        %v840 = vadd.f32 %v740, %v808
        %v841 = vadd.f32 %v741, %v809
        %v842 = vadd.f32 %v742, %v810
        %v843 = vadd.f32 %v743, %v811
        %v844 = vadd.f32 %v744, %v812
        %v845 = vadd.f32 %v745, %v813
        %v846 = vadd.f32 %v746, %v814
        %v847 = vadd.f32 %v747, %v815
        %v848 = vadd.f32 %v748, %v816
        %v849 = vadd.f32 %v749, %v817
        %v850 = vadd.f32 %v750, %v818
        %v851 = vadd.f32 %v751, %v819
        %v852 = vadd.f32 %v752, %v820
        %v853 = vadd.f32 %v753, %v821
        %v854 = vadd.f32 %v754, %v822
        %v855 = vadd.f32 %v755, %v823
        %v856 = vadd.f32 %v756, %v824
        %v857 = vadd.f32 %v757, %v825
        %v858 = vadd.f32 %v758, %v826
        %v859 = vadd.f32 %v759, %v827
        %v860 = vadd.f32 %v760, %v828
        %v861 = vadd.f32 %v761, %v829
        %v862 = vadd.f32 %v762, %v830
        %v863 = vld [vmem:[%s328 + $0x9] sm:$0xff]
        %v864 = vld [vmem:[%s328 + $0x11] sm:$0xff]
        %v865 = vld [vmem:[%s328 + $0x29] sm:$0xff]
        %v866 = vld [vmem:[%s328 + $0x31] sm:$0xff]
        %v867 = vld [vmem:[%s328 + $0x49] sm:$0xff]
        %v868 = vld [vmem:[%s328 + $0x51] sm:$0xff]
        %v869 = vld [vmem:[%s328 + $0x69] sm:$0xff]
        %v870 = vld [vmem:[%s328 + $0x71] sm:$0xff]
        %v871 = vld [vmem:[%s328 + $0x89] sm:$0xff]
        %v872 = vld [vmem:[%s328 + $0x91] sm:$0xff]
        %v873 = vld [vmem:[%s328 + $0xa9] sm:$0xff]
        %v874 = vld [vmem:[%s328 + $0xb1] sm:$0xff]
        %v875 = vld [vmem:[%s328 + $0xc9] sm:$0xff]
        %v876 = vld [vmem:[%s328 + $0xd1] sm:$0xff]
        %v877 = vld [vmem:[%s328 + $0xe9] sm:$0xff]
        %v878 = vld [vmem:[%s328 + $0xf1] sm:$0xff]
        %v879 = vld [vmem:[%s328 + $0x109] sm:$0xff]
        %v880 = vld [vmem:[%s328 + $0x111] sm:$0xff]
        %v881 = vld [vmem:[%s328 + $0x129] sm:$0xff]
        %v882 = vld [vmem:[%s328 + $0x131] sm:$0xff]
        %v883 = vld [vmem:[%s328 + $0x149] sm:$0xff]
        %v884 = vld [vmem:[%s328 + $0x151] sm:$0xff]
        %v885 = vld [vmem:[%s328 + $0x169] sm:$0xff]
        %v886 = vld [vmem:[%s328 + $0x171] sm:$0xff]
        %v887 = vld [vmem:[%s328 + $0x189] sm:$0xff]
        %v888 = vld [vmem:[%s328 + $0x191] sm:$0xff]
        %v889 = vld [vmem:[%s328 + $0x1a9] sm:$0xff]
        %v890 = vld [vmem:[%s328 + $0x1b1] sm:$0xff]
        %v891 = vld [vmem:[%s328 + $0x1c9] sm:$0xff]
        %v892 = vld [vmem:[%s328 + $0x1d1] sm:$0xff]
        %v893 = vld [vmem:[%s328 + $0x1e9] sm:$0xff]
        %v894 = vld [vmem:[%s328 + $0x1f1] sm:$0xff]
        %v895 = vlaneseq
        %v896 = vshrl.u32 %v895, 7
        %v897 = vsub.s32 5, %v896
        %v898 = vrot.slane %v361, %v897
        %v899 = vmul.f32 %v863, %v898
        %v900 = vmul.f32 %v864, %v898
        %v901 = vmul.f32 %v865, %v898
        %v902 = vmul.f32 %v866, %v898
        %v903 = vmul.f32 %v867, %v898
        %v904 = vmul.f32 %v868, %v898
        %v905 = vmul.f32 %v869, %v898
        %v906 = vmul.f32 %v870, %v898
        %v907 = vmul.f32 %v871, %v898
        %v908 = vmul.f32 %v872, %v898
        %v909 = vmul.f32 %v873, %v898
        %v910 = vmul.f32 %v874, %v898
        %v911 = vmul.f32 %v875, %v898
        %v912 = vmul.f32 %v876, %v898
        %v913 = vmul.f32 %v877, %v898
        %v914 = vmul.f32 %v878, %v898
        %v915 = vmul.f32 %v879, %v898
        %v916 = vmul.f32 %v880, %v898
        %v917 = vmul.f32 %v881, %v898
        %v918 = vmul.f32 %v882, %v898
        %v919 = vmul.f32 %v883, %v898
        %v920 = vmul.f32 %v884, %v898
        %v921 = vmul.f32 %v885, %v898
        %v922 = vmul.f32 %v886, %v898
        %v923 = vmul.f32 %v887, %v898
        %v924 = vmul.f32 %v888, %v898
        %v925 = vmul.f32 %v889, %v898
        %v926 = vmul.f32 %v890, %v898
        %v927 = vmul.f32 %v891, %v898
        %v928 = vmul.f32 %v892, %v898
        %v929 = vmul.f32 %v893, %v898
        %v930 = vmul.f32 %v894, %v898
        %v931 = vadd.f32 %v831, %v899
        %v932 = vadd.f32 %v832, %v900
        %v933 = vadd.f32 %v833, %v901
        %v934 = vadd.f32 %v834, %v902
        %v935 = vadd.f32 %v835, %v903
        %v936 = vadd.f32 %v836, %v904
        %v937 = vadd.f32 %v837, %v905
        %v938 = vadd.f32 %v838, %v906
        %v939 = vadd.f32 %v839, %v907
        %v940 = vadd.f32 %v840, %v908
        %v941 = vadd.f32 %v841, %v909
        %v942 = vadd.f32 %v842, %v910
        %v943 = vadd.f32 %v843, %v911
        %v944 = vadd.f32 %v844, %v912
        %v945 = vadd.f32 %v845, %v913
        %v946 = vadd.f32 %v846, %v914
        %v947 = vadd.f32 %v847, %v915
        %v948 = vadd.f32 %v848, %v916
        %v949 = vadd.f32 %v849, %v917
        %v950 = vadd.f32 %v850, %v918
        %v951 = vadd.f32 %v851, %v919
        %v952 = vadd.f32 %v852, %v920
        %v953 = vadd.f32 %v853, %v921
        %v954 = vadd.f32 %v854, %v922
        %v955 = vadd.f32 %v855, %v923
        %v956 = vadd.f32 %v856, %v924
        %v957 = vadd.f32 %v857, %v925
        %v958 = vadd.f32 %v858, %v926
        %v959 = vadd.f32 %v859, %v927
        %v960 = vadd.f32 %v860, %v928
        %v961 = vadd.f32 %v861, %v929
        %v962 = vadd.f32 %v862, %v930
        %s963 = scalar_lea.vmem [#allocation2], 64
        %v964 = vld [vmem:[%s963 + $0x7] sm:$0xff]
        %v965 = vld [vmem:[%s963 + $0xf] sm:$0xff]
        %v966 = vld [vmem:[%s963 + $0x27] sm:$0xff]
        %v967 = vld [vmem:[%s963 + $0x2f] sm:$0xff]
        %v968 = vld [vmem:[%s963 + $0x47] sm:$0xff]
        %v969 = vld [vmem:[%s963 + $0x4f] sm:$0xff]
        %v970 = vld [vmem:[%s963 + $0x67] sm:$0xff]
        %v971 = vld [vmem:[%s963 + $0x6f] sm:$0xff]
        %v972 = vld [vmem:[%s963 + $0x87] sm:$0xff]
        %v973 = vld [vmem:[%s963 + $0x8f] sm:$0xff]
        %v974 = vld [vmem:[%s963 + $0xa7] sm:$0xff]
        %v975 = vld [vmem:[%s963 + $0xaf] sm:$0xff]
        %v976 = vld [vmem:[%s963 + $0xc7] sm:$0xff]
        %v977 = vld [vmem:[%s963 + $0xcf] sm:$0xff]
        %v978 = vld [vmem:[%s963 + $0xe7] sm:$0xff]
        %v979 = vld [vmem:[%s963 + $0xef] sm:$0xff]
        %v980 = vld [vmem:[%s963 + $0x107] sm:$0xff]
        %v981 = vld [vmem:[%s963 + $0x10f] sm:$0xff]
        %v982 = vld [vmem:[%s963 + $0x127] sm:$0xff]
        %v983 = vld [vmem:[%s963 + $0x12f] sm:$0xff]
        %v984 = vld [vmem:[%s963 + $0x147] sm:$0xff]
        %v985 = vld [vmem:[%s963 + $0x14f] sm:$0xff]
        %v986 = vld [vmem:[%s963 + $0x167] sm:$0xff]
        %v987 = vld [vmem:[%s963 + $0x16f] sm:$0xff]
        %v988 = vld [vmem:[%s963 + $0x187] sm:$0xff]
        %v989 = vld [vmem:[%s963 + $0x18f] sm:$0xff]
        %v990 = vld [vmem:[%s963 + $0x1a7] sm:$0xff]
        %v991 = vld [vmem:[%s963 + $0x1af] sm:$0xff]
        %v992 = vld [vmem:[%s963 + $0x1c7] sm:$0xff]
        %v993 = vld [vmem:[%s963 + $0x1cf] sm:$0xff]
        %v994 = vld [vmem:[%s963 + $0x1e7] sm:$0xff]
        %v995 = vld [vmem:[%s963 + $0x1ef] sm:$0xff]
        %v996 = vlaneseq
        %v997 = vshrl.u32 %v996, 7
        %v998 = vsub.s32 6, %v997
        %v999 = vrot.slane %v361, %v998
        %v1000 = vmul.f32 %v964, %v999
        %v1001 = vmul.f32 %v965, %v999
        %v1002 = vmul.f32 %v966, %v999
        %v1003 = vmul.f32 %v967, %v999
        %v1004 = vmul.f32 %v968, %v999
        %v1005 = vmul.f32 %v969, %v999
        %v1006 = vmul.f32 %v970, %v999
        %v1007 = vmul.f32 %v971, %v999
        %v1008 = vmul.f32 %v972, %v999
        %v1009 = vmul.f32 %v973, %v999
        %v1010 = vmul.f32 %v974, %v999
        %v1011 = vmul.f32 %v975, %v999
        %v1012 = vmul.f32 %v976, %v999
        %v1013 = vmul.f32 %v977, %v999
        %v1014 = vmul.f32 %v978, %v999
        %v1015 = vmul.f32 %v979, %v999
        %v1016 = vmul.f32 %v980, %v999
        %v1017 = vmul.f32 %v981, %v999
        %v1018 = vmul.f32 %v982, %v999
        %v1019 = vmul.f32 %v983, %v999
        %v1020 = vmul.f32 %v984, %v999
        %v1021 = vmul.f32 %v985, %v999
        %v1022 = vmul.f32 %v986, %v999
        %v1023 = vmul.f32 %v987, %v999
        %v1024 = vmul.f32 %v988, %v999
        %v1025 = vmul.f32 %v989, %v999
        %v1026 = vmul.f32 %v990, %v999
        %v1027 = vmul.f32 %v991, %v999
        %v1028 = vmul.f32 %v992, %v999
        %v1029 = vmul.f32 %v993, %v999
        %v1030 = vmul.f32 %v994, %v999
        %v1031 = vmul.f32 %v995, %v999
        %v1032 = vadd.f32 %v931, %v1000
        %v1033 = vadd.f32 %v932, %v1001
        %v1034 = vadd.f32 %v933, %v1002
        %v1035 = vadd.f32 %v934, %v1003
        %v1036 = vadd.f32 %v935, %v1004
        %v1037 = vadd.f32 %v936, %v1005
        %v1038 = vadd.f32 %v937, %v1006
        %v1039 = vadd.f32 %v938, %v1007
        %v1040 = vadd.f32 %v939, %v1008
        %v1041 = vadd.f32 %v940, %v1009
        %v1042 = vadd.f32 %v941, %v1010
        %v1043 = vadd.f32 %v942, %v1011
        %v1044 = vadd.f32 %v943, %v1012
        %v1045 = vadd.f32 %v944, %v1013
        %v1046 = vadd.f32 %v945, %v1014
        %v1047 = vadd.f32 %v946, %v1015
        %v1048 = vadd.f32 %v947, %v1016
        %v1049 = vadd.f32 %v948, %v1017
        %v1050 = vadd.f32 %v949, %v1018
        %v1051 = vadd.f32 %v950, %v1019
        %v1052 = vadd.f32 %v951, %v1020
        %v1053 = vadd.f32 %v952, %v1021
        %v1054 = vadd.f32 %v953, %v1022
        %v1055 = vadd.f32 %v954, %v1023
        %v1056 = vadd.f32 %v955, %v1024
        %v1057 = vadd.f32 %v956, %v1025
        %v1058 = vadd.f32 %v957, %v1026
        %v1059 = vadd.f32 %v958, %v1027
        %v1060 = vadd.f32 %v959, %v1028
        %v1061 = vadd.f32 %v960, %v1029
        %v1062 = vadd.f32 %v961, %v1030
        %v1063 = vadd.f32 %v962, %v1031
        %v1064 = vld [vmem:[%s963 + $0x8] sm:$0xff]
        %v1065 = vld [vmem:[%s963 + $0x10] sm:$0xff]
        %v1066 = vld [vmem:[%s963 + $0x28] sm:$0xff]
        %v1067 = vld [vmem:[%s963 + $0x30] sm:$0xff]
        %v1068 = vld [vmem:[%s963 + $0x48] sm:$0xff]
        %v1069 = vld [vmem:[%s963 + $0x50] sm:$0xff]
        %v1070 = vld [vmem:[%s963 + $0x68] sm:$0xff]
        %v1071 = vld [vmem:[%s963 + $0x70] sm:$0xff]
        %v1072 = vld [vmem:[%s963 + $0x88] sm:$0xff]
        %v1073 = vld [vmem:[%s963 + $0x90] sm:$0xff]
        %v1074 = vld [vmem:[%s963 + $0xa8] sm:$0xff]
        %v1075 = vld [vmem:[%s963 + $0xb0] sm:$0xff]
        %v1076 = vld [vmem:[%s963 + $0xc8] sm:$0xff]
        %v1077 = vld [vmem:[%s963 + $0xd0] sm:$0xff]
        %v1078 = vld [vmem:[%s963 + $0xe8] sm:$0xff]
        %v1079 = vld [vmem:[%s963 + $0xf0] sm:$0xff]
        %v1080 = vld [vmem:[%s963 + $0x108] sm:$0xff]
        %v1081 = vld [vmem:[%s963 + $0x110] sm:$0xff]
        %v1082 = vld [vmem:[%s963 + $0x128] sm:$0xff]
        %v1083 = vld [vmem:[%s963 + $0x130] sm:$0xff]
        %v1084 = vld [vmem:[%s963 + $0x148] sm:$0xff]
        %v1085 = vld [vmem:[%s963 + $0x150] sm:$0xff]
        %v1086 = vld [vmem:[%s963 + $0x168] sm:$0xff]
        %v1087 = vld [vmem:[%s963 + $0x170] sm:$0xff]
        %v1088 = vld [vmem:[%s963 + $0x188] sm:$0xff]
        %v1089 = vld [vmem:[%s963 + $0x190] sm:$0xff]
        %v1090 = vld [vmem:[%s963 + $0x1a8] sm:$0xff]
        %v1091 = vld [vmem:[%s963 + $0x1b0] sm:$0xff]
        %v1092 = vld [vmem:[%s963 + $0x1c8] sm:$0xff]
        %v1093 = vld [vmem:[%s963 + $0x1d0] sm:$0xff]
        %v1094 = vld [vmem:[%s963 + $0x1e8] sm:$0xff]
        %v1095 = vld [vmem:[%s963 + $0x1f0] sm:$0xff]
        %v1096 = vlaneseq
        %v1097 = vshrl.u32 %v1096, 7
        %v1098 = vsub.s32 7, %v1097
        %v1099 = vrot.slane %v361, %v1098
        %v1100 = vmul.f32 %v1064, %v1099
        %v1101 = vmul.f32 %v1065, %v1099
        %v1102 = vmul.f32 %v1066, %v1099
        %v1103 = vmul.f32 %v1067, %v1099
        %v1104 = vmul.f32 %v1068, %v1099
        %v1105 = vmul.f32 %v1069, %v1099
        %v1106 = vmul.f32 %v1070, %v1099
        %v1107 = vmul.f32 %v1071, %v1099
        %v1108 = vmul.f32 %v1072, %v1099
        %v1109 = vmul.f32 %v1073, %v1099
        %v1110 = vmul.f32 %v1074, %v1099
        %v1111 = vmul.f32 %v1075, %v1099
        %v1112 = vmul.f32 %v1076, %v1099
        %v1113 = vmul.f32 %v1077, %v1099
        %v1114 = vmul.f32 %v1078, %v1099
        %v1115 = vmul.f32 %v1079, %v1099
        %v1116 = vmul.f32 %v1080, %v1099
        %v1117 = vmul.f32 %v1081, %v1099
        %v1118 = vmul.f32 %v1082, %v1099
        %v1119 = vmul.f32 %v1083, %v1099
        %v1120 = vmul.f32 %v1084, %v1099
        %v1121 = vmul.f32 %v1085, %v1099
        %v1122 = vmul.f32 %v1086, %v1099
        %v1123 = vmul.f32 %v1087, %v1099
        %v1124 = vmul.f32 %v1088, %v1099
        %v1125 = vmul.f32 %v1089, %v1099
        %v1126 = vmul.f32 %v1090, %v1099
        %v1127 = vmul.f32 %v1091, %v1099
        %v1128 = vmul.f32 %v1092, %v1099
        %v1129 = vmul.f32 %v1093, %v1099
        %v1130 = vmul.f32 %v1094, %v1099
        %v1131 = vmul.f32 %v1095, %v1099
        %v1132 = vadd.f32 %v1032, %v1100
        %v1133 = vadd.f32 %v1033, %v1101
        %v1134 = vadd.f32 %v1034, %v1102
        %v1135 = vadd.f32 %v1035, %v1103
        %v1136 = vadd.f32 %v1036, %v1104
        %v1137 = vadd.f32 %v1037, %v1105
        %v1138 = vadd.f32 %v1038, %v1106
        %v1139 = vadd.f32 %v1039, %v1107
        %v1140 = vadd.f32 %v1040, %v1108
        %v1141 = vadd.f32 %v1041, %v1109
        %v1142 = vadd.f32 %v1042, %v1110
        %v1143 = vadd.f32 %v1043, %v1111
        %v1144 = vadd.f32 %v1044, %v1112
        %v1145 = vadd.f32 %v1045, %v1113
        %v1146 = vadd.f32 %v1046, %v1114
        %v1147 = vadd.f32 %v1047, %v1115
        %v1148 = vadd.f32 %v1048, %v1116
        %v1149 = vadd.f32 %v1049, %v1117
        %v1150 = vadd.f32 %v1050, %v1118
        %v1151 = vadd.f32 %v1051, %v1119
        %v1152 = vadd.f32 %v1052, %v1120
        %v1153 = vadd.f32 %v1053, %v1121
        %v1154 = vadd.f32 %v1054, %v1122
        %v1155 = vadd.f32 %v1055, %v1123
        %v1156 = vadd.f32 %v1056, %v1124
        %v1157 = vadd.f32 %v1057, %v1125
        %v1158 = vadd.f32 %v1058, %v1126
        %v1159 = vadd.f32 %v1059, %v1127
        %v1160 = vadd.f32 %v1060, %v1128
        %v1161 = vadd.f32 %v1061, %v1129
        %v1162 = vadd.f32 %v1062, %v1130
        %v1163 = vadd.f32 %v1063, %v1131
        %v1164 = vld [vmem:[%s963 + $0x9] sm:$0xff]
        %v1165 = vld [vmem:[%s963 + $0x11] sm:$0xff]
        %v1166 = vld [vmem:[%s963 + $0x29] sm:$0xff]
        %v1167 = vld [vmem:[%s963 + $0x31] sm:$0xff]
        %v1168 = vld [vmem:[%s963 + $0x49] sm:$0xff]
        %v1169 = vld [vmem:[%s963 + $0x51] sm:$0xff]
        %v1170 = vld [vmem:[%s963 + $0x69] sm:$0xff]
        %v1171 = vld [vmem:[%s963 + $0x71] sm:$0xff]
        %v1172 = vld [vmem:[%s963 + $0x89] sm:$0xff]
        %v1173 = vld [vmem:[%s963 + $0x91] sm:$0xff]
        %v1174 = vld [vmem:[%s963 + $0xa9] sm:$0xff]
        %v1175 = vld [vmem:[%s963 + $0xb1] sm:$0xff]
        %v1176 = vld [vmem:[%s963 + $0xc9] sm:$0xff]
        %v1177 = vld [vmem:[%s963 + $0xd1] sm:$0xff]
        %v1178 = vld [vmem:[%s963 + $0xe9] sm:$0xff]
        %v1179 = vld [vmem:[%s963 + $0xf1] sm:$0xff]
        %v1180 = vld [vmem:[%s963 + $0x109] sm:$0xff]
        %v1181 = vld [vmem:[%s963 + $0x111] sm:$0xff]
        %v1182 = vld [vmem:[%s963 + $0x129] sm:$0xff]
        %v1183 = vld [vmem:[%s963 + $0x131] sm:$0xff]
        %v1184 = vld [vmem:[%s963 + $0x149] sm:$0xff]
        %v1185 = vld [vmem:[%s963 + $0x151] sm:$0xff]
        %v1186 = vld [vmem:[%s963 + $0x169] sm:$0xff]
        %v1187 = vld [vmem:[%s963 + $0x171] sm:$0xff]
        %v1188 = vld [vmem:[%s963 + $0x189] sm:$0xff]
        %v1189 = vld [vmem:[%s963 + $0x191] sm:$0xff]
        %v1190 = vld [vmem:[%s963 + $0x1a9] sm:$0xff]
        %v1191 = vld [vmem:[%s963 + $0x1b1] sm:$0xff]
        %v1192 = vld [vmem:[%s963 + $0x1c9] sm:$0xff]
        %v1193 = vld [vmem:[%s963 + $0x1d1] sm:$0xff]
        %v1194 = vld [vmem:[%s963 + $0x1e9] sm:$0xff]
        %v1195 = vld [vmem:[%s963 + $0x1f1] sm:$0xff]
        %v1196 = vlaneseq
        %v1197 = vshrl.u32 %v1196, 7
        %v1198 = vsub.s32 0, %v1197
        %v1199 = vrot.slane %v362, %v1198
        %v1200 = vmul.f32 %v1164, %v1199
        %v1201 = vmul.f32 %v1165, %v1199
        %v1202 = vmul.f32 %v1166, %v1199
        %v1203 = vmul.f32 %v1167, %v1199
        %v1204 = vmul.f32 %v1168, %v1199
        %v1205 = vmul.f32 %v1169, %v1199
        %v1206 = vmul.f32 %v1170, %v1199
        %v1207 = vmul.f32 %v1171, %v1199
        %v1208 = vmul.f32 %v1172, %v1199
        %v1209 = vmul.f32 %v1173, %v1199
        %v1210 = vmul.f32 %v1174, %v1199
        %v1211 = vmul.f32 %v1175, %v1199
        %v1212 = vmul.f32 %v1176, %v1199
        %v1213 = vmul.f32 %v1177, %v1199
        %v1214 = vmul.f32 %v1178, %v1199
        %v1215 = vmul.f32 %v1179, %v1199
        %v1216 = vmul.f32 %v1180, %v1199
        %v1217 = vmul.f32 %v1181, %v1199
        %v1218 = vmul.f32 %v1182, %v1199
        %v1219 = vmul.f32 %v1183, %v1199
        %v1220 = vmul.f32 %v1184, %v1199
        %v1221 = vmul.f32 %v1185, %v1199
        %v1222 = vmul.f32 %v1186, %v1199
        %v1223 = vmul.f32 %v1187, %v1199
        %v1224 = vmul.f32 %v1188, %v1199
        %v1225 = vmul.f32 %v1189, %v1199
        %v1226 = vmul.f32 %v1190, %v1199
        %v1227 = vmul.f32 %v1191, %v1199
        %v1228 = vmul.f32 %v1192, %v1199
        %v1229 = vmul.f32 %v1193, %v1199
        %v1230 = vmul.f32 %v1194, %v1199
        %v1231 = vmul.f32 %v1195, %v1199
        %v1232 = vadd.f32 %v1132, %v1200
        %v1233 = vadd.f32 %v1133, %v1201
        %v1234 = vadd.f32 %v1134, %v1202
        %v1235 = vadd.f32 %v1135, %v1203
        %v1236 = vadd.f32 %v1136, %v1204
        %v1237 = vadd.f32 %v1137, %v1205
        %v1238 = vadd.f32 %v1138, %v1206
        %v1239 = vadd.f32 %v1139, %v1207
        %v1240 = vadd.f32 %v1140, %v1208
        %v1241 = vadd.f32 %v1141, %v1209
        %v1242 = vadd.f32 %v1142, %v1210
        %v1243 = vadd.f32 %v1143, %v1211
        %v1244 = vadd.f32 %v1144, %v1212
        %v1245 = vadd.f32 %v1145, %v1213
        %v1246 = vadd.f32 %v1146, %v1214
        %v1247 = vadd.f32 %v1147, %v1215
        %v1248 = vadd.f32 %v1148, %v1216
        %v1249 = vadd.f32 %v1149, %v1217
        %v1250 = vadd.f32 %v1150, %v1218
        %v1251 = vadd.f32 %v1151, %v1219
        %v1252 = vadd.f32 %v1152, %v1220
        %v1253 = vadd.f32 %v1153, %v1221
        %v1254 = vadd.f32 %v1154, %v1222
        %v1255 = vadd.f32 %v1155, %v1223
        %v1256 = vadd.f32 %v1156, %v1224
        %v1257 = vadd.f32 %v1157, %v1225
        %v1258 = vadd.f32 %v1158, %v1226
        %v1259 = vadd.f32 %v1159, %v1227
        %v1260 = vadd.f32 %v1160, %v1228
        %v1261 = vadd.f32 %v1161, %v1229
        %v1262 = vadd.f32 %v1162, %v1230
        %v1263 = vadd.f32 %v1163, %v1231
        %v1264 = vld [vmem:[%s2] sm:$0x1]
        %v1266 = vlaneseq
        %v1267 = vshrl.u32 %v1266, 7
        %v1268 = vsub.s32 0, %v1267
        %v1269 = vrot.slane %v1264, %v1268
        %v1271 = vadd.f32 %v1232, %v1269
        %v1272 = vadd.f32 %v1233, %v1269
        %v1273 = vadd.f32 %v1234, %v1269
        %v1274 = vadd.f32 %v1235, %v1269
        %v1275 = vadd.f32 %v1236, %v1269
        %v1276 = vadd.f32 %v1237, %v1269
        %v1277 = vadd.f32 %v1238, %v1269
        %v1278 = vadd.f32 %v1239, %v1269
        %v1279 = vadd.f32 %v1240, %v1269
        %v1280 = vadd.f32 %v1241, %v1269
        %v1281 = vadd.f32 %v1242, %v1269
        %v1282 = vadd.f32 %v1243, %v1269
        %v1283 = vadd.f32 %v1244, %v1269
        %v1284 = vadd.f32 %v1245, %v1269
        %v1285 = vadd.f32 %v1246, %v1269
        %v1286 = vadd.f32 %v1247, %v1269
        %v1287 = vadd.f32 %v1248, %v1269
        %v1288 = vadd.f32 %v1249, %v1269
        %v1289 = vadd.f32 %v1250, %v1269
        %v1290 = vadd.f32 %v1251, %v1269
        %v1291 = vadd.f32 %v1252, %v1269
        %v1292 = vadd.f32 %v1253, %v1269
        %v1293 = vadd.f32 %v1254, %v1269
        %v1294 = vadd.f32 %v1255, %v1269
        %v1295 = vadd.f32 %v1256, %v1269
        %v1296 = vadd.f32 %v1257, %v1269
        %v1297 = vadd.f32 %v1258, %v1269
        %v1298 = vadd.f32 %v1259, %v1269
        %v1299 = vadd.f32 %v1260, %v1269
        %v1300 = vadd.f32 %v1261, %v1269
        %v1301 = vadd.f32 %v1262, %v1269
        %v1302 = vadd.f32 %v1263, %v1269
        %v1303 = vld [vmem:[%s3] sm:$0xff]
        %v1304 = vld [vmem:[%s3 + $0x8] sm:$0xff]
        %v1305 = vld [vmem:[%s3 + $0x10] sm:$0xff]
        %v1306 = vld [vmem:[%s3 + $0x18] sm:$0xff]
        %v1307 = vld [vmem:[%s4] sm:$0x1]
        %v1309 = vlaneseq
        %v1310 = vshrl.u32 %v1309, 7
        %v1311 = vsub.s32 0, %v1310
        %v1312 = vrot.slane %v1307, %v1311
        %v1315 = vsel %vm223, %v1271, 0
        %v1318 = vsel %vm223, %v1272, 0
        %v1321 = vsel %vm223, %v1273, 0
        %v1324 = vsel %vm223, %v1274, 0
        %v1327 = vsel %vm223, %v1275, 0
        %v1330 = vsel %vm223, %v1276, 0
        %v1333 = vsel %vm223, %v1277, 0
        %v1336 = vsel %vm223, %v1278, 0
        %v1339 = vsel %vm223, %v1279, 0
        %v1342 = vsel %vm223, %v1280, 0
        %v1345 = vsel %vm223, %v1281, 0
        %v1348 = vsel %vm223, %v1282, 0
        %v1351 = vsel %vm223, %v1283, 0
        %v1354 = vsel %vm223, %v1284, 0
        %v1357 = vsel %vm223, %v1285, 0
        %v1360 = vsel %vm223, %v1286, 0
        %v1363 = vsel %vm223, %v1287, 0
        %v1366 = vsel %vm223, %v1288, 0
        %v1369 = vsel %vm223, %v1289, 0
        %v1372 = vsel %vm223, %v1290, 0
        %v1375 = vsel %vm223, %v1291, 0
        %v1378 = vsel %vm223, %v1292, 0
        %v1381 = vsel %vm223, %v1293, 0
        %v1384 = vsel %vm223, %v1294, 0
        %v1387 = vsel %vm223, %v1295, 0
        %v1390 = vsel %vm223, %v1296, 0
        %v1393 = vsel %vm223, %v1297, 0
        %v1396 = vsel %vm223, %v1298, 0
        %v1399 = vsel %vm223, %v1299, 0
        %v1402 = vsel %vm223, %v1300, 0
        %v1405 = vsel %vm223, %v1301, 0
        %v1408 = vsel %vm223, %v1302, 0
        %1410 = vmatprep.subr.mxu0 0.0
        %1411 = vmatpush1.msra.mxu0 0.0
        %1412 = vmatprep.subr.mxu0 0.0
        %1413 = vmatpush1.msra.mxu0 0.0
        %1414 = vmatprep.subr.mxu0 0.0
        %1415 = vmatpush1.msra.mxu0 0.0
        %1416 = vmatprep.subr.mxu0 0.0
        %1417 = vmatpush1.msra.mxu0 0.0
        %1418 = vmatprep.subr.mxu0 0.0
        %1419 = vmatpush1.msra.mxu0 0.0
        %1420 = vmatprep.subr.mxu0 0.0
        %1421 = vmatpush1.msra.mxu0 0.0
        %1422 = vmatprep.subr.mxu0 0.0
        %1423 = vmatpush1.msra.mxu0 0.0
        %1424 = vmatprep.subr.mxu0 0.0
        %1425 = vmatpush1.msra.mxu0 0.0
        %1426 = vmatprep.subr.mxu0 0.0
        %1427 = vmatpush1.msra.mxu0 0.0
        %1428 = vmatprep.subr.mxu0 0.0
        %1429 = vmatpush1.msra.mxu0 0.0
        %1430 = vmatprep.subr.mxu0 0.0
        %1431 = vmatpush1.msra.mxu0 0.0
        %1432 = vmatprep.subr.mxu0 0.0
        %1433 = vmatpush1.msra.mxu0 0.0
        %1434 = vmatprep.subr.mxu0 0.0
        %1435 = vmatpush1.msra.mxu0 %v1306
        %1436 = vmatprep.subr.mxu0 0.0
        %1437 = vmatpush1.msra.mxu0 %v1305
        %1438 = vmatprep.subr.mxu0 0.0
        %1439 = vmatpush1.msra.mxu0 %v1304
        %1440 = vmatprep.subr.mxu0 0.0
        %1441 = vmatpush1.msra.mxu0 %v1303
        %1442 = vmatprep.subr.mxu0 0.0
        %1443 = vmatpush2.msra.mxu0 0.0
        %1444 = vmatprep.subr.mxu0 0.0
        %1445 = vmatpush2.msra.mxu0 0.0
        %1446 = vmatprep.subr.mxu0 0.0
        %1447 = vmatpush2.msra.mxu0 0.0
        %1448 = vmatprep.subr.mxu0 0.0
        %1449 = vmatpush2.msra.mxu0 0.0
        %1450 = vmatprep.subr.mxu0 0.0
        %1451 = vmatpush2.msra.mxu0 0.0
        %1452 = vmatprep.subr.mxu0 0.0
        %1453 = vmatpush2.msra.mxu0 0.0
        %1454 = vmatprep.subr.mxu0 0.0
        %1455 = vmatpush2.msra.mxu0 0.0
        %1456 = vmatprep.subr.mxu0 0.0
        %1457 = vmatpush2.msra.mxu0 0.0
        %1458 = vmatprep.subr.mxu0 0.0
        %1459 = vmatpush2.msra.mxu0 0.0
        %1460 = vmatprep.subr.mxu0 0.0
        %1461 = vmatpush2.msra.mxu0 0.0
        %1462 = vmatprep.subr.mxu0 0.0
        %1463 = vmatpush2.msra.mxu0 0.0
        %1464 = vmatprep.subr.mxu0 0.0
        %1465 = vmatpush2.msra.mxu0 0.0
        %1466 = vmatprep.subr.mxu0 0.0
        %1467 = vmatpush2.msra.mxu0 0.0
        %1468 = vmatprep.subr.mxu0 0.0
        %1469 = vmatpush2.msra.mxu0 0.0
        %1470 = vmatprep.subr.mxu0 0.0
        %1471 = vmatpush2.msra.mxu0 0.0
        %1472 = vmatprep.subr.mxu0 0.0
        %1473 = vmatpush2.msra.mxu0 0.0
        %1474 = vmatprep.mubr.f32.mxu0 0.0
        %1475 = vmatmul.mubr.f32.gmra.mxu0 %v1315
        %v1476 = vpop.f32.mrf.mxu0
        %v1477 = vadd.f32 %v1312, %v1476
        %v1478 = vpop.f32.mrf.mxu0
        %1479 = vmatprep.mubr.f32.mxu0 0.0
        %1480 = vmatmul.mubr.f32.gmra.mxu0 %v1318
        %v1481 = vpop.f32.mrf.mxu0
        %v1482 = vadd.f32 %v1312, %v1481
        %v1483 = vpop.f32.mrf.mxu0
        %1484 = vmatprep.mubr.f32.mxu0 0.0
        %1485 = vmatmul.mubr.f32.gmra.mxu0 %v1321
        %v1486 = vpop.f32.mrf.mxu0
        %v1487 = vadd.f32 %v1312, %v1486
        %v1488 = vpop.f32.mrf.mxu0
        %1489 = vmatprep.mubr.f32.mxu0 0.0
        %1490 = vmatmul.mubr.f32.gmra.mxu0 %v1324
        %v1491 = vpop.f32.mrf.mxu0
        %v1492 = vadd.f32 %v1312, %v1491
        %v1493 = vpop.f32.mrf.mxu0
        %1494 = vmatprep.mubr.f32.mxu0 0.0
        %1495 = vmatmul.mubr.f32.gmra.mxu0 %v1327
        %v1496 = vpop.f32.mrf.mxu0
        %v1497 = vadd.f32 %v1312, %v1496
        %v1498 = vpop.f32.mrf.mxu0
        %1499 = vmatprep.mubr.f32.mxu0 0.0
        %1500 = vmatmul.mubr.f32.gmra.mxu0 %v1330
        %v1501 = vpop.f32.mrf.mxu0
        %v1502 = vadd.f32 %v1312, %v1501
        %v1503 = vpop.f32.mrf.mxu0
        %1504 = vmatprep.mubr.f32.mxu0 0.0
        %1505 = vmatmul.mubr.f32.gmra.mxu0 %v1333
        %v1506 = vpop.f32.mrf.mxu0
        %v1507 = vadd.f32 %v1312, %v1506
        %v1508 = vpop.f32.mrf.mxu0
        %1509 = vmatprep.mubr.f32.mxu0 0.0
        %1510 = vmatmul.mubr.f32.gmra.mxu0 %v1336
        %v1511 = vpop.f32.mrf.mxu0
        %v1512 = vadd.f32 %v1312, %v1511
        %v1513 = vpop.f32.mrf.mxu0
        %1514 = vmatprep.mubr.f32.mxu0 0.0
        %1515 = vmatmul.mubr.f32.gmra.mxu0 %v1339
        %v1516 = vpop.f32.mrf.mxu0
        %v1517 = vadd.f32 %v1312, %v1516
        %v1518 = vpop.f32.mrf.mxu0
        %1519 = vmatprep.mubr.f32.mxu0 0.0
        %1520 = vmatmul.mubr.f32.gmra.mxu0 %v1342
        %v1521 = vpop.f32.mrf.mxu0
        %v1522 = vadd.f32 %v1312, %v1521
        %v1523 = vpop.f32.mrf.mxu0
        %1524 = vmatprep.mubr.f32.mxu0 0.0
        %1525 = vmatmul.mubr.f32.gmra.mxu0 %v1345
        %v1526 = vpop.f32.mrf.mxu0
        %v1527 = vadd.f32 %v1312, %v1526
        %v1528 = vpop.f32.mrf.mxu0
        %1529 = vmatprep.mubr.f32.mxu0 0.0
        %1530 = vmatmul.mubr.f32.gmra.mxu0 %v1348
        %v1531 = vpop.f32.mrf.mxu0
        %v1532 = vadd.f32 %v1312, %v1531
        %v1533 = vpop.f32.mrf.mxu0
        %1534 = vmatprep.mubr.f32.mxu0 0.0
        %1535 = vmatmul.mubr.f32.gmra.mxu0 %v1351
        %v1536 = vpop.f32.mrf.mxu0
        %v1537 = vadd.f32 %v1312, %v1536
        %v1538 = vpop.f32.mrf.mxu0
        %1539 = vmatprep.mubr.f32.mxu0 0.0
        %1540 = vmatmul.mubr.f32.gmra.mxu0 %v1354
        %v1541 = vpop.f32.mrf.mxu0
        %v1542 = vadd.f32 %v1312, %v1541
        %v1543 = vpop.f32.mrf.mxu0
        %1544 = vmatprep.mubr.f32.mxu0 0.0
        %1545 = vmatmul.mubr.f32.gmra.mxu0 %v1357
        %v1546 = vpop.f32.mrf.mxu0
        %v1547 = vadd.f32 %v1312, %v1546
        %v1548 = vpop.f32.mrf.mxu0
        %1549 = vmatprep.mubr.f32.mxu0 0.0
        %1550 = vmatmul.mubr.f32.gmra.mxu0 %v1360
        %v1551 = vpop.f32.mrf.mxu0
        %v1552 = vadd.f32 %v1312, %v1551
        %v1553 = vpop.f32.mrf.mxu0
        %1554 = vmatprep.mubr.f32.mxu0 0.0
        %1555 = vmatmul.mubr.f32.gmra.mxu0 %v1363
        %v1556 = vpop.f32.mrf.mxu0
        %v1557 = vadd.f32 %v1312, %v1556
        %v1558 = vpop.f32.mrf.mxu0
        %1559 = vmatprep.mubr.f32.mxu0 0.0
        %1560 = vmatmul.mubr.f32.gmra.mxu0 %v1366
        %v1561 = vpop.f32.mrf.mxu0
        %v1562 = vadd.f32 %v1312, %v1561
        %v1563 = vpop.f32.mrf.mxu0
        %1564 = vmatprep.mubr.f32.mxu0 0.0
        %1565 = vmatmul.mubr.f32.gmra.mxu0 %v1369
        %v1566 = vpop.f32.mrf.mxu0
        %v1567 = vadd.f32 %v1312, %v1566
        %v1568 = vpop.f32.mrf.mxu0
        %1569 = vmatprep.mubr.f32.mxu0 0.0
        %1570 = vmatmul.mubr.f32.gmra.mxu0 %v1372
        %v1571 = vpop.f32.mrf.mxu0
        %v1572 = vadd.f32 %v1312, %v1571
        %v1573 = vpop.f32.mrf.mxu0
        %1574 = vmatprep.mubr.f32.mxu0 0.0
        %1575 = vmatmul.mubr.f32.gmra.mxu0 %v1375
        %v1576 = vpop.f32.mrf.mxu0
        %v1577 = vadd.f32 %v1312, %v1576
        %v1578 = vpop.f32.mrf.mxu0
        %1579 = vmatprep.mubr.f32.mxu0 0.0
        %1580 = vmatmul.mubr.f32.gmra.mxu0 %v1378
        %v1581 = vpop.f32.mrf.mxu0
        %v1582 = vadd.f32 %v1312, %v1581
        %v1583 = vpop.f32.mrf.mxu0
        %1584 = vmatprep.mubr.f32.mxu0 0.0
        %1585 = vmatmul.mubr.f32.gmra.mxu0 %v1381
        %v1586 = vpop.f32.mrf.mxu0
        %v1587 = vadd.f32 %v1312, %v1586
        %v1588 = vpop.f32.mrf.mxu0
        %1589 = vmatprep.mubr.f32.mxu0 0.0
        %1590 = vmatmul.mubr.f32.gmra.mxu0 %v1384
        %v1591 = vpop.f32.mrf.mxu0
        %v1592 = vadd.f32 %v1312, %v1591
        %v1593 = vpop.f32.mrf.mxu0
        %1594 = vmatprep.mubr.f32.mxu0 0.0
        %1595 = vmatmul.mubr.f32.gmra.mxu0 %v1387
        %v1596 = vpop.f32.mrf.mxu0
        %v1597 = vadd.f32 %v1312, %v1596
        %v1598 = vpop.f32.mrf.mxu0
        %1599 = vmatprep.mubr.f32.mxu0 0.0
        %1600 = vmatmul.mubr.f32.gmra.mxu0 %v1390
        %v1601 = vpop.f32.mrf.mxu0
        %v1602 = vadd.f32 %v1312, %v1601
        %v1603 = vpop.f32.mrf.mxu0
        %1604 = vmatprep.mubr.f32.mxu0 0.0
        %1605 = vmatmul.mubr.f32.gmra.mxu0 %v1393
        %v1606 = vpop.f32.mrf.mxu0
        %v1607 = vadd.f32 %v1312, %v1606
        %v1608 = vpop.f32.mrf.mxu0
        %1609 = vmatprep.mubr.f32.mxu0 0.0
        %1610 = vmatmul.mubr.f32.gmra.mxu0 %v1396
        %v1611 = vpop.f32.mrf.mxu0
        %v1612 = vadd.f32 %v1312, %v1611
        %v1613 = vpop.f32.mrf.mxu0
        %1614 = vmatprep.mubr.f32.mxu0 0.0
        %1615 = vmatmul.mubr.f32.gmra.mxu0 %v1399
        %v1616 = vpop.f32.mrf.mxu0
        %v1617 = vadd.f32 %v1312, %v1616
        %v1618 = vpop.f32.mrf.mxu0
        %1619 = vmatprep.mubr.f32.mxu0 0.0
        %1620 = vmatmul.mubr.f32.gmra.mxu0 %v1402
        %v1621 = vpop.f32.mrf.mxu0
        %v1622 = vadd.f32 %v1312, %v1621
        %v1623 = vpop.f32.mrf.mxu0
        %1624 = vmatprep.mubr.f32.mxu0 0.0
        %1625 = vmatmul.mubr.f32.gmra.mxu0 %v1405
        %v1626 = vpop.f32.mrf.mxu0
        %v1627 = vadd.f32 %v1312, %v1626
        %v1628 = vpop.f32.mrf.mxu0
        %1629 = vmatprep.mubr.f32.mxu0 0.0
        %1630 = vmatmul.mubr.f32.gmra.mxu0 %v1408
        %v1631 = vpop.f32.mrf.mxu0
        %v1632 = vadd.f32 %v1312, %v1631
        %v1633 = vpop.f32.mrf.mxu0
        %1634 = vdwg.mxu0
        %1635 = vst.msk [vmem:[%s217] sm:$0xff] %vm223, %v1477
        %1636 = vst.msk [vmem:[%s217 + $0x8] sm:$0xff] %vm223, %v1482
        %1637 = vst.msk [vmem:[%s217 + $0x10] sm:$0xff] %vm223, %v1487
        %1638 = vst.msk [vmem:[%s217 + $0x18] sm:$0xff] %vm223, %v1492
        %1639 = vst.msk [vmem:[%s217 + $0x20] sm:$0xff] %vm223, %v1497
        %1640 = vst.msk [vmem:[%s217 + $0x28] sm:$0xff] %vm223, %v1502
        %1641 = vst.msk [vmem:[%s217 + $0x30] sm:$0xff] %vm223, %v1507
        %1642 = vst.msk [vmem:[%s217 + $0x38] sm:$0xff] %vm223, %v1512
        %1643 = vst.msk [vmem:[%s217 + $0x40] sm:$0xff] %vm223, %v1517
        %1644 = vst.msk [vmem:[%s217 + $0x48] sm:$0xff] %vm223, %v1522
        %1645 = vst.msk [vmem:[%s217 + $0x50] sm:$0xff] %vm223, %v1527
        %1646 = vst.msk [vmem:[%s217 + $0x58] sm:$0xff] %vm223, %v1532
        %1647 = vst.msk [vmem:[%s217 + $0x60] sm:$0xff] %vm223, %v1537
        %1648 = vst.msk [vmem:[%s217 + $0x68] sm:$0xff] %vm223, %v1542
        %1649 = vst.msk [vmem:[%s217 + $0x70] sm:$0xff] %vm223, %v1547
        %1650 = vst.msk [vmem:[%s217 + $0x78] sm:$0xff] %vm223, %v1552
        %1651 = vst.msk [vmem:[%s217 + $0x80] sm:$0xff] %vm223, %v1557
        %1652 = vst.msk [vmem:[%s217 + $0x88] sm:$0xff] %vm223, %v1562
        %1653 = vst.msk [vmem:[%s217 + $0x90] sm:$0xff] %vm223, %v1567
        %1654 = vst.msk [vmem:[%s217 + $0x98] sm:$0xff] %vm223, %v1572
        %1655 = vst.msk [vmem:[%s217 + $0xa0] sm:$0xff] %vm223, %v1577
        %1656 = vst.msk [vmem:[%s217 + $0xa8] sm:$0xff] %vm223, %v1582
        %1657 = vst.msk [vmem:[%s217 + $0xb0] sm:$0xff] %vm223, %v1587
        %1658 = vst.msk [vmem:[%s217 + $0xb8] sm:$0xff] %vm223, %v1592
        %1659 = vst.msk [vmem:[%s217 + $0xc0] sm:$0xff] %vm223, %v1597
        %1660 = vst.msk [vmem:[%s217 + $0xc8] sm:$0xff] %vm223, %v1602
        %1661 = vst.msk [vmem:[%s217 + $0xd0] sm:$0xff] %vm223, %v1607
        %1662 = vst.msk [vmem:[%s217 + $0xd8] sm:$0xff] %vm223, %v1612
        %1663 = vst.msk [vmem:[%s217 + $0xe0] sm:$0xff] %vm223, %v1617
        %1664 = vst.msk [vmem:[%s217 + $0xe8] sm:$0xff] %vm223, %v1622
        %1665 = vst.msk [vmem:[%s217 + $0xf0] sm:$0xff] %vm223, %v1627
        %1666 = vst.msk [vmem:[%s217 + $0xf8] sm:$0xff] %vm223, %v1632
        %s1667 = sand.u32 %s137, 1
        %s1668 = scalar_lea.sflag [#allocation4], %s1667
        %s1669 = sand.u32 %s137, 1
        %s1670 = smul.addr %s1669, 256
        %s1671 = scalar_lea.vmem [#allocation3], %s1670
        // Predicated region
        $region41: #{feature_extractor_forward.10} parent=39 // pred_check
          %p1672 = pneg %p147
        $region42: #{feature_extractor_forward.10} parent=39 // pred_check_branch
          %1674 = sbr.rel (%p1672) target = $region44
        $region43: #{feature_extractor_forward.10} parent=39 // pred_region
          %s1676 = ssub.s32 4096, 4096
          %1677 = vsyncadd %s1668, %s1676
          %s1678 = smul.addr %s19, 32
          %s1679 = smul.addr %s1678, 128
          %s1680 = scalar_lea.hbm %s5, %s1679
          %s1681 = sshll.u32 %s1671, 4
          %s1682 = int_to_ptr.vmem [resolvable:$true] %s1681
          %1687 = dma.vmem_to_hbm [thread:$0]  %s1682, 4096, %s1680, %s1668, 128, 128, 8
        $region44: #{feature_extractor_forward.10} parent=39 // pred_fallthru
          _
      $region40: #{feature_extractor_forward.10} parent=5 // pred_fallthru
        _
      %p1688 = scmp.le.s32.totalorder 2, %s14
      // Predicated region
      $region45: #{feature_extractor_forward.10} parent=5 // pred_check
        %p1689 = pneg %p1688
      $region46: #{feature_extractor_forward.10} parent=5 // pred_check_branch
        %1691 = sbr.rel (%p1689) target = $region48
      $region47: #{feature_extractor_forward.10} parent=5 // pred_region
        %s1692 = ssub.s32 %s14, 2
        // Predicated region
        $region49: #{feature_extractor_forward.10} parent=47 // pred_check
          %p1693 = pneg %p153
        $region50: #{feature_extractor_forward.10} parent=47 // pred_check_branch
          %1695 = sbr.rel (%p1693) target = $region52
        $region51: #{feature_extractor_forward.10} parent=47 // pred_region
          %s1696 = sand.u32 %s138, 1
          %s1697 = scalar_lea.sflag [#allocation4], %s1696
          %s1698 = sand.u32 %s138, 1
          %s1699 = smul.addr %s1698, 256
          %s1700 = scalar_lea.vmem [#allocation3], %s1699
          %1701 = dma.done %s1697, 4096
        $region52: #{feature_extractor_forward.10} parent=47 // pred_fallthru
          _
      $region48: #{feature_extractor_forward.10} parent=5 // pred_fallthru
        _
    $region6: #{feature_extractor_forward.10} parent=1 // loop_footer
      %s18 = sadd.s32 1, %s14
    $region7: #{feature_extractor_forward.10} parent=1 // loop_footer_branch
      %13 = sbr.rel target = $region3
    $region8: #{feature_extractor_forward.10} parent=1 // loop_exit
      _
    %1702 = vsyncpa [#allocation4], 1
    %s1703 = scalar_lea.sflag [#allocation4], 1
    %1704 = vsyncpa %s1703, 1

</llo_original>
